<compile_context>
chip_gen: v6e
topology: v6e:2x2x1
jax: 0.10.0
libtpu: 0.0.40
codegen_flags: <defaults>
</compile_context>

<pallas_src>
import jax
import jax.numpy as jnp
import numpy as np
from jax import lax
from jax.experimental import pallas as pl
from jax.experimental.pallas import tpu as pltpu

LANE = 128        # TPU lane width; all feature dims are zero-padded to this
NEG = -1e30       # additive bias that excludes padded lanes from softmax / log_softmax
MASKED = -1e10    # module's masked_fill value for mask == 0 positions


def _round_up(x, m):
    return ((x + m - 1) // m) * m


def pack_params(params, L, H, E, V):
    """Pack natural (PyTorch-layout) parameters into padded, pre-transposed buffers."""
    F = LANE
    Vp = _round_up(V, LANE)
    idx = 0
    w1_l, w2_l, b_l = [], [], []
    for _ in range(L):
        w_ih, w_hh, b_ih, b_hh = params[idx:idx + 4]
        idx += 4
        I = w_ih.shape[1]
        # torch GRU gate order: [r, z, n]. Columns are per-gate 128-lane blocks.
        W1 = jnp.zeros((2 * F, 3 * F), jnp.float32)
        W1 = W1.at[0:I, 0:H].set(w_ih[0:H].T)                      # r, x-part
        W1 = W1.at[F:F + H, 0:H].set(w_hh[0:H].T)                  # r, h-part
        W1 = W1.at[0:I, F:F + H].set(w_ih[H:2 * H].T)              # z, x-part
        W1 = W1.at[F:F + H, F:F + H].set(w_hh[H:2 * H].T)          # z, h-part
        W1 = W1.at[0:I, 2 * F:2 * F + H].set(w_ih[2 * H:3 * H].T)  # n, x-part only
        W2 = jnp.zeros((F, F), jnp.float32)
        W2 = W2.at[0:H, 0:H].set(w_hh[2 * H:3 * H].T)              # n, h-part (kept separate)
        b = jnp.zeros((1, 4 * F), jnp.float32)
        b = b.at[0, 0:H].set(b_ih[0:H] + b_hh[0:H])
        b = b.at[0, F:F + H].set(b_ih[H:2 * H] + b_hh[H:2 * H])
        b = b.at[0, 2 * F:2 * F + H].set(b_ih[2 * H:3 * H])
        b = b.at[0, 3 * F:3 * F + H].set(b_hh[2 * H:3 * H])
        w1_l.append(W1); w2_l.append(W2); b_l.append(b)

    vg, ug, wg, wh, uh, ow, ob = params[idx:]
    misc = jnp.zeros((3, F), jnp.float32)          # rows: V_g, U_g, W_g (shrunk from (8, F))
    misc = misc.at[0, 0:E].set(vg[0])
    misc = misc.at[1, 0:H].set(ug[0])
    misc = misc.at[2, 0:H].set(wg[0])
    wcs = jnp.zeros((2 * F, F), jnp.float32)       # [Wh.T ; Uh.T] for concat([c_t, s_t])
    wcs = wcs.at[0:H, 0:H].set(wh.T)
    wcs = wcs.at[F:F + H, 0:H].set(uh.T)
    wout = jnp.zeros((F, Vp), jnp.float32)         # out.weight.T (padded)
    wout = wout.at[0:H, 0:V].set(ow.T)
    obvb = jnp.zeros((2, Vp), jnp.float32)         # row0: out bias, row1: vocab pad bias
    obvb = obvb.at[0, 0:V].set(ob)
    obvb = obvb.at[1, :].set(jnp.where(jnp.arange(Vp) < V, 0.0, NEG))
    # Projection weights go to the MXU in bf16 (f32 accumulation); GRU / biases stay f32.
    return (jnp.stack(w1_l), jnp.stack(w2_l), jnp.stack(b_l),
            misc, wcs.astype(jnp.bfloat16), wout.astype(jnp.bfloat16), obvb)


def build_forward(L, H, E, ML, V):
    F = LANE
    assert E <= F and H <= F, "feature dims > 128 need a different packing"
    Vp = _round_up(V, LANE)
    MLp = _round_up(ML, LANE)   # attention axis is lane-major now

    def kernel(emb_ref, h0_ref, enc_ref, encT_ref, mb_ref,
               w1_ref, w2_ref, b_ref, misc_ref, wcs_ref, wout_ref, obvb_ref,
               g_ref, hid_ref, aw_ref):
        T = emb_ref.shape[0]            # static at trace time
        Tp = g_ref.shape[0]

        # Hoisted loop-invariants (tiny; live in a few vregs).
        vg = misc_ref[0:1, :]
        ug = misc_ref[1:2, :]
        wg = misc_ref[2:3, :]
        ids = lax.broadcasted_iota(jnp.int32, (Tp, 1), 0)

        # Per-layer hidden state (carried in vregs across the unrolled time loop).
        h = [h0_ref[l] for l in range(L)]                       # each (1, F)

        # Accumulators for the batched post-loop projection and the dense output stores.
        cs_acc = jnp.zeros((Tp, 2 * F), jnp.float32)            # rows [c_t | s_t]
        pg_acc = jnp.zeros((Tp, 1), jnp.float32)                # pointer gate per step
        aw_acc = jnp.zeros((Tp, MLp), jnp.float32)              # lane-major attention weights
        hid_acc = [jnp.zeros((Tp, F), jnp.float32) for _ in range(L)]

        # TODO(synk): nn.Dropout on the embedding is training-mode stochastic;
        #             implemented here as eval-mode identity.
        # Static unroll over T decode steps (grid collapsed to a single program; use a
        # lax.fori_loop + dynamic leading-axis stores instead if T becomes large).
        for t in range(T):
            oh = (ids == t).astype(jnp.float32)                 # (Tp, 1) one-hot column
            d_t = emb_ref[t]                                    # (1, F) padded embedded token
            x = d_t

            # ---- multi-layer GRU step: 2 matmuls / layer, vreg-aligned gate slices ----
            for l in range(L):
                h_prev = h[l]                                   # (1, F)
                xh = jnp.concatenate([x, h_prev], axis=1)       # (1, 2F) lane-aligned
                big = lax.dot_general(xh, w1_ref[l], (((1,), (0,)), ((), ())),
                                      preferred_element_type=jnp.float32)   # (1, 3F)
                ghn = lax.dot_general(h_prev, w2_ref[l], (((1,), (0,)), ((), ())),
                                      preferred_element_type=jnp.float32)   # (1, F)
                bias = b_ref[l]                                 # (1, 4F)
                r = jax.nn.sigmoid(big[:, 0:F] + bias[:, 0:F])
                z = jax.nn.sigmoid(big[:, F:2 * F] + bias[:, F:2 * F])
                gi_n = big[:, 2 * F:3 * F] + bias[:, 2 * F:3 * F]
                gh_n = ghn + bias[:, 3 * F:4 * F]
                n = jnp.tanh(gi_n + r * gh_n)
                h_new = (1.0 - z) * n + z * h_prev
                h[l] = h_new
                hid_acc[l] = hid_acc[l] + oh * h_new            # row t of layer l
                x = h_new

            s_t = x                                             # (1, F), padded lanes stay 0

            # ---- attention, lane-major: MXU matvecs, additive mask bias -----------------
            score = lax.dot_general(s_t, encT_ref[...], (((1,), (0,)), ((), ())),
                                    preferred_element_type=jnp.float32)      # (1, MLp)
            score = score + mb_ref[...]
            m = jnp.max(score, axis=1, keepdims=True)
            ex = jnp.exp(score - m)
            aw_row = ex * pl.reciprocal(jnp.sum(ex, axis=1, keepdims=True), approx=True)
            c_t = lax.dot_general(aw_row, enc_ref[...], (((1,), (0,)), ((), ())),
                                  preferred_element_type=jnp.float32)        # (1, F)
            aw_acc = aw_acc + oh * aw_row

            # ---- pointer gate p_g = sigmoid(V_g d_t + U_g s_t + W_g c_t) (VPU + XLU) ----
            p_g = jax.nn.sigmoid(
                jnp.sum(d_t * vg + s_t * ug + c_t * wg, axis=1, keepdims=True))   # (1, 1)
            pg_acc = pg_acc + oh * p_g
            cs_acc = cs_acc + oh * jnp.concatenate([c_t, s_t], axis=1)            # (1, 2F)

        # ---- dense per-layer hidden stores: L unmasked (Tp, 128) tiles -------------------
        for l in range(L):
            hid_ref[l] = hid_acc[l]
        aw_ref[...] = aw_acc                                     # one dense (Tp, MLp) tile

        # ---- batched generator projection (M = Tp on the MXU) + collapsed log_softmax ----
        # Reference: g[i,:] = log_softmax((1-p_g)*aw[i] + p_g*g_lin); the per-row constant
        # (1-p_g)*aw[i] cancels under log_softmax, so one (1, Vp) row per step suffices.
        tv = jnp.tanh(lax.dot_general(cs_acc.astype(jnp.bfloat16), wcs_ref[...],
                                      (((1,), (0,)), ((), ())),
                                      preferred_element_type=jnp.float32))   # (Tp, F)
        g_lin = lax.dot_general(tv.astype(jnp.bfloat16), wout_ref[...],
                                (((1,), (0,)), ((), ())),
                                preferred_element_type=jnp.float32)          # (Tp, Vp)
        g_lin = g_lin + obvb_ref[0:1, :]
        g_sc = pg_acc * g_lin + obvb_ref[1:2, :]                 # pad bias kills padded lanes
        gmax = jnp.max(g_sc, axis=1, keepdims=True)
        gsub = g_sc - gmax
        lse = jnp.log(jnp.sum(jnp.exp(gsub), axis=1, keepdims=True))
        g_ref[...] = gsub - lse                                  # dense (Tp, Vp) tile store

    def forward(emb_pad, h0_pad, enc_pad, encT_pad, mask_bias, packed):
        T = emb_pad.shape[0]
        Tp = _round_up(T, 8)
        w1, w2, b, misc, wcs, wout, obvb = packed

        grid_spec = pltpu.PrefetchScalarGridSpec(
            num_scalar_prefetch=0,
            grid=(1,),
            in_specs=[
                pl.BlockSpec((T, 1, F), lambda i: (0, 0, 0)),            # embedded tokens
                pl.BlockSpec((L, 1, F), lambda i: (0, 0, 0)),            # h0
                pl.BlockSpec((MLp, F), lambda i: (0, 0)),                # encoder outputs (rows)
                pl.BlockSpec((F, MLp), lambda i: (0, 0)),                # encoder outputs (cols)
                pl.BlockSpec((1, MLp), lambda i: (0, 0)),                # lane-major mask bias
                pl.BlockSpec((L, 2 * F, 3 * F), lambda i: (0, 0, 0)),    # GRU fused [Wr|Wz|Wnx]
                pl.BlockSpec((L, F, F), lambda i: (0, 0, 0)),            # GRU n-gate Whh
                pl.BlockSpec((L, 1, 4 * F), lambda i: (0, 0, 0)),        # GRU biases
                pl.BlockSpec((3, F), lambda i: (0, 0)),                  # V_g / U_g / W_g rows
                pl.BlockSpec((2 * F, F), lambda i: (0, 0)),              # [Wh.T ; Uh.T] (bf16)
                pl.BlockSpec((F, Vp), lambda i: (0, 0)),                 # out.weight.T (bf16)
                pl.BlockSpec((2, Vp), lambda i: (0, 0)),                 # out bias + vocab pad
            ],
            out_specs=[
                pl.BlockSpec((Tp, Vp), lambda i: (0, 0)),                # collapsed log-probs
                pl.BlockSpec((L, Tp, F), lambda i: (0, 0, 0)),           # hidden, layer-major
                pl.BlockSpec((Tp, MLp), lambda i: (0, 0)),               # attn weights, lane-major
            ],
            scratch_shapes=[],
        )
        out_shape = (
            jax.ShapeDtypeStruct((Tp, Vp), jnp.float32),
            jax.ShapeDtypeStruct((L, Tp, F), jnp.float32),
            jax.ShapeDtypeStruct((Tp, MLp), jnp.float32),
        )
        flops = int(2 * T * (L * (2 * F * 3 * F + F * F) + 2 * F * MLp)
                    + 2 * Tp * (2 * F * F + F * Vp))
        transcendentals = int(T * (3 * F * L + MLp + 2) + Tp * (F + Vp))
        bytes_accessed = int(
            4 * (T * F + L * F + 2 * MLp * F + MLp
                 + L * (2 * F * 3 * F + F * F + 4 * F) + 3 * F + 2 * Vp)
            + 2 * (2 * F * F + F * Vp)
            + 4 * (Tp * Vp + L * Tp * F + Tp * MLp))
        fn = pl.pallas_call(
            kernel,
            grid_spec=grid_spec,
            out_shape=out_shape,
            compiler_params=pltpu.CompilerParams(
                dimension_semantics=("arbitrary",)),   # sequential hidden-state carry
            cost_estimate=pl.CostEstimate(flops=flops,
                                          transcendentals=transcendentals,
                                          bytes_accessed=bytes_accessed),
        )
        return fn(emb_pad, h0_pad, enc_pad, encT_pad, mask_bias,
                  w1, w2, b, misc, wcs, wout, obvb)

    return forward


def ref_step(emb, h, enc2d, mask_col, params, L, H):
    """Pure-JAX reference for ONE application of the PyTorch forward (natural layouts)."""
    x = emb
    hs = []
    idx = 0
    for l in range(L):
        w_ih, w_hh, b_ih, b_hh = params[idx:idx + 4]
        idx += 4
        h_prev = h[l]
        gi = x @ w_ih.T + b_ih
        gh = h_prev @ w_hh.T + b_hh
        r = jax.nn.sigmoid(gi[:, :H] + gh[:, :H])
        z = jax.nn.sigmoid(gi[:, H:2 * H] + gh[:, H:2 * H])
        n = jnp.tanh(gi[:, 2 * H:] + r * gh[:, 2 * H:])
        h_new = (1.0 - z) * n + z * h_prev
        hs.append(h_new)
        x = h_new
    vg, ug, wg, wh, uh, ow, ob = params[idx:]
    s_t = x
    score = enc2d @ s_t.T
    score = jnp.where(mask_col == 0.0, MASKED, score)
    aw = jax.nn.softmax(score, axis=0)
    c_t = aw.T @ enc2d
    p_g = jax.nn.sigmoid(emb @ vg.T + s_t @ ug.T + c_t @ wg.T)
    g_lin = jnp.tanh(s_t @ uh.T + c_t @ wh.T) @ ow.T + ob
    g_big = (1.0 - p_g) * aw + p_g * g_lin
    g = jax.nn.log_softmax(g_big, axis=1)
    return g, jnp.stack(hs), aw


if __name__ == "__main__":
    # Small shapes consistent with the module (batch must be 1 for its squeeze/broadcast use).
    B = 1
    H = 32          # hidden_size
    E = 32          # embedding_dim
    ML = 8          # max_length
    V = 16          # output_size (vocab)
    L = 2           # num_layers
    T = 4           # fused decode steps (teacher-forced token ids)

    key = jax.random.PRNGKey(0)

    def nrm(k, shape, scale=0.1):
        return (scale * jax.random.normal(k, shape, dtype=jnp.float32)).astype(jnp.float32)

    keys = iter(jax.random.split(key, 64))

    # Parameters (deterministic synthetic init; shapes from __init__).
    emb_table = nrm(next(keys), (V, E), 1.0)          # embedding.weight
    gru_params = []
    for l in range(L):
        in_dim = E if l == 0 else H
        gru_params += [nrm(next(keys), (3 * H, in_dim)),    # weight_ih_l{l}
                       nrm(next(keys), (3 * H, H)),         # weight_hh_l{l}
                       nrm(next(keys), (3 * H,)),           # bias_ih_l{l}
                       nrm(next(keys), (3 * H,))]           # bias_hh_l{l}
    vg = nrm(next(keys), (1, E))          # V_g
    ug = nrm(next(keys), (1, H))          # U_g
    wg = nrm(next(keys), (1, H))          # W_g
    wh = nrm(next(keys), (H, H))          # Wh
    uh = nrm(next(keys), (H, H))          # Uh
    ow = nrm(next(keys), (V, H))          # out.weight
    ob = nrm(next(keys), (V,))            # out.bias
    # (attn / attn_combine layers exist in __init__ but are unused in forward.)
    params = gru_params + [vg, ug, wg, wh, uh, ow, ob]

    # Inputs: T decode steps, batch = 1 as in the module.
    token_ids = jnp.array([3, 1, 5, 2], dtype=jnp.int32)               # (T,)
    hidden0 = nrm(next(keys), (L, B, H), 0.5)                          # (L, B, H)
    encoder_outputs = nrm(next(keys), (ML, B, H), 0.5)                 # (ML, B, H)
    mask = jnp.array([[1, 1, 1, 1, 1, 1, 0, 0]], dtype=jnp.float32)    # (B, ML)

    # Host-side glue: embedding lookup (dropout == identity in eval), pad & pack once.
    F = LANE
    Vp = _round_up(V, LANE)
    MLp = _round_up(ML, LANE)
    Tp = _round_up(T, 8)
    embedded = emb_table[token_ids]                                    # (T, E)
    emb_pad = jnp.zeros((T, 1, F), jnp.float32).at[:, 0, :E].set(embedded)
    h0_pad = jnp.zeros((L, 1, F), jnp.float32).at[:, 0, :H].set(hidden0[:, 0, :])
    enc2d = encoder_outputs[:, 0, :]                                   # (ML, H)
    enc_pad = jnp.zeros((MLp, F), jnp.float32).at[:ML, :H].set(enc2d)
    encT_pad = jnp.transpose(enc_pad)                                  # (F, MLp)
    mask_bias = jnp.full((1, MLp), NEG, jnp.float32).at[0, :ML].set((mask[0] - 1.0) * 1e10)
    packed = pack_params(params, L, H, E, V)

    forward = build_forward(L, H, E, ML, V)
    g_all, hid_all, aw_all = forward(emb_pad, h0_pad, enc_pad, encT_pad, mask_bias, packed)
    jax.block_until_ready((g_all, hid_all, aw_all))

    # Rebuild the PyTorch shapes on the host (per step: g (B, ML, V), hidden (L, B, H),
    # attn_weights (B, ML, 1)).  All ML rows of g are mathematically identical.
    g_steps = jnp.broadcast_to(g_all[:T, None, :V], (T, ML, V))        # (T, ML, V)
    hid_steps = jnp.transpose(hid_all[:, :T, :H], (1, 0, 2))[:, :, None, :]  # (T, L, 1, H)
    aw_steps = aw_all[:T, :ML][:, :, None]                             # (T, ML, 1)

    # Pure-JAX reference: the same T sequential applications of the module forward.
    mask_col = mask.T                    # (ML, 1)
    h = hidden0
    g_r, hid_r, aw_r = [], [], []
    for t in range(T):
        gt, h, at = ref_step(embedded[t:t + 1], h, enc2d, mask_col, params, L, H)
        g_r.append(gt); hid_r.append(h); aw_r.append(at)
    g_r = jnp.stack(g_r); hid_r = jnp.stack(hid_r); aw_r = jnp.stack(aw_r)

    assert np.allclose(np.asarray(g_steps), np.asarray(g_r), rtol=5e-2, atol=5e-2)
    assert np.allclose(np.asarray(hid_steps), np.asarray(hid_r), rtol=5e-2, atol=5e-2)
    assert np.allclose(np.asarray(aw_steps), np.asarray(aw_r), rtol=5e-2, atol=5e-2)
    assert np.all(np.isfinite(np.asarray(g_steps)))

    print("KERNEL_OK")
</pallas_src>

<mosaic_0001>
module attributes {stable_mosaic.version = 11 : i64} {
  func.func @kernel(%arg0: i32, %arg1: memref<4x1x128xf32, #tpu.memory_space<vmem>>, %arg2: memref<2x1x128xf32, #tpu.memory_space<vmem>>, %arg3: memref<128x128xf32, #tpu.memory_space<vmem>>, %arg4: memref<128x128xf32, #tpu.memory_space<vmem>>, %arg5: memref<1x128xf32, #tpu.memory_space<vmem>>, %arg6: memref<2x256x384xf32, #tpu.memory_space<vmem>>, %arg7: memref<2x128x128xf32, #tpu.memory_space<vmem>>, %arg8: memref<2x1x512xf32, #tpu.memory_space<vmem>>, %arg9: memref<3x128xf32, #tpu.memory_space<vmem>>, %arg10: memref<256x128xbf16, #tpu.memory_space<vmem>>, %arg11: memref<128x128xbf16, #tpu.memory_space<vmem>>, %arg12: memref<2x128xf32, #tpu.memory_space<vmem>>, %arg13: memref<8x128xf32, #tpu.memory_space<vmem>>, %arg14: memref<2x8x128xf32, #tpu.memory_space<vmem>>, %arg15: memref<8x128xf32, #tpu.memory_space<vmem>>) attributes {dimension_semantics = [#tpu.dimension_semantics<arbitrary>], iteration_bounds = array<i64: 1>, scalar_prefetch = 0 : i64, scratch_operands = 0 : i64, tpu.core_type = #tpu.core_type<tc>, window_params = [{pipeline_mode = #tpu.pipeline_mode<synchronous>, transform_indices = @transform_0, window_bounds = array<i64: 4, 1, 128>}, {pipeline_mode = #tpu.pipeline_mode<synchronous>, transform_indices = @transform_1, window_bounds = array<i64: 2, 1, 128>}, {pipeline_mode = #tpu.pipeline_mode<synchronous>, transform_indices = @transform_2, window_bounds = array<i64: 128, 128>}, {pipeline_mode = #tpu.pipeline_mode<synchronous>, transform_indices = @transform_3, window_bounds = array<i64: 128, 128>}, {pipeline_mode = #tpu.pipeline_mode<synchronous>, transform_indices = @transform_4, window_bounds = array<i64: 1, 128>}, {pipeline_mode = #tpu.pipeline_mode<synchronous>, transform_indices = @transform_5, window_bounds = array<i64: 2, 256, 384>}, {pipeline_mode = #tpu.pipeline_mode<synchronous>, transform_indices = @transform_6, window_bounds = array<i64: 2, 128, 128>}, {pipeline_mode = #tpu.pipeline_mode<synchronous>, transform_indices = @transform_7, window_bounds = array<i64: 2, 1, 512>}, {pipeline_mode = #tpu.pipeline_mode<synchronous>, transform_indices = @transform_8, window_bounds = array<i64: 3, 128>}, {pipeline_mode = #tpu.pipeline_mode<synchronous>, transform_indices = @transform_9, window_bounds = array<i64: 256, 128>}, {pipeline_mode = #tpu.pipeline_mode<synchronous>, transform_indices = @transform_10, window_bounds = array<i64: 128, 128>}, {pipeline_mode = #tpu.pipeline_mode<synchronous>, transform_indices = @transform_11, window_bounds = array<i64: 2, 128>}, {pipeline_mode = #tpu.pipeline_mode<synchronous>, transform_indices = @transform_12, window_bounds = array<i64: 8, 128>}, {pipeline_mode = #tpu.pipeline_mode<synchronous>, transform_indices = @transform_13, window_bounds = array<i64: 2, 8, 128>}, {pipeline_mode = #tpu.pipeline_mode<synchronous>, transform_indices = @transform_14, window_bounds = array<i64: 8, 128>}]} {
    %c0 = arith.constant 0 : index
    %c0_0 = arith.constant 0 : index
    %0 = vector.load %arg9[%c0, %c0_0] : memref<3x128xf32, #tpu.memory_space<vmem>>, vector<1x128xf32>
    %c1 = arith.constant 1 : index
    %c0_1 = arith.constant 0 : index
    %1 = vector.load %arg9[%c1, %c0_1] : memref<3x128xf32, #tpu.memory_space<vmem>>, vector<1x128xf32>
    %c2 = arith.constant 2 : index
    %c0_2 = arith.constant 0 : index
    %2 = vector.load %arg9[%c2, %c0_2] : memref<3x128xf32, #tpu.memory_space<vmem>>, vector<1x128xf32>
    %3 = tpu.iota {dimensions = array<i32: 0>} : vector<8x1xi32>
    %c0_3 = arith.constant 0 : index
    %c0_4 = arith.constant 0 : index
    %c0_5 = arith.constant 0 : index
    %4 = vector.load %arg2[%c0_3, %c0_4, %c0_5] : memref<2x1x128xf32, #tpu.memory_space<vmem>>, vector<1x1x128xf32>
    %5 = vector.shape_cast %4 : vector<1x1x128xf32> to vector<1x128xf32>
    %c1_6 = arith.constant 1 : index
    %c0_7 = arith.constant 0 : index
    %c0_8 = arith.constant 0 : index
    %6 = vector.load %arg2[%c1_6, %c0_7, %c0_8] : memref<2x1x128xf32, #tpu.memory_space<vmem>>, vector<1x1x128xf32>
    %7 = vector.shape_cast %6 : vector<1x1x128xf32> to vector<1x128xf32>
    %cst = arith.constant 0.000000e+00 : f32
    %8 = vector.broadcast %cst : f32 to vector<8x256xf32>
    %cst_9 = arith.constant 0.000000e+00 : f32
    %9 = vector.broadcast %cst_9 : f32 to vector<8x1xf32>
    %cst_10 = arith.constant 0.000000e+00 : f32
    %10 = vector.broadcast %cst_10 : f32 to vector<8x128xf32>
    %cst_11 = arith.constant 0.000000e+00 : f32
    %11 = vector.broadcast %cst_11 : f32 to vector<8x128xf32>
    %cst_12 = arith.constant 0.000000e+00 : f32
    %12 = vector.broadcast %cst_12 : f32 to vector<8x128xf32>
    %c0_i32 = arith.constant 0 : i32
    %13 = vector.broadcast %c0_i32 : i32 to vector<8x1xi32>
    %14 = arith.cmpi eq, %3, %13 : vector<8x1xi32>
    %15 = arith.extui %14 : vector<8x1xi1> to vector<8x1xi32>
    %16 = arith.sitofp %15 : vector<8x1xi32> to vector<8x1xf32>
    %c0_13 = arith.constant 0 : index
    %c0_14 = arith.constant 0 : index
    %c0_15 = arith.constant 0 : index
    %17 = vector.load %arg1[%c0_13, %c0_14, %c0_15] : memref<4x1x128xf32, #tpu.memory_space<vmem>>, vector<1x1x128xf32>
    %18 = vector.shape_cast %17 : vector<1x1x128xf32> to vector<1x128xf32>
    %19 = tpu.concatenate %18, %5 in 1 : vector<1x128xf32>, vector<1x128xf32> -> vector<1x256xf32>
    %c0_16 = arith.constant 0 : index
    %c0_17 = arith.constant 0 : index
    %c0_18 = arith.constant 0 : index
    %20 = vector.load %arg6[%c0_16, %c0_17, %c0_18] : memref<2x256x384xf32, #tpu.memory_space<vmem>>, vector<1x256x384xf32>
    %21 = vector.shape_cast %20 : vector<1x256x384xf32> to vector<256x384xf32>
    %cst_19 = arith.constant dense<0.000000e+00> : vector<1x384xf32>
    %22 = tpu.matmul %19, %21, %cst_19 {dimension_numbers = #tpu.dot_dimension_numbers<[1], [0], [0], [1], [0, 0, 1, 1], [], []>} : vector<1x256xf32>, vector<256x384xf32>, vector<1x384xf32> -> vector<1x384xf32>
    %c0_20 = arith.constant 0 : index
    %c0_21 = arith.constant 0 : index
    %c0_22 = arith.constant 0 : index
    %23 = vector.load %arg7[%c0_20, %c0_21, %c0_22] : memref<2x128x128xf32, #tpu.memory_space<vmem>>, vector<1x128x128xf32>
    %24 = vector.shape_cast %23 : vector<1x128x128xf32> to vector<128x128xf32>
    %cst_23 = arith.constant dense<0.000000e+00> : vector<1x128xf32>
    %25 = tpu.matmul %5, %24, %cst_23 {dimension_numbers = #tpu.dot_dimension_numbers<[1], [0], [0], [1], [0, 0, 1, 1], [], []>} : vector<1x128xf32>, vector<128x128xf32>, vector<1x128xf32> -> vector<1x128xf32>
    %c0_24 = arith.constant 0 : index
    %c0_25 = arith.constant 0 : index
    %c0_26 = arith.constant 0 : index
    %26 = vector.load %arg8[%c0_24, %c0_25, %c0_26] : memref<2x1x512xf32, #tpu.memory_space<vmem>>, vector<1x1x512xf32>
    %27 = vector.shape_cast %26 : vector<1x1x512xf32> to vector<1x512xf32>
    %28 = vector.extract_strided_slice %22 {offsets = [0, 0], sizes = [1, 128], strides = [1, 1]} : vector<1x384xf32> to vector<1x128xf32>
    %29 = vector.extract_strided_slice %27 {offsets = [0, 0], sizes = [1, 128], strides = [1, 1]} : vector<1x512xf32> to vector<1x128xf32>
    %30 = arith.addf %28, %29 : vector<1x128xf32>
    %31 = arith.negf %30 : vector<1x128xf32>
    %32 = math.exp %31 : vector<1x128xf32>
    %cst_27 = arith.constant 1.000000e+00 : f32
    %33 = vector.broadcast %cst_27 : f32 to vector<1x128xf32>
    %34 = arith.addf %33, %32 : vector<1x128xf32>
    %35 = arith.divf %33, %34 : vector<1x128xf32>
    %36 = vector.extract_strided_slice %22 {offsets = [0, 128], sizes = [1, 128], strides = [1, 1]} : vector<1x384xf32> to vector<1x128xf32>
    %37 = vector.extract_strided_slice %27 {offsets = [0, 128], sizes = [1, 128], strides = [1, 1]} : vector<1x512xf32> to vector<1x128xf32>
    %38 = arith.addf %36, %37 : vector<1x128xf32>
    %39 = arith.negf %38 : vector<1x128xf32>
    %40 = math.exp %39 : vector<1x128xf32>
    %cst_28 = arith.constant 1.000000e+00 : f32
    %41 = vector.broadcast %cst_28 : f32 to vector<1x128xf32>
    %42 = arith.addf %41, %40 : vector<1x128xf32>
    %43 = arith.divf %41, %42 : vector<1x128xf32>
    %44 = vector.extract_strided_slice %22 {offsets = [0, 256], sizes = [1, 128], strides = [1, 1]} : vector<1x384xf32> to vector<1x128xf32>
    %45 = vector.extract_strided_slice %27 {offsets = [0, 256], sizes = [1, 128], strides = [1, 1]} : vector<1x512xf32> to vector<1x128xf32>
    %46 = arith.addf %44, %45 : vector<1x128xf32>
    %47 = vector.extract_strided_slice %27 {offsets = [0, 384], sizes = [1, 128], strides = [1, 1]} : vector<1x512xf32> to vector<1x128xf32>
    %48 = arith.addf %25, %47 : vector<1x128xf32>
    %49 = arith.mulf %35, %48 : vector<1x128xf32>
    %50 = arith.addf %46, %49 : vector<1x128xf32>
    %51 = math.tanh %50 : vector<1x128xf32>
    %cst_29 = arith.constant 1.000000e+00 : f32
    %52 = vector.broadcast %cst_29 : f32 to vector<1x128xf32>
    %53 = arith.subf %52, %43 : vector<1x128xf32>
    %54 = arith.mulf %53, %51 : vector<1x128xf32>
    %55 = arith.mulf %43, %5 : vector<1x128xf32>
    %56 = arith.addf %54, %55 : vector<1x128xf32>
    %57 = vector.broadcast %16 : vector<8x1xf32> to vector<8x128xf32>
    %58 = vector.broadcast %56 : vector<1x128xf32> to vector<8x128xf32>
    %59 = arith.mulf %57, %58 : vector<8x128xf32>
    %60 = arith.addf %11, %59 : vector<8x128xf32>
    %61 = tpu.concatenate %56, %7 in 1 : vector<1x128xf32>, vector<1x128xf32> -> vector<1x256xf32>
    %c1_30 = arith.constant 1 : index
    %c0_31 = arith.constant 0 : index
    %c0_32 = arith.constant 0 : index
    %62 = vector.load %arg6[%c1_30, %c0_31, %c0_32] : memref<2x256x384xf32, #tpu.memory_space<vmem>>, vector<1x256x384xf32>
    %63 = vector.shape_cast %62 : vector<1x256x384xf32> to vector<256x384xf32>
    %cst_33 = arith.constant dense<0.000000e+00> : vector<1x384xf32>
    %64 = tpu.matmul %61, %63, %cst_33 {dimension_numbers = #tpu.dot_dimension_numbers<[1], [0], [0], [1], [0, 0, 1, 1], [], []>} : vector<1x256xf32>, vector<256x384xf32>, vector<1x384xf32> -> vector<1x384xf32>
    %c1_34 = arith.constant 1 : index
    %c0_35 = arith.constant 0 : index
    %c0_36 = arith.constant 0 : index
    %65 = vector.load %arg7[%c1_34, %c0_35, %c0_36] : memref<2x128x128xf32, #tpu.memory_space<vmem>>, vector<1x128x128xf32>
    %66 = vector.shape_cast %65 : vector<1x128x128xf32> to vector<128x128xf32>
    %cst_37 = arith.constant dense<0.000000e+00> : vector<1x128xf32>
    %67 = tpu.matmul %7, %66, %cst_37 {dimension_numbers = #tpu.dot_dimension_numbers<[1], [0], [0], [1], [0, 0, 1, 1], [], []>} : vector<1x128xf32>, vector<128x128xf32>, vector<1x128xf32> -> vector<1x128xf32>
    %c1_38 = arith.constant 1 : index
    %c0_39 = arith.constant 0 : index
    %c0_40 = arith.constant 0 : index
    %68 = vector.load %arg8[%c1_38, %c0_39, %c0_40] : memref<2x1x512xf32, #tpu.memory_space<vmem>>, vector<1x1x512xf32>
    %69 = vector.shape_cast %68 : vector<1x1x512xf32> to vector<1x512xf32>
    %70 = vector.extract_strided_slice %64 {offsets = [0, 0], sizes = [1, 128], strides = [1, 1]} : vector<1x384xf32> to vector<1x128xf32>
    %71 = vector.extract_strided_slice %69 {offsets = [0, 0], sizes = [1, 128], strides = [1, 1]} : vector<1x512xf32> to vector<1x128xf32>
    %72 = arith.addf %70, %71 : vector<1x128xf32>
    %73 = arith.negf %72 : vector<1x128xf32>
    %74 = math.exp %73 : vector<1x128xf32>
    %cst_41 = arith.constant 1.000000e+00 : f32
    %75 = vector.broadcast %cst_41 : f32 to vector<1x128xf32>
    %76 = arith.addf %75, %74 : vector<1x128xf32>
    %77 = arith.divf %75, %76 : vector<1x128xf32>
    %78 = vector.extract_strided_slice %64 {offsets = [0, 128], sizes = [1, 128], strides = [1, 1]} : vector<1x384xf32> to vector<1x128xf32>
    %79 = vector.extract_strided_slice %69 {offsets = [0, 128], sizes = [1, 128], strides = [1, 1]} : vector<1x512xf32> to vector<1x128xf32>
    %80 = arith.addf %78, %79 : vector<1x128xf32>
    %81 = arith.negf %80 : vector<1x128xf32>
    %82 = math.exp %81 : vector<1x128xf32>
    %cst_42 = arith.constant 1.000000e+00 : f32
    %83 = vector.broadcast %cst_42 : f32 to vector<1x128xf32>
    %84 = arith.addf %83, %82 : vector<1x128xf32>
    %85 = arith.divf %83, %84 : vector<1x128xf32>
    %86 = vector.extract_strided_slice %64 {offsets = [0, 256], sizes = [1, 128], strides = [1, 1]} : vector<1x384xf32> to vector<1x128xf32>
    %87 = vector.extract_strided_slice %69 {offsets = [0, 256], sizes = [1, 128], strides = [1, 1]} : vector<1x512xf32> to vector<1x128xf32>
    %88 = arith.addf %86, %87 : vector<1x128xf32>
    %89 = vector.extract_strided_slice %69 {offsets = [0, 384], sizes = [1, 128], strides = [1, 1]} : vector<1x512xf32> to vector<1x128xf32>
    %90 = arith.addf %67, %89 : vector<1x128xf32>
    %91 = arith.mulf %77, %90 : vector<1x128xf32>
    %92 = arith.addf %88, %91 : vector<1x128xf32>
    %93 = math.tanh %92 : vector<1x128xf32>
    %cst_43 = arith.constant 1.000000e+00 : f32
    %94 = vector.broadcast %cst_43 : f32 to vector<1x128xf32>
    %95 = arith.subf %94, %85 : vector<1x128xf32>
    %96 = arith.mulf %95, %93 : vector<1x128xf32>
    %97 = arith.mulf %85, %7 : vector<1x128xf32>
    %98 = arith.addf %96, %97 : vector<1x128xf32>
    %99 = vector.broadcast %16 : vector<8x1xf32> to vector<8x128xf32>
    %100 = vector.broadcast %98 : vector<1x128xf32> to vector<8x128xf32>
    %101 = arith.mulf %99, %100 : vector<8x128xf32>
    %102 = arith.addf %12, %101 : vector<8x128xf32>
    %c0_44 = arith.constant 0 : index
    %c0_45 = arith.constant 0 : index
    %103 = vector.load %arg4[%c0_44, %c0_45] : memref<128x128xf32, #tpu.memory_space<vmem>>, vector<128x128xf32>
    %cst_46 = arith.constant dense<0.000000e+00> : vector<1x128xf32>
    %104 = tpu.matmul %98, %103, %cst_46 {dimension_numbers = #tpu.dot_dimension_numbers<[1], [0], [0], [1], [0, 0, 1, 1], [], []>} : vector<1x128xf32>, vector<128x128xf32>, vector<1x128xf32> -> vector<1x128xf32>
    %c0_47 = arith.constant 0 : index
    %c0_48 = arith.constant 0 : index
    %105 = vector.load %arg5[%c0_47, %c0_48] : memref<1x128xf32, #tpu.memory_space<vmem>>, vector<1x128xf32>
    %106 = arith.addf %104, %105 : vector<1x128xf32>
    %cst_49 = arith.constant dense<0xFF800000> : vector<1xf32>
    %107 = vector.multi_reduction <maximumf>, %106, %cst_49 [1] : vector<1x128xf32> to vector<1xf32>
    %108 = vector.shape_cast %107 : vector<1xf32> to vector<1x1xf32>
    %109 = vector.broadcast %108 : vector<1x1xf32> to vector<1x128xf32>
    %110 = arith.subf %106, %109 : vector<1x128xf32>
    %111 = math.exp %110 : vector<1x128xf32>
    %cst_50 = arith.constant dense<0.000000e+00> : vector<1xf32>
    %112 = vector.multi_reduction <add>, %111, %cst_50 [1] : vector<1x128xf32> to vector<1xf32>
    %113 = vector.shape_cast %112 : vector<1xf32> to vector<1x1xf32>
    %114 = tpu.reciprocal %113 {approx = true} : vector<1x1xf32> -> vector<1x1xf32>
    %115 = vector.broadcast %114 : vector<1x1xf32> to vector<1x128xf32>
    %116 = arith.mulf %111, %115 : vector<1x128xf32>
    %c0_51 = arith.constant 0 : index
    %c0_52 = arith.constant 0 : index
    %117 = vector.load %arg3[%c0_51, %c0_52] : memref<128x128xf32, #tpu.memory_space<vmem>>, vector<128x128xf32>
    %cst_53 = arith.constant dense<0.000000e+00> : vector<1x128xf32>
    %118 = tpu.matmul %116, %117, %cst_53 {dimension_numbers = #tpu.dot_dimension_numbers<[1], [0], [0], [1], [0, 0, 1, 1], [], []>} : vector<1x128xf32>, vector<128x128xf32>, vector<1x128xf32> -> vector<1x128xf32>
    %119 = vector.broadcast %16 : vector<8x1xf32> to vector<8x128xf32>
    %120 = vector.broadcast %116 : vector<1x128xf32> to vector<8x128xf32>
    %121 = arith.mulf %119, %120 : vector<8x128xf32>
    %122 = arith.addf %10, %121 : vector<8x128xf32>
    %123 = arith.mulf %18, %0 : vector<1x128xf32>
    %124 = arith.mulf %98, %1 : vector<1x128xf32>
    %125 = arith.addf %123, %124 : vector<1x128xf32>
    %126 = arith.mulf %118, %2 : vector<1x128xf32>
    %127 = arith.addf %125, %126 : vector<1x128xf32>
    %cst_54 = arith.constant dense<0.000000e+00> : vector<1xf32>
    %128 = vector.multi_reduction <add>, %127, %cst_54 [1] : vector<1x128xf32> to vector<1xf32>
    %129 = vector.shape_cast %128 : vector<1xf32> to vector<1x1xf32>
    %130 = arith.negf %129 : vector<1x1xf32>
    %131 = math.exp %130 : vector<1x1xf32>
    %cst_55 = arith.constant 1.000000e+00 : f32
    %132 = vector.broadcast %cst_55 : f32 to vector<1x1xf32>
    %133 = arith.addf %132, %131 : vector<1x1xf32>
    %134 = arith.divf %132, %133 : vector<1x1xf32>
    %135 = vector.broadcast %134 : vector<1x1xf32> to vector<8x1xf32>
    %136 = arith.mulf %16, %135 : vector<8x1xf32>
    %137 = arith.addf %9, %136 : vector<8x1xf32>
    %138 = tpu.concatenate %118, %98 in 1 : vector<1x128xf32>, vector<1x128xf32> -> vector<1x256xf32>
    %139 = vector.broadcast %16 : vector<8x1xf32> to vector<8x256xf32>
    %140 = vector.broadcast %138 : vector<1x256xf32> to vector<8x256xf32>
    %141 = arith.mulf %139, %140 : vector<8x256xf32>
    %142 = arith.addf %8, %141 : vector<8x256xf32>
    %c1_i32 = arith.constant 1 : i32
    %143 = vector.broadcast %c1_i32 : i32 to vector<8x1xi32>
    %144 = arith.cmpi eq, %3, %143 : vector<8x1xi32>
    %145 = arith.extui %144 : vector<8x1xi1> to vector<8x1xi32>
    %146 = arith.sitofp %145 : vector<8x1xi32> to vector<8x1xf32>
    %c1_56 = arith.constant 1 : index
    %c0_57 = arith.constant 0 : index
    %c0_58 = arith.constant 0 : index
    %147 = vector.load %arg1[%c1_56, %c0_57, %c0_58] : memref<4x1x128xf32, #tpu.memory_space<vmem>>, vector<1x1x128xf32>
    %148 = vector.shape_cast %147 : vector<1x1x128xf32> to vector<1x128xf32>
    %149 = tpu.concatenate %148, %56 in 1 : vector<1x128xf32>, vector<1x128xf32> -> vector<1x256xf32>
    %c0_59 = arith.constant 0 : index
    %c0_60 = arith.constant 0 : index
    %c0_61 = arith.constant 0 : index
    %150 = vector.load %arg6[%c0_59, %c0_60, %c0_61] : memref<2x256x384xf32, #tpu.memory_space<vmem>>, vector<1x256x384xf32>
    %151 = vector.shape_cast %150 : vector<1x256x384xf32> to vector<256x384xf32>
    %cst_62 = arith.constant dense<0.000000e+00> : vector<1x384xf32>
    %152 = tpu.matmul %149, %151, %cst_62 {dimension_numbers = #tpu.dot_dimension_numbers<[1], [0], [0], [1], [0, 0, 1, 1], [], []>} : vector<1x256xf32>, vector<256x384xf32>, vector<1x384xf32> -> vector<1x384xf32>
    %c0_63 = arith.constant 0 : index
    %c0_64 = arith.constant 0 : index
    %c0_65 = arith.constant 0 : index
    %153 = vector.load %arg7[%c0_63, %c0_64, %c0_65] : memref<2x128x128xf32, #tpu.memory_space<vmem>>, vector<1x128x128xf32>
    %154 = vector.shape_cast %153 : vector<1x128x128xf32> to vector<128x128xf32>
    %cst_66 = arith.constant dense<0.000000e+00> : vector<1x128xf32>
    %155 = tpu.matmul %56, %154, %cst_66 {dimension_numbers = #tpu.dot_dimension_numbers<[1], [0], [0], [1], [0, 0, 1, 1], [], []>} : vector<1x128xf32>, vector<128x128xf32>, vector<1x128xf32> -> vector<1x128xf32>
    %c0_67 = arith.constant 0 : index
    %c0_68 = arith.constant 0 : index
    %c0_69 = arith.constant 0 : index
    %156 = vector.load %arg8[%c0_67, %c0_68, %c0_69] : memref<2x1x512xf32, #tpu.memory_space<vmem>>, vector<1x1x512xf32>
    %157 = vector.shape_cast %156 : vector<1x1x512xf32> to vector<1x512xf32>
    %158 = vector.extract_strided_slice %152 {offsets = [0, 0], sizes = [1, 128], strides = [1, 1]} : vector<1x384xf32> to vector<1x128xf32>
    %159 = vector.extract_strided_slice %157 {offsets = [0, 0], sizes = [1, 128], strides = [1, 1]} : vector<1x512xf32> to vector<1x128xf32>
    %160 = arith.addf %158, %159 : vector<1x128xf32>
    %161 = arith.negf %160 : vector<1x128xf32>
    %162 = math.exp %161 : vector<1x128xf32>
    %cst_70 = arith.constant 1.000000e+00 : f32
    %163 = vector.broadcast %cst_70 : f32 to vector<1x128xf32>
    %164 = arith.addf %163, %162 : vector<1x128xf32>
    %165 = arith.divf %163, %164 : vector<1x128xf32>
    %166 = vector.extract_strided_slice %152 {offsets = [0, 128], sizes = [1, 128], strides = [1, 1]} : vector<1x384xf32> to vector<1x128xf32>
    %167 = vector.extract_strided_slice %157 {offsets = [0, 128], sizes = [1, 128], strides = [1, 1]} : vector<1x512xf32> to vector<1x128xf32>
    %168 = arith.addf %166, %167 : vector<1x128xf32>
    %169 = arith.negf %168 : vector<1x128xf32>
    %170 = math.exp %169 : vector<1x128xf32>
    %cst_71 = arith.constant 1.000000e+00 : f32
    %171 = vector.broadcast %cst_71 : f32 to vector<1x128xf32>
    %172 = arith.addf %171, %170 : vector<1x128xf32>
    %173 = arith.divf %171, %172 : vector<1x128xf32>
    %174 = vector.extract_strided_slice %152 {offsets = [0, 256], sizes = [1, 128], strides = [1, 1]} : vector<1x384xf32> to vector<1x128xf32>
    %175 = vector.extract_strided_slice %157 {offsets = [0, 256], sizes = [1, 128], strides = [1, 1]} : vector<1x512xf32> to vector<1x128xf32>
    %176 = arith.addf %174, %175 : vector<1x128xf32>
    %177 = vector.extract_strided_slice %157 {offsets = [0, 384], sizes = [1, 128], strides = [1, 1]} : vector<1x512xf32> to vector<1x128xf32>
    %178 = arith.addf %155, %177 : vector<1x128xf32>
    %179 = arith.mulf %165, %178 : vector<1x128xf32>
    %180 = arith.addf %176, %179 : vector<1x128xf32>
    %181 = math.tanh %180 : vector<1x128xf32>
    %cst_72 = arith.constant 1.000000e+00 : f32
    %182 = vector.broadcast %cst_72 : f32 to vector<1x128xf32>
    %183 = arith.subf %182, %173 : vector<1x128xf32>
    %184 = arith.mulf %183, %181 : vector<1x128xf32>
    %185 = arith.mulf %173, %56 : vector<1x128xf32>
    %186 = arith.addf %184, %185 : vector<1x128xf32>
    %187 = vector.broadcast %146 : vector<8x1xf32> to vector<8x128xf32>
    %188 = vector.broadcast %186 : vector<1x128xf32> to vector<8x128xf32>
    %189 = arith.mulf %187, %188 : vector<8x128xf32>
    %190 = arith.addf %60, %189 : vector<8x128xf32>
    %191 = tpu.concatenate %186, %98 in 1 : vector<1x128xf32>, vector<1x128xf32> -> vector<1x256xf32>
    %c1_73 = arith.constant 1 : index
    %c0_74 = arith.constant 0 : index
    %c0_75 = arith.constant 0 : index
    %192 = vector.load %arg6[%c1_73, %c0_74, %c0_75] : memref<2x256x384xf32, #tpu.memory_space<vmem>>, vector<1x256x384xf32>
    %193 = vector.shape_cast %192 : vector<1x256x384xf32> to vector<256x384xf32>
    %cst_76 = arith.constant dense<0.000000e+00> : vector<1x384xf32>
    %194 = tpu.matmul %191, %193, %cst_76 {dimension_numbers = #tpu.dot_dimension_numbers<[1], [0], [0], [1], [0, 0, 1, 1], [], []>} : vector<1x256xf32>, vector<256x384xf32>, vector<1x384xf32> -> vector<1x384xf32>
    %c1_77 = arith.constant 1 : index
    %c0_78 = arith.constant 0 : index
    %c0_79 = arith.constant 0 : index
    %195 = vector.load %arg7[%c1_77, %c0_78, %c0_79] : memref<2x128x128xf32, #tpu.memory_space<vmem>>, vector<1x128x128xf32>
    %196 = vector.shape_cast %195 : vector<1x128x128xf32> to vector<128x128xf32>
    %cst_80 = arith.constant dense<0.000000e+00> : vector<1x128xf32>
    %197 = tpu.matmul %98, %196, %cst_80 {dimension_numbers = #tpu.dot_dimension_numbers<[1], [0], [0], [1], [0, 0, 1, 1], [], []>} : vector<1x128xf32>, vector<128x128xf32>, vector<1x128xf32> -> vector<1x128xf32>
    %c1_81 = arith.constant 1 : index
    %c0_82 = arith.constant 0 : index
    %c0_83 = arith.constant 0 : index
    %198 = vector.load %arg8[%c1_81, %c0_82, %c0_83] : memref<2x1x512xf32, #tpu.memory_space<vmem>>, vector<1x1x512xf32>
    %199 = vector.shape_cast %198 : vector<1x1x512xf32> to vector<1x512xf32>
    %200 = vector.extract_strided_slice %194 {offsets = [0, 0], sizes = [1, 128], strides = [1, 1]} : vector<1x384xf32> to vector<1x128xf32>
    %201 = vector.extract_strided_slice %199 {offsets = [0, 0], sizes = [1, 128], strides = [1, 1]} : vector<1x512xf32> to vector<1x128xf32>
    %202 = arith.addf %200, %201 : vector<1x128xf32>
    %203 = arith.negf %202 : vector<1x128xf32>
    %204 = math.exp %203 : vector<1x128xf32>
    %cst_84 = arith.constant 1.000000e+00 : f32
    %205 = vector.broadcast %cst_84 : f32 to vector<1x128xf32>
    %206 = arith.addf %205, %204 : vector<1x128xf32>
    %207 = arith.divf %205, %206 : vector<1x128xf32>
    %208 = vector.extract_strided_slice %194 {offsets = [0, 128], sizes = [1, 128], strides = [1, 1]} : vector<1x384xf32> to vector<1x128xf32>
    %209 = vector.extract_strided_slice %199 {offsets = [0, 128], sizes = [1, 128], strides = [1, 1]} : vector<1x512xf32> to vector<1x128xf32>
    %210 = arith.addf %208, %209 : vector<1x128xf32>
    %211 = arith.negf %210 : vector<1x128xf32>
    %212 = math.exp %211 : vector<1x128xf32>
    %cst_85 = arith.constant 1.000000e+00 : f32
    %213 = vector.broadcast %cst_85 : f32 to vector<1x128xf32>
    %214 = arith.addf %213, %212 : vector<1x128xf32>
    %215 = arith.divf %213, %214 : vector<1x128xf32>
    %216 = vector.extract_strided_slice %194 {offsets = [0, 256], sizes = [1, 128], strides = [1, 1]} : vector<1x384xf32> to vector<1x128xf32>
    %217 = vector.extract_strided_slice %199 {offsets = [0, 256], sizes = [1, 128], strides = [1, 1]} : vector<1x512xf32> to vector<1x128xf32>
    %218 = arith.addf %216, %217 : vector<1x128xf32>
    %219 = vector.extract_strided_slice %199 {offsets = [0, 384], sizes = [1, 128], strides = [1, 1]} : vector<1x512xf32> to vector<1x128xf32>
    %220 = arith.addf %197, %219 : vector<1x128xf32>
    %221 = arith.mulf %207, %220 : vector<1x128xf32>
    %222 = arith.addf %218, %221 : vector<1x128xf32>
    %223 = math.tanh %222 : vector<1x128xf32>
    %cst_86 = arith.constant 1.000000e+00 : f32
    %224 = vector.broadcast %cst_86 : f32 to vector<1x128xf32>
    %225 = arith.subf %224, %215 : vector<1x128xf32>
    %226 = arith.mulf %225, %223 : vector<1x128xf32>
    %227 = arith.mulf %215, %98 : vector<1x128xf32>
    %228 = arith.addf %226, %227 : vector<1x128xf32>
    %229 = vector.broadcast %146 : vector<8x1xf32> to vector<8x128xf32>
    %230 = vector.broadcast %228 : vector<1x128xf32> to vector<8x128xf32>
    %231 = arith.mulf %229, %230 : vector<8x128xf32>
    %232 = arith.addf %102, %231 : vector<8x128xf32>
    %c0_87 = arith.constant 0 : index
    %c0_88 = arith.constant 0 : index
    %233 = vector.load %arg4[%c0_87, %c0_88] : memref<128x128xf32, #tpu.memory_space<vmem>>, vector<128x128xf32>
    %cst_89 = arith.constant dense<0.000000e+00> : vector<1x128xf32>
    %234 = tpu.matmul %228, %233, %cst_89 {dimension_numbers = #tpu.dot_dimension_numbers<[1], [0], [0], [1], [0, 0, 1, 1], [], []>} : vector<1x128xf32>, vector<128x128xf32>, vector<1x128xf32> -> vector<1x128xf32>
    %c0_90 = arith.constant 0 : index
    %c0_91 = arith.constant 0 : index
    %235 = vector.load %arg5[%c0_90, %c0_91] : memref<1x128xf32, #tpu.memory_space<vmem>>, vector<1x128xf32>
    %236 = arith.addf %234, %235 : vector<1x128xf32>
    %cst_92 = arith.constant dense<0xFF800000> : vector<1xf32>
    %237 = vector.multi_reduction <maximumf>, %236, %cst_92 [1] : vector<1x128xf32> to vector<1xf32>
    %238 = vector.shape_cast %237 : vector<1xf32> to vector<1x1xf32>
    %239 = vector.broadcast %238 : vector<1x1xf32> to vector<1x128xf32>
    %240 = arith.subf %236, %239 : vector<1x128xf32>
    %241 = math.exp %240 : vector<1x128xf32>
    %cst_93 = arith.constant dense<0.000000e+00> : vector<1xf32>
    %242 = vector.multi_reduction <add>, %241, %cst_93 [1] : vector<1x128xf32> to vector<1xf32>
    %243 = vector.shape_cast %242 : vector<1xf32> to vector<1x1xf32>
    %244 = tpu.reciprocal %243 {approx = true} : vector<1x1xf32> -> vector<1x1xf32>
    %245 = vector.broadcast %244 : vector<1x1xf32> to vector<1x128xf32>
    %246 = arith.mulf %241, %245 : vector<1x128xf32>
    %c0_94 = arith.constant 0 : index
    %c0_95 = arith.constant 0 : index
    %247 = vector.load %arg3[%c0_94, %c0_95] : memref<128x128xf32, #tpu.memory_space<vmem>>, vector<128x128xf32>
    %cst_96 = arith.constant dense<0.000000e+00> : vector<1x128xf32>
    %248 = tpu.matmul %246, %247, %cst_96 {dimension_numbers = #tpu.dot_dimension_numbers<[1], [0], [0], [1], [0, 0, 1, 1], [], []>} : vector<1x128xf32>, vector<128x128xf32>, vector<1x128xf32> -> vector<1x128xf32>
    %249 = vector.broadcast %146 : vector<8x1xf32> to vector<8x128xf32>
    %250 = vector.broadcast %246 : vector<1x128xf32> to vector<8x128xf32>
    %251 = arith.mulf %249, %250 : vector<8x128xf32>
    %252 = arith.addf %122, %251 : vector<8x128xf32>
    %253 = arith.mulf %148, %0 : vector<1x128xf32>
    %254 = arith.mulf %228, %1 : vector<1x128xf32>
    %255 = arith.addf %253, %254 : vector<1x128xf32>
    %256 = arith.mulf %248, %2 : vector<1x128xf32>
    %257 = arith.addf %255, %256 : vector<1x128xf32>
    %cst_97 = arith.constant dense<0.000000e+00> : vector<1xf32>
    %258 = vector.multi_reduction <add>, %257, %cst_97 [1] : vector<1x128xf32> to vector<1xf32>
    %259 = vector.shape_cast %258 : vector<1xf32> to vector<1x1xf32>
    %260 = arith.negf %259 : vector<1x1xf32>
    %261 = math.exp %260 : vector<1x1xf32>
    %cst_98 = arith.constant 1.000000e+00 : f32
    %262 = vector.broadcast %cst_98 : f32 to vector<1x1xf32>
    %263 = arith.addf %262, %261 : vector<1x1xf32>
    %264 = arith.divf %262, %263 : vector<1x1xf32>
    %265 = vector.broadcast %264 : vector<1x1xf32> to vector<8x1xf32>
    %266 = arith.mulf %146, %265 : vector<8x1xf32>
    %267 = arith.addf %137, %266 : vector<8x1xf32>
    %268 = tpu.concatenate %248, %228 in 1 : vector<1x128xf32>, vector<1x128xf32> -> vector<1x256xf32>
    %269 = vector.broadcast %146 : vector<8x1xf32> to vector<8x256xf32>
    %270 = vector.broadcast %268 : vector<1x256xf32> to vector<8x256xf32>
    %271 = arith.mulf %269, %270 : vector<8x256xf32>
    %272 = arith.addf %142, %271 : vector<8x256xf32>
    %c2_i32 = arith.constant 2 : i32
    %273 = vector.broadcast %c2_i32 : i32 to vector<8x1xi32>
    %274 = arith.cmpi eq, %3, %273 : vector<8x1xi32>
    %275 = arith.extui %274 : vector<8x1xi1> to vector<8x1xi32>
    %276 = arith.sitofp %275 : vector<8x1xi32> to vector<8x1xf32>
    %c2_99 = arith.constant 2 : index
    %c0_100 = arith.constant 0 : index
    %c0_101 = arith.constant 0 : index
    %277 = vector.load %arg1[%c2_99, %c0_100, %c0_101] : memref<4x1x128xf32, #tpu.memory_space<vmem>>, vector<1x1x128xf32>
    %278 = vector.shape_cast %277 : vector<1x1x128xf32> to vector<1x128xf32>
    %279 = tpu.concatenate %278, %186 in 1 : vector<1x128xf32>, vector<1x128xf32> -> vector<1x256xf32>
    %c0_102 = arith.constant 0 : index
    %c0_103 = arith.constant 0 : index
    %c0_104 = arith.constant 0 : index
    %280 = vector.load %arg6[%c0_102, %c0_103, %c0_104] : memref<2x256x384xf32, #tpu.memory_space<vmem>>, vector<1x256x384xf32>
    %281 = vector.shape_cast %280 : vector<1x256x384xf32> to vector<256x384xf32>
    %cst_105 = arith.constant dense<0.000000e+00> : vector<1x384xf32>
    %282 = tpu.matmul %279, %281, %cst_105 {dimension_numbers = #tpu.dot_dimension_numbers<[1], [0], [0], [1], [0, 0, 1, 1], [], []>} : vector<1x256xf32>, vector<256x384xf32>, vector<1x384xf32> -> vector<1x384xf32>
    %c0_106 = arith.constant 0 : index
    %c0_107 = arith.constant 0 : index
    %c0_108 = arith.constant 0 : index
    %283 = vector.load %arg7[%c0_106, %c0_107, %c0_108] : memref<2x128x128xf32, #tpu.memory_space<vmem>>, vector<1x128x128xf32>
    %284 = vector.shape_cast %283 : vector<1x128x128xf32> to vector<128x128xf32>
    %cst_109 = arith.constant dense<0.000000e+00> : vector<1x128xf32>
    %285 = tpu.matmul %186, %284, %cst_109 {dimension_numbers = #tpu.dot_dimension_numbers<[1], [0], [0], [1], [0, 0, 1, 1], [], []>} : vector<1x128xf32>, vector<128x128xf32>, vector<1x128xf32> -> vector<1x128xf32>
    %c0_110 = arith.constant 0 : index
    %c0_111 = arith.constant 0 : index
    %c0_112 = arith.constant 0 : index
    %286 = vector.load %arg8[%c0_110, %c0_111, %c0_112] : memref<2x1x512xf32, #tpu.memory_space<vmem>>, vector<1x1x512xf32>
    %287 = vector.shape_cast %286 : vector<1x1x512xf32> to vector<1x512xf32>
    %288 = vector.extract_strided_slice %282 {offsets = [0, 0], sizes = [1, 128], strides = [1, 1]} : vector<1x384xf32> to vector<1x128xf32>
    %289 = vector.extract_strided_slice %287 {offsets = [0, 0], sizes = [1, 128], strides = [1, 1]} : vector<1x512xf32> to vector<1x128xf32>
    %290 = arith.addf %288, %289 : vector<1x128xf32>
    %291 = arith.negf %290 : vector<1x128xf32>
    %292 = math.exp %291 : vector<1x128xf32>
    %cst_113 = arith.constant 1.000000e+00 : f32
    %293 = vector.broadcast %cst_113 : f32 to vector<1x128xf32>
    %294 = arith.addf %293, %292 : vector<1x128xf32>
    %295 = arith.divf %293, %294 : vector<1x128xf32>
    %296 = vector.extract_strided_slice %282 {offsets = [0, 128], sizes = [1, 128], strides = [1, 1]} : vector<1x384xf32> to vector<1x128xf32>
    %297 = vector.extract_strided_slice %287 {offsets = [0, 128], sizes = [1, 128], strides = [1, 1]} : vector<1x512xf32> to vector<1x128xf32>
    %298 = arith.addf %296, %297 : vector<1x128xf32>
    %299 = arith.negf %298 : vector<1x128xf32>
    %300 = math.exp %299 : vector<1x128xf32>
    %cst_114 = arith.constant 1.000000e+00 : f32
    %301 = vector.broadcast %cst_114 : f32 to vector<1x128xf32>
    %302 = arith.addf %301, %300 : vector<1x128xf32>
    %303 = arith.divf %301, %302 : vector<1x128xf32>
    %304 = vector.extract_strided_slice %282 {offsets = [0, 256], sizes = [1, 128], strides = [1, 1]} : vector<1x384xf32> to vector<1x128xf32>
    %305 = vector.extract_strided_slice %287 {offsets = [0, 256], sizes = [1, 128], strides = [1, 1]} : vector<1x512xf32> to vector<1x128xf32>
    %306 = arith.addf %304, %305 : vector<1x128xf32>
    %307 = vector.extract_strided_slice %287 {offsets = [0, 384], sizes = [1, 128], strides = [1, 1]} : vector<1x512xf32> to vector<1x128xf32>
    %308 = arith.addf %285, %307 : vector<1x128xf32>
    %309 = arith.mulf %295, %308 : vector<1x128xf32>
    %310 = arith.addf %306, %309 : vector<1x128xf32>
    %311 = math.tanh %310 : vector<1x128xf32>
    %cst_115 = arith.constant 1.000000e+00 : f32
    %312 = vector.broadcast %cst_115 : f32 to vector<1x128xf32>
    %313 = arith.subf %312, %303 : vector<1x128xf32>
    %314 = arith.mulf %313, %311 : vector<1x128xf32>
    %315 = arith.mulf %303, %186 : vector<1x128xf32>
    %316 = arith.addf %314, %315 : vector<1x128xf32>
    %317 = vector.broadcast %276 : vector<8x1xf32> to vector<8x128xf32>
    %318 = vector.broadcast %316 : vector<1x128xf32> to vector<8x128xf32>
    %319 = arith.mulf %317, %318 : vector<8x128xf32>
    %320 = arith.addf %190, %319 : vector<8x128xf32>
    %321 = tpu.concatenate %316, %228 in 1 : vector<1x128xf32>, vector<1x128xf32> -> vector<1x256xf32>
    %c1_116 = arith.constant 1 : index
    %c0_117 = arith.constant 0 : index
    %c0_118 = arith.constant 0 : index
    %322 = vector.load %arg6[%c1_116, %c0_117, %c0_118] : memref<2x256x384xf32, #tpu.memory_space<vmem>>, vector<1x256x384xf32>
    %323 = vector.shape_cast %322 : vector<1x256x384xf32> to vector<256x384xf32>
    %cst_119 = arith.constant dense<0.000000e+00> : vector<1x384xf32>
    %324 = tpu.matmul %321, %323, %cst_119 {dimension_numbers = #tpu.dot_dimension_numbers<[1], [0], [0], [1], [0, 0, 1, 1], [], []>} : vector<1x256xf32>, vector<256x384xf32>, vector<1x384xf32> -> vector<1x384xf32>
    %c1_120 = arith.constant 1 : index
    %c0_121 = arith.constant 0 : index
    %c0_122 = arith.constant 0 : index
    %325 = vector.load %arg7[%c1_120, %c0_121, %c0_122] : memref<2x128x128xf32, #tpu.memory_space<vmem>>, vector<1x128x128xf32>
    %326 = vector.shape_cast %325 : vector<1x128x128xf32> to vector<128x128xf32>
    %cst_123 = arith.constant dense<0.000000e+00> : vector<1x128xf32>
    %327 = tpu.matmul %228, %326, %cst_123 {dimension_numbers = #tpu.dot_dimension_numbers<[1], [0], [0], [1], [0, 0, 1, 1], [], []>} : vector<1x128xf32>, vector<128x128xf32>, vector<1x128xf32> -> vector<1x128xf32>
    %c1_124 = arith.constant 1 : index
    %c0_125 = arith.constant 0 : index
    %c0_126 = arith.constant 0 : index
    %328 = vector.load %arg8[%c1_124, %c0_125, %c0_126] : memref<2x1x512xf32, #tpu.memory_space<vmem>>, vector<1x1x512xf32>
    %329 = vector.shape_cast %328 : vector<1x1x512xf32> to vector<1x512xf32>
    %330 = vector.extract_strided_slice %324 {offsets = [0, 0], sizes = [1, 128], strides = [1, 1]} : vector<1x384xf32> to vector<1x128xf32>
    %331 = vector.extract_strided_slice %329 {offsets = [0, 0], sizes = [1, 128], strides = [1, 1]} : vector<1x512xf32> to vector<1x128xf32>
    %332 = arith.addf %330, %331 : vector<1x128xf32>
    %333 = arith.negf %332 : vector<1x128xf32>
    %334 = math.exp %333 : vector<1x128xf32>
    %cst_127 = arith.constant 1.000000e+00 : f32
    %335 = vector.broadcast %cst_127 : f32 to vector<1x128xf32>
    %336 = arith.addf %335, %334 : vector<1x128xf32>
    %337 = arith.divf %335, %336 : vector<1x128xf32>
    %338 = vector.extract_strided_slice %324 {offsets = [0, 128], sizes = [1, 128], strides = [1, 1]} : vector<1x384xf32> to vector<1x128xf32>
    %339 = vector.extract_strided_slice %329 {offsets = [0, 128], sizes = [1, 128], strides = [1, 1]} : vector<1x512xf32> to vector<1x128xf32>
    %340 = arith.addf %338, %339 : vector<1x128xf32>
    %341 = arith.negf %340 : vector<1x128xf32>
    %342 = math.exp %341 : vector<1x128xf32>
    %cst_128 = arith.constant 1.000000e+00 : f32
    %343 = vector.broadcast %cst_128 : f32 to vector<1x128xf32>
    %344 = arith.addf %343, %342 : vector<1x128xf32>
    %345 = arith.divf %343, %344 : vector<1x128xf32>
    %346 = vector.extract_strided_slice %324 {offsets = [0, 256], sizes = [1, 128], strides = [1, 1]} : vector<1x384xf32> to vector<1x128xf32>
    %347 = vector.extract_strided_slice %329 {offsets = [0, 256], sizes = [1, 128], strides = [1, 1]} : vector<1x512xf32> to vector<1x128xf32>
    %348 = arith.addf %346, %347 : vector<1x128xf32>
    %349 = vector.extract_strided_slice %329 {offsets = [0, 384], sizes = [1, 128], strides = [1, 1]} : vector<1x512xf32> to vector<1x128xf32>
    %350 = arith.addf %327, %349 : vector<1x128xf32>
    %351 = arith.mulf %337, %350 : vector<1x128xf32>
    %352 = arith.addf %348, %351 : vector<1x128xf32>
    %353 = math.tanh %352 : vector<1x128xf32>
    %cst_129 = arith.constant 1.000000e+00 : f32
    %354 = vector.broadcast %cst_129 : f32 to vector<1x128xf32>
    %355 = arith.subf %354, %345 : vector<1x128xf32>
    %356 = arith.mulf %355, %353 : vector<1x128xf32>
    %357 = arith.mulf %345, %228 : vector<1x128xf32>
    %358 = arith.addf %356, %357 : vector<1x128xf32>
    %359 = vector.broadcast %276 : vector<8x1xf32> to vector<8x128xf32>
    %360 = vector.broadcast %358 : vector<1x128xf32> to vector<8x128xf32>
    %361 = arith.mulf %359, %360 : vector<8x128xf32>
    %362 = arith.addf %232, %361 : vector<8x128xf32>
    %c0_130 = arith.constant 0 : index
    %c0_131 = arith.constant 0 : index
    %363 = vector.load %arg4[%c0_130, %c0_131] : memref<128x128xf32, #tpu.memory_space<vmem>>, vector<128x128xf32>
    %cst_132 = arith.constant dense<0.000000e+00> : vector<1x128xf32>
    %364 = tpu.matmul %358, %363, %cst_132 {dimension_numbers = #tpu.dot_dimension_numbers<[1], [0], [0], [1], [0, 0, 1, 1], [], []>} : vector<1x128xf32>, vector<128x128xf32>, vector<1x128xf32> -> vector<1x128xf32>
    %c0_133 = arith.constant 0 : index
    %c0_134 = arith.constant 0 : index
    %365 = vector.load %arg5[%c0_133, %c0_134] : memref<1x128xf32, #tpu.memory_space<vmem>>, vector<1x128xf32>
    %366 = arith.addf %364, %365 : vector<1x128xf32>
    %cst_135 = arith.constant dense<0xFF800000> : vector<1xf32>
    %367 = vector.multi_reduction <maximumf>, %366, %cst_135 [1] : vector<1x128xf32> to vector<1xf32>
    %368 = vector.shape_cast %367 : vector<1xf32> to vector<1x1xf32>
    %369 = vector.broadcast %368 : vector<1x1xf32> to vector<1x128xf32>
    %370 = arith.subf %366, %369 : vector<1x128xf32>
    %371 = math.exp %370 : vector<1x128xf32>
    %cst_136 = arith.constant dense<0.000000e+00> : vector<1xf32>
    %372 = vector.multi_reduction <add>, %371, %cst_136 [1] : vector<1x128xf32> to vector<1xf32>
    %373 = vector.shape_cast %372 : vector<1xf32> to vector<1x1xf32>
    %374 = tpu.reciprocal %373 {approx = true} : vector<1x1xf32> -> vector<1x1xf32>
    %375 = vector.broadcast %374 : vector<1x1xf32> to vector<1x128xf32>
    %376 = arith.mulf %371, %375 : vector<1x128xf32>
    %c0_137 = arith.constant 0 : index
    %c0_138 = arith.constant 0 : index
    %377 = vector.load %arg3[%c0_137, %c0_138] : memref<128x128xf32, #tpu.memory_space<vmem>>, vector<128x128xf32>
    %cst_139 = arith.constant dense<0.000000e+00> : vector<1x128xf32>
    %378 = tpu.matmul %376, %377, %cst_139 {dimension_numbers = #tpu.dot_dimension_numbers<[1], [0], [0], [1], [0, 0, 1, 1], [], []>} : vector<1x128xf32>, vector<128x128xf32>, vector<1x128xf32> -> vector<1x128xf32>
    %379 = vector.broadcast %276 : vector<8x1xf32> to vector<8x128xf32>
    %380 = vector.broadcast %376 : vector<1x128xf32> to vector<8x128xf32>
    %381 = arith.mulf %379, %380 : vector<8x128xf32>
    %382 = arith.addf %252, %381 : vector<8x128xf32>
    %383 = arith.mulf %278, %0 : vector<1x128xf32>
    %384 = arith.mulf %358, %1 : vector<1x128xf32>
    %385 = arith.addf %383, %384 : vector<1x128xf32>
    %386 = arith.mulf %378, %2 : vector<1x128xf32>
    %387 = arith.addf %385, %386 : vector<1x128xf32>
    %cst_140 = arith.constant dense<0.000000e+00> : vector<1xf32>
    %388 = vector.multi_reduction <add>, %387, %cst_140 [1] : vector<1x128xf32> to vector<1xf32>
    %389 = vector.shape_cast %388 : vector<1xf32> to vector<1x1xf32>
    %390 = arith.negf %389 : vector<1x1xf32>
    %391 = math.exp %390 : vector<1x1xf32>
    %cst_141 = arith.constant 1.000000e+00 : f32
    %392 = vector.broadcast %cst_141 : f32 to vector<1x1xf32>
    %393 = arith.addf %392, %391 : vector<1x1xf32>
    %394 = arith.divf %392, %393 : vector<1x1xf32>
    %395 = vector.broadcast %394 : vector<1x1xf32> to vector<8x1xf32>
    %396 = arith.mulf %276, %395 : vector<8x1xf32>
    %397 = arith.addf %267, %396 : vector<8x1xf32>
    %398 = tpu.concatenate %378, %358 in 1 : vector<1x128xf32>, vector<1x128xf32> -> vector<1x256xf32>
    %399 = vector.broadcast %276 : vector<8x1xf32> to vector<8x256xf32>
    %400 = vector.broadcast %398 : vector<1x256xf32> to vector<8x256xf32>
    %401 = arith.mulf %399, %400 : vector<8x256xf32>
    %402 = arith.addf %272, %401 : vector<8x256xf32>
    %c3_i32 = arith.constant 3 : i32
    %403 = vector.broadcast %c3_i32 : i32 to vector<8x1xi32>
    %404 = arith.cmpi eq, %3, %403 : vector<8x1xi32>
    %405 = arith.extui %404 : vector<8x1xi1> to vector<8x1xi32>
    %406 = arith.sitofp %405 : vector<8x1xi32> to vector<8x1xf32>
    %c3 = arith.constant 3 : index
    %c0_142 = arith.constant 0 : index
    %c0_143 = arith.constant 0 : index
    %407 = vector.load %arg1[%c3, %c0_142, %c0_143] : memref<4x1x128xf32, #tpu.memory_space<vmem>>, vector<1x1x128xf32>
    %408 = vector.shape_cast %407 : vector<1x1x128xf32> to vector<1x128xf32>
    %409 = tpu.concatenate %408, %316 in 1 : vector<1x128xf32>, vector<1x128xf32> -> vector<1x256xf32>
    %c0_144 = arith.constant 0 : index
    %c0_145 = arith.constant 0 : index
    %c0_146 = arith.constant 0 : index
    %410 = vector.load %arg6[%c0_144, %c0_145, %c0_146] : memref<2x256x384xf32, #tpu.memory_space<vmem>>, vector<1x256x384xf32>
    %411 = vector.shape_cast %410 : vector<1x256x384xf32> to vector<256x384xf32>
    %cst_147 = arith.constant dense<0.000000e+00> : vector<1x384xf32>
    %412 = tpu.matmul %409, %411, %cst_147 {dimension_numbers = #tpu.dot_dimension_numbers<[1], [0], [0], [1], [0, 0, 1, 1], [], []>} : vector<1x256xf32>, vector<256x384xf32>, vector<1x384xf32> -> vector<1x384xf32>
    %c0_148 = arith.constant 0 : index
    %c0_149 = arith.constant 0 : index
    %c0_150 = arith.constant 0 : index
    %413 = vector.load %arg7[%c0_148, %c0_149, %c0_150] : memref<2x128x128xf32, #tpu.memory_space<vmem>>, vector<1x128x128xf32>
    %414 = vector.shape_cast %413 : vector<1x128x128xf32> to vector<128x128xf32>
    %cst_151 = arith.constant dense<0.000000e+00> : vector<1x128xf32>
    %415 = tpu.matmul %316, %414, %cst_151 {dimension_numbers = #tpu.dot_dimension_numbers<[1], [0], [0], [1], [0, 0, 1, 1], [], []>} : vector<1x128xf32>, vector<128x128xf32>, vector<1x128xf32> -> vector<1x128xf32>
    %c0_152 = arith.constant 0 : index
    %c0_153 = arith.constant 0 : index
    %c0_154 = arith.constant 0 : index
    %416 = vector.load %arg8[%c0_152, %c0_153, %c0_154] : memref<2x1x512xf32, #tpu.memory_space<vmem>>, vector<1x1x512xf32>
    %417 = vector.shape_cast %416 : vector<1x1x512xf32> to vector<1x512xf32>
    %418 = vector.extract_strided_slice %412 {offsets = [0, 0], sizes = [1, 128], strides = [1, 1]} : vector<1x384xf32> to vector<1x128xf32>
    %419 = vector.extract_strided_slice %417 {offsets = [0, 0], sizes = [1, 128], strides = [1, 1]} : vector<1x512xf32> to vector<1x128xf32>
    %420 = arith.addf %418, %419 : vector<1x128xf32>
    %421 = arith.negf %420 : vector<1x128xf32>
    %422 = math.exp %421 : vector<1x128xf32>
    %cst_155 = arith.constant 1.000000e+00 : f32
    %423 = vector.broadcast %cst_155 : f32 to vector<1x128xf32>
    %424 = arith.addf %423, %422 : vector<1x128xf32>
    %425 = arith.divf %423, %424 : vector<1x128xf32>
    %426 = vector.extract_strided_slice %412 {offsets = [0, 128], sizes = [1, 128], strides = [1, 1]} : vector<1x384xf32> to vector<1x128xf32>
    %427 = vector.extract_strided_slice %417 {offsets = [0, 128], sizes = [1, 128], strides = [1, 1]} : vector<1x512xf32> to vector<1x128xf32>
    %428 = arith.addf %426, %427 : vector<1x128xf32>
    %429 = arith.negf %428 : vector<1x128xf32>
    %430 = math.exp %429 : vector<1x128xf32>
    %cst_156 = arith.constant 1.000000e+00 : f32
    %431 = vector.broadcast %cst_156 : f32 to vector<1x128xf32>
    %432 = arith.addf %431, %430 : vector<1x128xf32>
    %433 = arith.divf %431, %432 : vector<1x128xf32>
    %434 = vector.extract_strided_slice %412 {offsets = [0, 256], sizes = [1, 128], strides = [1, 1]} : vector<1x384xf32> to vector<1x128xf32>
    %435 = vector.extract_strided_slice %417 {offsets = [0, 256], sizes = [1, 128], strides = [1, 1]} : vector<1x512xf32> to vector<1x128xf32>
    %436 = arith.addf %434, %435 : vector<1x128xf32>
    %437 = vector.extract_strided_slice %417 {offsets = [0, 384], sizes = [1, 128], strides = [1, 1]} : vector<1x512xf32> to vector<1x128xf32>
    %438 = arith.addf %415, %437 : vector<1x128xf32>
    %439 = arith.mulf %425, %438 : vector<1x128xf32>
    %440 = arith.addf %436, %439 : vector<1x128xf32>
    %441 = math.tanh %440 : vector<1x128xf32>
    %cst_157 = arith.constant 1.000000e+00 : f32
    %442 = vector.broadcast %cst_157 : f32 to vector<1x128xf32>
    %443 = arith.subf %442, %433 : vector<1x128xf32>
    %444 = arith.mulf %443, %441 : vector<1x128xf32>
    %445 = arith.mulf %433, %316 : vector<1x128xf32>
    %446 = arith.addf %444, %445 : vector<1x128xf32>
    %447 = vector.broadcast %406 : vector<8x1xf32> to vector<8x128xf32>
    %448 = vector.broadcast %446 : vector<1x128xf32> to vector<8x128xf32>
    %449 = arith.mulf %447, %448 : vector<8x128xf32>
    %450 = arith.addf %320, %449 : vector<8x128xf32>
    %451 = tpu.concatenate %446, %358 in 1 : vector<1x128xf32>, vector<1x128xf32> -> vector<1x256xf32>
    %c1_158 = arith.constant 1 : index
    %c0_159 = arith.constant 0 : index
    %c0_160 = arith.constant 0 : index
    %452 = vector.load %arg6[%c1_158, %c0_159, %c0_160] : memref<2x256x384xf32, #tpu.memory_space<vmem>>, vector<1x256x384xf32>
    %453 = vector.shape_cast %452 : vector<1x256x384xf32> to vector<256x384xf32>
    %cst_161 = arith.constant dense<0.000000e+00> : vector<1x384xf32>
    %454 = tpu.matmul %451, %453, %cst_161 {dimension_numbers = #tpu.dot_dimension_numbers<[1], [0], [0], [1], [0, 0, 1, 1], [], []>} : vector<1x256xf32>, vector<256x384xf32>, vector<1x384xf32> -> vector<1x384xf32>
    %c1_162 = arith.constant 1 : index
    %c0_163 = arith.constant 0 : index
    %c0_164 = arith.constant 0 : index
    %455 = vector.load %arg7[%c1_162, %c0_163, %c0_164] : memref<2x128x128xf32, #tpu.memory_space<vmem>>, vector<1x128x128xf32>
    %456 = vector.shape_cast %455 : vector<1x128x128xf32> to vector<128x128xf32>
    %cst_165 = arith.constant dense<0.000000e+00> : vector<1x128xf32>
    %457 = tpu.matmul %358, %456, %cst_165 {dimension_numbers = #tpu.dot_dimension_numbers<[1], [0], [0], [1], [0, 0, 1, 1], [], []>} : vector<1x128xf32>, vector<128x128xf32>, vector<1x128xf32> -> vector<1x128xf32>
    %c1_166 = arith.constant 1 : index
    %c0_167 = arith.constant 0 : index
    %c0_168 = arith.constant 0 : index
    %458 = vector.load %arg8[%c1_166, %c0_167, %c0_168] : memref<2x1x512xf32, #tpu.memory_space<vmem>>, vector<1x1x512xf32>
    %459 = vector.shape_cast %458 : vector<1x1x512xf32> to vector<1x512xf32>
    %460 = vector.extract_strided_slice %454 {offsets = [0, 0], sizes = [1, 128], strides = [1, 1]} : vector<1x384xf32> to vector<1x128xf32>
    %461 = vector.extract_strided_slice %459 {offsets = [0, 0], sizes = [1, 128], strides = [1, 1]} : vector<1x512xf32> to vector<1x128xf32>
    %462 = arith.addf %460, %461 : vector<1x128xf32>
    %463 = arith.negf %462 : vector<1x128xf32>
    %464 = math.exp %463 : vector<1x128xf32>
    %cst_169 = arith.constant 1.000000e+00 : f32
    %465 = vector.broadcast %cst_169 : f32 to vector<1x128xf32>
    %466 = arith.addf %465, %464 : vector<1x128xf32>
    %467 = arith.divf %465, %466 : vector<1x128xf32>
    %468 = vector.extract_strided_slice %454 {offsets = [0, 128], sizes = [1, 128], strides = [1, 1]} : vector<1x384xf32> to vector<1x128xf32>
    %469 = vector.extract_strided_slice %459 {offsets = [0, 128], sizes = [1, 128], strides = [1, 1]} : vector<1x512xf32> to vector<1x128xf32>
    %470 = arith.addf %468, %469 : vector<1x128xf32>
    %471 = arith.negf %470 : vector<1x128xf32>
    %472 = math.exp %471 : vector<1x128xf32>
    %cst_170 = arith.constant 1.000000e+00 : f32
    %473 = vector.broadcast %cst_170 : f32 to vector<1x128xf32>
    %474 = arith.addf %473, %472 : vector<1x128xf32>
    %475 = arith.divf %473, %474 : vector<1x128xf32>
    %476 = vector.extract_strided_slice %454 {offsets = [0, 256], sizes = [1, 128], strides = [1, 1]} : vector<1x384xf32> to vector<1x128xf32>
    %477 = vector.extract_strided_slice %459 {offsets = [0, 256], sizes = [1, 128], strides = [1, 1]} : vector<1x512xf32> to vector<1x128xf32>
    %478 = arith.addf %476, %477 : vector<1x128xf32>
    %479 = vector.extract_strided_slice %459 {offsets = [0, 384], sizes = [1, 128], strides = [1, 1]} : vector<1x512xf32> to vector<1x128xf32>
    %480 = arith.addf %457, %479 : vector<1x128xf32>
    %481 = arith.mulf %467, %480 : vector<1x128xf32>
    %482 = arith.addf %478, %481 : vector<1x128xf32>
    %483 = math.tanh %482 : vector<1x128xf32>
    %cst_171 = arith.constant 1.000000e+00 : f32
    %484 = vector.broadcast %cst_171 : f32 to vector<1x128xf32>
    %485 = arith.subf %484, %475 : vector<1x128xf32>
    %486 = arith.mulf %485, %483 : vector<1x128xf32>
    %487 = arith.mulf %475, %358 : vector<1x128xf32>
    %488 = arith.addf %486, %487 : vector<1x128xf32>
    %489 = vector.broadcast %406 : vector<8x1xf32> to vector<8x128xf32>
    %490 = vector.broadcast %488 : vector<1x128xf32> to vector<8x128xf32>
    %491 = arith.mulf %489, %490 : vector<8x128xf32>
    %492 = arith.addf %362, %491 : vector<8x128xf32>
    %c0_172 = arith.constant 0 : index
    %c0_173 = arith.constant 0 : index
    %493 = vector.load %arg4[%c0_172, %c0_173] : memref<128x128xf32, #tpu.memory_space<vmem>>, vector<128x128xf32>
    %cst_174 = arith.constant dense<0.000000e+00> : vector<1x128xf32>
    %494 = tpu.matmul %488, %493, %cst_174 {dimension_numbers = #tpu.dot_dimension_numbers<[1], [0], [0], [1], [0, 0, 1, 1], [], []>} : vector<1x128xf32>, vector<128x128xf32>, vector<1x128xf32> -> vector<1x128xf32>
    %c0_175 = arith.constant 0 : index
    %c0_176 = arith.constant 0 : index
    %495 = vector.load %arg5[%c0_175, %c0_176] : memref<1x128xf32, #tpu.memory_space<vmem>>, vector<1x128xf32>
    %496 = arith.addf %494, %495 : vector<1x128xf32>
    %cst_177 = arith.constant dense<0xFF800000> : vector<1xf32>
    %497 = vector.multi_reduction <maximumf>, %496, %cst_177 [1] : vector<1x128xf32> to vector<1xf32>
    %498 = vector.shape_cast %497 : vector<1xf32> to vector<1x1xf32>
    %499 = vector.broadcast %498 : vector<1x1xf32> to vector<1x128xf32>
    %500 = arith.subf %496, %499 : vector<1x128xf32>
    %501 = math.exp %500 : vector<1x128xf32>
    %cst_178 = arith.constant dense<0.000000e+00> : vector<1xf32>
    %502 = vector.multi_reduction <add>, %501, %cst_178 [1] : vector<1x128xf32> to vector<1xf32>
    %503 = vector.shape_cast %502 : vector<1xf32> to vector<1x1xf32>
    %504 = tpu.reciprocal %503 {approx = true} : vector<1x1xf32> -> vector<1x1xf32>
    %505 = vector.broadcast %504 : vector<1x1xf32> to vector<1x128xf32>
    %506 = arith.mulf %501, %505 : vector<1x128xf32>
    %c0_179 = arith.constant 0 : index
    %c0_180 = arith.constant 0 : index
    %507 = vector.load %arg3[%c0_179, %c0_180] : memref<128x128xf32, #tpu.memory_space<vmem>>, vector<128x128xf32>
    %cst_181 = arith.constant dense<0.000000e+00> : vector<1x128xf32>
    %508 = tpu.matmul %506, %507, %cst_181 {dimension_numbers = #tpu.dot_dimension_numbers<[1], [0], [0], [1], [0, 0, 1, 1], [], []>} : vector<1x128xf32>, vector<128x128xf32>, vector<1x128xf32> -> vector<1x128xf32>
    %509 = vector.broadcast %406 : vector<8x1xf32> to vector<8x128xf32>
    %510 = vector.broadcast %506 : vector<1x128xf32> to vector<8x128xf32>
    %511 = arith.mulf %509, %510 : vector<8x128xf32>
    %512 = arith.addf %382, %511 : vector<8x128xf32>
    %513 = arith.mulf %408, %0 : vector<1x128xf32>
    %514 = arith.mulf %488, %1 : vector<1x128xf32>
    %515 = arith.addf %513, %514 : vector<1x128xf32>
    %516 = arith.mulf %508, %2 : vector<1x128xf32>
    %517 = arith.addf %515, %516 : vector<1x128xf32>
    %cst_182 = arith.constant dense<0.000000e+00> : vector<1xf32>
    %518 = vector.multi_reduction <add>, %517, %cst_182 [1] : vector<1x128xf32> to vector<1xf32>
    %519 = vector.shape_cast %518 : vector<1xf32> to vector<1x1xf32>
    %520 = arith.negf %519 : vector<1x1xf32>
    %521 = math.exp %520 : vector<1x1xf32>
    %cst_183 = arith.constant 1.000000e+00 : f32
    %522 = vector.broadcast %cst_183 : f32 to vector<1x1xf32>
    %523 = arith.addf %522, %521 : vector<1x1xf32>
    %524 = arith.divf %522, %523 : vector<1x1xf32>
    %525 = vector.broadcast %524 : vector<1x1xf32> to vector<8x1xf32>
    %526 = arith.mulf %406, %525 : vector<8x1xf32>
    %527 = arith.addf %397, %526 : vector<8x1xf32>
    %528 = tpu.concatenate %508, %488 in 1 : vector<1x128xf32>, vector<1x128xf32> -> vector<1x256xf32>
    %529 = vector.broadcast %406 : vector<8x1xf32> to vector<8x256xf32>
    %530 = vector.broadcast %528 : vector<1x256xf32> to vector<8x256xf32>
    %531 = arith.mulf %529, %530 : vector<8x256xf32>
    %532 = arith.addf %402, %531 : vector<8x256xf32>
    %c0_184 = arith.constant 0 : index
    %c0_185 = arith.constant 0 : index
    %c0_186 = arith.constant 0 : index
    %533 = vector.load %arg14[%c0_184, %c0_185, %c0_186] : memref<2x8x128xf32, #tpu.memory_space<vmem>>, vector<1x8x128xf32>
    %534 = vector.shape_cast %533 : vector<1x8x128xf32> to vector<8x128xf32>
    %535 = vector.shape_cast %450 : vector<8x128xf32> to vector<1x8x128xf32>
    tpu.vector_store %arg14[%c0_184, %c0_185, %c0_186], %535 {strides = array<i32>} : memref<2x8x128xf32, #tpu.memory_space<vmem>>, vector<1x8x128xf32>,
    %c1_187 = arith.constant 1 : index
    %c0_188 = arith.constant 0 : index
    %c0_189 = arith.constant 0 : index
    %536 = vector.load %arg14[%c1_187, %c0_188, %c0_189] : memref<2x8x128xf32, #tpu.memory_space<vmem>>, vector<1x8x128xf32>
    %537 = vector.shape_cast %536 : vector<1x8x128xf32> to vector<8x128xf32>
    %538 = vector.shape_cast %492 : vector<8x128xf32> to vector<1x8x128xf32>
    tpu.vector_store %arg14[%c1_187, %c0_188, %c0_189], %538 {strides = array<i32>} : memref<2x8x128xf32, #tpu.memory_space<vmem>>, vector<1x8x128xf32>,
    %c0_190 = arith.constant 0 : index
    %c0_191 = arith.constant 0 : index
    %539 = vector.load %arg15[%c0_190, %c0_191] : memref<8x128xf32, #tpu.memory_space<vmem>>, vector<8x128xf32>
    tpu.vector_store %arg15[%c0_190, %c0_191], %512 {strides = array<i32>} : memref<8x128xf32, #tpu.memory_space<vmem>>, vector<8x128xf32>,
    %540 = arith.truncf %532 : vector<8x256xf32> to vector<8x256xbf16>
    %c0_192 = arith.constant 0 : index
    %c0_193 = arith.constant 0 : index
    %541 = vector.load %arg10[%c0_192, %c0_193] : memref<256x128xbf16, #tpu.memory_space<vmem>>, vector<256x128xbf16>
    %cst_194 = arith.constant dense<0.000000e+00> : vector<8x128xf32>
    %542 = tpu.matmul %540, %541, %cst_194 {dimension_numbers = #tpu.dot_dimension_numbers<[1], [0], [0], [1], [0, 0, 1, 1], [], []>} : vector<8x256xbf16>, vector<256x128xbf16>, vector<8x128xf32> -> vector<8x128xf32>
    %543 = math.tanh %542 : vector<8x128xf32>
    %544 = arith.truncf %543 : vector<8x128xf32> to vector<8x128xbf16>
    %c0_195 = arith.constant 0 : index
    %c0_196 = arith.constant 0 : index
    %545 = vector.load %arg11[%c0_195, %c0_196] : memref<128x128xbf16, #tpu.memory_space<vmem>>, vector<128x128xbf16>
    %cst_197 = arith.constant dense<0.000000e+00> : vector<8x128xf32>
    %546 = tpu.matmul %544, %545, %cst_197 {dimension_numbers = #tpu.dot_dimension_numbers<[1], [0], [0], [1], [0, 0, 1, 1], [], []>} : vector<8x128xbf16>, vector<128x128xbf16>, vector<8x128xf32> -> vector<8x128xf32>
    %c0_198 = arith.constant 0 : index
    %c0_199 = arith.constant 0 : index
    %547 = vector.load %arg12[%c0_198, %c0_199] : memref<2x128xf32, #tpu.memory_space<vmem>>, vector<1x128xf32>
    %548 = vector.broadcast %547 : vector<1x128xf32> to vector<8x128xf32>
    %549 = arith.addf %546, %548 : vector<8x128xf32>
    %550 = vector.broadcast %527 : vector<8x1xf32> to vector<8x128xf32>
    %551 = arith.mulf %550, %549 : vector<8x128xf32>
    %c1_200 = arith.constant 1 : index
    %c0_201 = arith.constant 0 : index
    %552 = vector.load %arg12[%c1_200, %c0_201] : memref<2x128xf32, #tpu.memory_space<vmem>>, vector<1x128xf32>
    %553 = vector.broadcast %552 : vector<1x128xf32> to vector<8x128xf32>
    %554 = arith.addf %551, %553 : vector<8x128xf32>
    %cst_202 = arith.constant dense<0xFF800000> : vector<8xf32>
    %555 = vector.multi_reduction <maximumf>, %554, %cst_202 [1] : vector<8x128xf32> to vector<8xf32>
    %556 = vector.shape_cast %555 : vector<8xf32> to vector<8x1xf32>
    %557 = vector.broadcast %556 : vector<8x1xf32> to vector<8x128xf32>
    %558 = arith.subf %554, %557 : vector<8x128xf32>
    %559 = math.exp %558 : vector<8x128xf32>
    %cst_203 = arith.constant dense<0.000000e+00> : vector<8xf32>
    %560 = vector.multi_reduction <add>, %559, %cst_203 [1] : vector<8x128xf32> to vector<8xf32>
    %561 = vector.shape_cast %560 : vector<8xf32> to vector<8x1xf32>
    %562 = math.log %561 : vector<8x1xf32>
    %563 = vector.broadcast %562 : vector<8x1xf32> to vector<8x128xf32>
    %564 = arith.subf %558, %563 : vector<8x128xf32>
    %c0_204 = arith.constant 0 : index
    %c0_205 = arith.constant 0 : index
    %565 = vector.load %arg13[%c0_204, %c0_205] : memref<8x128xf32, #tpu.memory_space<vmem>>, vector<8x128xf32>
    tpu.vector_store %arg13[%c0_204, %c0_205], %564 {strides = array<i32>} : memref<8x128xf32, #tpu.memory_space<vmem>>, vector<8x128xf32>,
    return
  }
  func.func @transform_0(%arg0: i32) -> (i32, i32, i32) {
    %c0_i32 = arith.constant 0 : i32
    %c0_i32_0 = arith.constant 0 : i32
    %c0_i32_1 = arith.constant 0 : i32
    %c0_i32_2 = arith.constant 0 : i32
    return %c0_i32, %c0_i32_0, %c0_i32_1 : i32, i32, i32
  }
  func.func @transform_1(%arg0: i32) -> (i32, i32, i32) {
    %c0_i32 = arith.constant 0 : i32
    %c0_i32_0 = arith.constant 0 : i32
    %c0_i32_1 = arith.constant 0 : i32
    %c0_i32_2 = arith.constant 0 : i32
    return %c0_i32, %c0_i32_0, %c0_i32_1 : i32, i32, i32
  }
  func.func @transform_2(%arg0: i32) -> (i32, i32) {
    %c0_i32 = arith.constant 0 : i32
    %c0_i32_0 = arith.constant 0 : i32
    %c0_i32_1 = arith.constant 0 : i32
    return %c0_i32, %c0_i32_0 : i32, i32
  }
  func.func @transform_3(%arg0: i32) -> (i32, i32) {
    %c0_i32 = arith.constant 0 : i32
    %c0_i32_0 = arith.constant 0 : i32
    %c0_i32_1 = arith.constant 0 : i32
    return %c0_i32, %c0_i32_0 : i32, i32
  }
  func.func @transform_4(%arg0: i32) -> (i32, i32) {
    %c0_i32 = arith.constant 0 : i32
    %c0_i32_0 = arith.constant 0 : i32
    %c0_i32_1 = arith.constant 0 : i32
    return %c0_i32, %c0_i32_0 : i32, i32
  }
  func.func @transform_5(%arg0: i32) -> (i32, i32, i32) {
    %c0_i32 = arith.constant 0 : i32
    %c0_i32_0 = arith.constant 0 : i32
    %c0_i32_1 = arith.constant 0 : i32
    %c0_i32_2 = arith.constant 0 : i32
    return %c0_i32, %c0_i32_0, %c0_i32_1 : i32, i32, i32
  }
  func.func @transform_6(%arg0: i32) -> (i32, i32, i32) {
    %c0_i32 = arith.constant 0 : i32
    %c0_i32_0 = arith.constant 0 : i32
    %c0_i32_1 = arith.constant 0 : i32
    %c0_i32_2 = arith.constant 0 : i32
    return %c0_i32, %c0_i32_0, %c0_i32_1 : i32, i32, i32
  }
  func.func @transform_7(%arg0: i32) -> (i32, i32, i32) {
    %c0_i32 = arith.constant 0 : i32
    %c0_i32_0 = arith.constant 0 : i32
    %c0_i32_1 = arith.constant 0 : i32
    %c0_i32_2 = arith.constant 0 : i32
    return %c0_i32, %c0_i32_0, %c0_i32_1 : i32, i32, i32
  }
  func.func @transform_8(%arg0: i32) -> (i32, i32) {
    %c0_i32 = arith.constant 0 : i32
    %c0_i32_0 = arith.constant 0 : i32
    %c0_i32_1 = arith.constant 0 : i32
    return %c0_i32, %c0_i32_0 : i32, i32
  }
  func.func @transform_9(%arg0: i32) -> (i32, i32) {
    %c0_i32 = arith.constant 0 : i32
    %c0_i32_0 = arith.constant 0 : i32
    %c0_i32_1 = arith.constant 0 : i32
    return %c0_i32, %c0_i32_0 : i32, i32
  }
  func.func @transform_10(%arg0: i32) -> (i32, i32) {
    %c0_i32 = arith.constant 0 : i32
    %c0_i32_0 = arith.constant 0 : i32
    %c0_i32_1 = arith.constant 0 : i32
    return %c0_i32, %c0_i32_0 : i32, i32
  }
  func.func @transform_11(%arg0: i32) -> (i32, i32) {
    %c0_i32 = arith.constant 0 : i32
    %c0_i32_0 = arith.constant 0 : i32
    %c0_i32_1 = arith.constant 0 : i32
    return %c0_i32, %c0_i32_0 : i32, i32
  }
  func.func @transform_12(%arg0: i32) -> (i32, i32) {
    %c0_i32 = arith.constant 0 : i32
    %c0_i32_0 = arith.constant 0 : i32
    %c0_i32_1 = arith.constant 0 : i32
    return %c0_i32, %c0_i32_0 : i32, i32
  }
  func.func @transform_13(%arg0: i32) -> (i32, i32, i32) {
    %c0_i32 = arith.constant 0 : i32
    %c0_i32_0 = arith.constant 0 : i32
    %c0_i32_1 = arith.constant 0 : i32
    %c0_i32_2 = arith.constant 0 : i32
    return %c0_i32, %c0_i32_0, %c0_i32_1 : i32, i32, i32
  }
  func.func @transform_14(%arg0: i32) -> (i32, i32) {
    %c0_i32 = arith.constant 0 : i32
    %c0_i32_0 = arith.constant 0 : i32
    %c0_i32_1 = arith.constant 0 : i32
    return %c0_i32, %c0_i32_0 : i32, i32
  }
}

</mosaic_0001>

<llo_original>
// kernel: tpu_custom_call.1
$region0: #{tpu_custom_call.1}
  #allocation0 [shape = 'u32[]', space=smem, size = 0x4, offset = 0x4, fixed_abs, tag = 'smem constant byte address 0x4 - core index']
  #allocation1 [shape = 'u32[144,128]{1,0:T(1,128)}', space=vmem, size = 0x12000, scoped, tag = 'internal scratch']
  %s0 = inlined_call_operand.hbm [shape: f32[4,1,128], index: 0, kind: input, shape index: {}]
  %s1 = inlined_call_operand.hbm [shape: f32[2,1,128], index: 1, kind: input, shape index: {}]
  %s2 = inlined_call_operand.hbm [shape: f32[128,128], index: 2, kind: input, shape index: {}]
  %s3 = inlined_call_operand.hbm [shape: f32[128,128], index: 3, kind: input, shape index: {}]
  %s4 = inlined_call_operand.hbm [shape: f32[1,128], index: 4, kind: input, shape index: {}]
  %s5 = inlined_call_operand.hbm [shape: f32[2,256,384], index: 5, kind: input, shape index: {}]
  %s6 = inlined_call_operand.hbm [shape: f32[2,128,128], index: 6, kind: input, shape index: {}]
  %s7 = inlined_call_operand.vmem [shape: f32[2,1,512], index: 7, kind: input, shape index: {}]
  %s8 = inlined_call_operand.vmem [shape: f32[3,128], index: 8, kind: input, shape index: {}]
  %s9 = inlined_call_operand.hbm [shape: bf16[256,128], index: 9, kind: input, shape index: {}]
  %s10 = inlined_call_operand.hbm [shape: bf16[128,128], index: 10, kind: input, shape index: {}]
  %s11 = inlined_call_operand.vmem [shape: f32[2,128], index: 11, kind: input, shape index: {}]
  %s12 = inlined_call_operand.hbm [shape: f32[8,128], index: 12, kind: output, shape index: {0}]
  %s13 = inlined_call_operand.hbm [shape: f32[2,8,128], index: 13, kind: output, shape index: {1}]
  %s14 = inlined_call_operand.hbm [shape: f32[8,128], index: 14, kind: output, shape index: {2}]
  %15 = xla_tuple %s12, %s13, %s14
  %s16 = sld [smem:[#allocation0]]
  $region110: #{tpu_custom_call.1} parent=0
    _
  %s18 = ssub.s32 1, %s16
  %s19 = scalar_select 0, %s18, %s16
  $region1: #{tpu_custom_call.1} parent=0
    #allocation2 [shape = 'u8[2048]{0}', space=vmem, size = 0x800, scoped, tag = 'input window, operand 0, single buffered']
    #allocation3 [shape = 's32[1]{0}', space=sflag, size = 0x4, scoped, tag = 'scoped memory for tpu_custom_call.1']
    #allocation4 [shape = 's32[1]{0}', space=sflag, size = 0x4, scoped, tag = 'scoped memory for tpu_custom_call.1']
    #allocation5 [shape = 'u8[1024]{0}', space=vmem, size = 0x400, scoped, tag = 'input window, operand 1, single buffered']
    #allocation6 [shape = 's32[1]{0}', space=sflag, size = 0x4, scoped, tag = 'scoped memory for tpu_custom_call.1']
    #allocation7 [shape = 'u8[65536]{0}', space=vmem, size = 0x10000, scoped, tag = 'input window, operand 2, single buffered']
    #allocation8 [shape = 'u8[65536]{0}', space=vmem, size = 0x10000, scoped, tag = 'input window, operand 3, single buffered']
    #allocation9 [shape = 's32[1]{0}', space=sflag, size = 0x4, scoped, tag = 'scoped memory for tpu_custom_call.1']
    #allocation10 [shape = 'u8[512]{0}', space=vmem, size = 0x400, scoped, tag = 'input window, operand 4, single buffered']
    #allocation11 [shape = 'u8[786432]{0}', space=vmem, size = 0xc0000, scoped, tag = 'input window, operand 5, single buffered']
    #allocation12 [shape = 's32[1]{0}', space=sflag, size = 0x4, scoped, tag = 'scoped memory for tpu_custom_call.1']
    #allocation13 [shape = 'u8[131072]{0}', space=vmem, size = 0x20000, scoped, tag = 'input window, operand 6, single buffered']
    #allocation14 [shape = 'u8[65536]{0}', space=vmem, size = 0x10000, scoped, tag = 'input window, operand 9, single buffered']
    #allocation15 [shape = 's32[1]{0}', space=sflag, size = 0x4, scoped, tag = 'scoped memory for tpu_custom_call.1']
    #allocation16 [shape = 'u8[32768]{0}', space=vmem, size = 0x8000, scoped, tag = 'input window, operand 10, single buffered']
    #allocation17 [shape = 'u8[4096]{0}', space=vmem, size = 0x1000, scoped, tag = 'output window, operand 0, single buffered']
    #allocation18 [shape = 'u8[8192]{0}', space=vmem, size = 0x2000, scoped, tag = 'output window, operand 1, single buffered']
    #allocation19 [shape = 's32[1]{0}', space=sflag, size = 0x4, scoped, tag = 'scoped memory for tpu_custom_call.1']
    #allocation20 [shape = 'u8[4096]{0}', space=vmem, size = 0x1000, scoped, tag = 'output window, operand 2, single buffered']
    %20 = vsyncpa [#allocation3], 0
    %21 = vsyncpa [#allocation6], 0
    %22 = vsyncpa [#allocation9], 0
    %23 = vsyncpa [#allocation12], 0
    %24 = vsyncpa [#allocation15], 0
    %25 = vsyncpa [#allocation4], 0
    %26 = vsyncpa [#allocation19], 0
    // Predicated region
    $region2: #{tpu_custom_call.1} parent=1 // pred_check
      _
    $region3: #{tpu_custom_call.1} parent=1 // pred_check_branch
      %28 = sbr.rel (0) target = $region5
    $region4: #{tpu_custom_call.1} parent=1 // pred_region
      %s30 = ssub.s32 64, 64
      %31 = vsyncadd [#allocation3], %s30
      %s32 = sshll.u32 [#allocation2], 4
      %s33 = int_to_ptr.vmem [resolvable:$true] %s32
      %38 = dma.hbm_to_vmem [thread:$0]  %s0, 64, %s33, [#allocation3], 16, 16, 1
    $region5: #{tpu_custom_call.1} parent=1 // pred_fallthru
      _
    // Predicated region
    $region6: #{tpu_custom_call.1} parent=1 // pred_check
      _
    $region7: #{tpu_custom_call.1} parent=1 // pred_check_branch
      %40 = sbr.rel (0) target = $region9
    $region8: #{tpu_custom_call.1} parent=1 // pred_region
      %s42 = ssub.s32 32, 32
      %43 = vsyncadd [#allocation6], %s42
      %s44 = sshll.u32 [#allocation5], 4
      %s45 = int_to_ptr.vmem [resolvable:$true] %s44
      %50 = dma.hbm_to_vmem [thread:$0]  %s1, 32, %s45, [#allocation6], 16, 16, 1
    $region9: #{tpu_custom_call.1} parent=1 // pred_fallthru
      _
    // Predicated region
    $region10: #{tpu_custom_call.1} parent=1 // pred_check
      _
    $region11: #{tpu_custom_call.1} parent=1 // pred_check_branch
      %52 = sbr.rel (0) target = $region13
    $region12: #{tpu_custom_call.1} parent=1 // pred_region
      %s54 = ssub.s32 2048, 2048
      %55 = vsyncadd [#allocation6], %s54
      %s56 = sshll.u32 [#allocation7], 4
      %s57 = int_to_ptr.vmem [resolvable:$true] %s56
      %62 = dma.hbm_to_vmem [thread:$0]  %s2, 2048, %s57, [#allocation6], 128, 128, 8
    $region13: #{tpu_custom_call.1} parent=1 // pred_fallthru
      _
    // Predicated region
    $region14: #{tpu_custom_call.1} parent=1 // pred_check
      _
    $region15: #{tpu_custom_call.1} parent=1 // pred_check_branch
      %64 = sbr.rel (0) target = $region17
    $region16: #{tpu_custom_call.1} parent=1 // pred_region
      %s66 = ssub.s32 2048, 2048
      %67 = vsyncadd [#allocation9], %s66
      %s68 = sshll.u32 [#allocation8], 4
      %s69 = int_to_ptr.vmem [resolvable:$true] %s68
      %74 = dma.hbm_to_vmem [thread:$0]  %s3, 2048, %s69, [#allocation9], 128, 128, 8
    $region17: #{tpu_custom_call.1} parent=1 // pred_fallthru
      _
    // Predicated region
    $region18: #{tpu_custom_call.1} parent=1 // pred_check
      _
    $region19: #{tpu_custom_call.1} parent=1 // pred_check_branch
      %76 = sbr.rel (0) target = $region21
    $region20: #{tpu_custom_call.1} parent=1 // pred_region
      %s78 = ssub.s32 16, 16
      %79 = vsyncadd [#allocation9], %s78
      %s81 = sshll.u32 [#allocation10], 4
      %s82 = int_to_ptr.vmem [resolvable:$true] %s81
      %84 = dma.hbm_to_vmem [thread:$0]  %s4, 16, %s82, [#allocation9]
    $region21: #{tpu_custom_call.1} parent=1 // pred_fallthru
      _
    // Predicated region
    $region22: #{tpu_custom_call.1} parent=1 // pred_check
      _
    $region23: #{tpu_custom_call.1} parent=1 // pred_check_branch
      %86 = sbr.rel (0) target = $region25
    $region24: #{tpu_custom_call.1} parent=1 // pred_region
      %s88 = ssub.s32 24576, 24576
      %89 = vsyncadd [#allocation12], %s88
      %s90 = sshll.u32 [#allocation11], 4
      %s91 = int_to_ptr.vmem [resolvable:$true] %s90
      %96 = dma.hbm_to_vmem [thread:$0]  %s5, 24576, %s91, [#allocation12], 384, 384, 24
    $region25: #{tpu_custom_call.1} parent=1 // pred_fallthru
      _
    // Predicated region
    $region26: #{tpu_custom_call.1} parent=1 // pred_check
      _
    $region27: #{tpu_custom_call.1} parent=1 // pred_check_branch
      %98 = sbr.rel (0) target = $region29
    $region28: #{tpu_custom_call.1} parent=1 // pred_region
      %s100 = ssub.s32 4096, 4096
      %101 = vsyncadd [#allocation12], %s100
      %s102 = sshll.u32 [#allocation13], 4
      %s103 = int_to_ptr.vmem [resolvable:$true] %s102
      %108 = dma.hbm_to_vmem [thread:$0]  %s6, 4096, %s103, [#allocation12], 128, 128, 8
    $region29: #{tpu_custom_call.1} parent=1 // pred_fallthru
      _
    // Predicated region
    $region30: #{tpu_custom_call.1} parent=1 // pred_check
      _
    $region31: #{tpu_custom_call.1} parent=1 // pred_check_branch
      %110 = sbr.rel (0) target = $region33
    $region32: #{tpu_custom_call.1} parent=1 // pred_region
      _
    $region33: #{tpu_custom_call.1} parent=1 // pred_fallthru
      _
    // Predicated region
    $region34: #{tpu_custom_call.1} parent=1 // pred_check
      _
    $region35: #{tpu_custom_call.1} parent=1 // pred_check_branch
      %112 = sbr.rel (0) target = $region37
    $region36: #{tpu_custom_call.1} parent=1 // pred_region
      _
    $region37: #{tpu_custom_call.1} parent=1 // pred_fallthru
      _
    // Predicated region
    $region38: #{tpu_custom_call.1} parent=1 // pred_check
      _
    $region39: #{tpu_custom_call.1} parent=1 // pred_check_branch
      %114 = sbr.rel (0) target = $region41
    $region40: #{tpu_custom_call.1} parent=1 // pred_region
      %s116 = ssub.s32 2048, 2048
      %117 = vsyncadd [#allocation15], %s116
      %s118 = sshll.u32 [#allocation14], 4
      %s119 = int_to_ptr.vmem [resolvable:$true] %s118
      %124 = dma.hbm_to_vmem [thread:$0]  %s9, 2048, %s119, [#allocation15], 64, 64, 4
    $region41: #{tpu_custom_call.1} parent=1 // pred_fallthru
      _
    // Predicated region
    $region42: #{tpu_custom_call.1} parent=1 // pred_check
      _
    $region43: #{tpu_custom_call.1} parent=1 // pred_check_branch
      %126 = sbr.rel (0) target = $region45
    $region44: #{tpu_custom_call.1} parent=1 // pred_region
      %s128 = ssub.s32 1024, 1024
      %129 = vsyncadd [#allocation15], %s128
      %s130 = sshll.u32 [#allocation16], 4
      %s131 = int_to_ptr.vmem [resolvable:$true] %s130
      %136 = dma.hbm_to_vmem [thread:$0]  %s10, 1024, %s131, [#allocation15], 64, 64, 4
    $region45: #{tpu_custom_call.1} parent=1 // pred_fallthru
      _
    // Predicated region
    $region46: #{tpu_custom_call.1} parent=1 // pred_check
      _
    $region47: #{tpu_custom_call.1} parent=1 // pred_check_branch
      %138 = sbr.rel (0) target = $region49
    $region48: #{tpu_custom_call.1} parent=1 // pred_region
      _
    $region49: #{tpu_custom_call.1} parent=1 // pred_fallthru
      _
    // Predicated region
    $region50: #{tpu_custom_call.1} parent=1 // pred_check
      _
    $region51: #{tpu_custom_call.1} parent=1 // pred_check_branch
      %140 = sbr.rel (0) target = $region53
    $region52: #{tpu_custom_call.1} parent=1 // pred_region
      %141 = dma.done [#allocation3], 64
    $region53: #{tpu_custom_call.1} parent=1 // pred_fallthru
      _
    // Predicated region
    $region54: #{tpu_custom_call.1} parent=1 // pred_check
      _
    $region55: #{tpu_custom_call.1} parent=1 // pred_check_branch
      %143 = sbr.rel (0) target = $region57
    $region56: #{tpu_custom_call.1} parent=1 // pred_region
      %144 = dma.done [#allocation6], 32
    $region57: #{tpu_custom_call.1} parent=1 // pred_fallthru
      _
    // Predicated region
    $region58: #{tpu_custom_call.1} parent=1 // pred_check
      _
    $region59: #{tpu_custom_call.1} parent=1 // pred_check_branch
      %146 = sbr.rel (0) target = $region61
    $region60: #{tpu_custom_call.1} parent=1 // pred_region
      %147 = dma.done [#allocation6], 2048
    $region61: #{tpu_custom_call.1} parent=1 // pred_fallthru
      _
    // Predicated region
    $region62: #{tpu_custom_call.1} parent=1 // pred_check
      _
    $region63: #{tpu_custom_call.1} parent=1 // pred_check_branch
      %149 = sbr.rel (0) target = $region65
    $region64: #{tpu_custom_call.1} parent=1 // pred_region
      %150 = dma.done [#allocation9], 2048
    $region65: #{tpu_custom_call.1} parent=1 // pred_fallthru
      _
    // Predicated region
    $region66: #{tpu_custom_call.1} parent=1 // pred_check
      _
    $region67: #{tpu_custom_call.1} parent=1 // pred_check_branch
      %152 = sbr.rel (0) target = $region69
    $region68: #{tpu_custom_call.1} parent=1 // pred_region
      %153 = dma.done [#allocation9], 16
    $region69: #{tpu_custom_call.1} parent=1 // pred_fallthru
      _
    // Predicated region
    $region70: #{tpu_custom_call.1} parent=1 // pred_check
      _
    $region71: #{tpu_custom_call.1} parent=1 // pred_check_branch
      %155 = sbr.rel (0) target = $region73
    $region72: #{tpu_custom_call.1} parent=1 // pred_region
      %156 = dma.done [#allocation12], 24576
    $region73: #{tpu_custom_call.1} parent=1 // pred_fallthru
      _
    // Predicated region
    $region74: #{tpu_custom_call.1} parent=1 // pred_check
      _
    $region75: #{tpu_custom_call.1} parent=1 // pred_check_branch
      %158 = sbr.rel (0) target = $region77
    $region76: #{tpu_custom_call.1} parent=1 // pred_region
      %159 = dma.done [#allocation12], 4096
    $region77: #{tpu_custom_call.1} parent=1 // pred_fallthru
      _
    // Predicated region
    $region78: #{tpu_custom_call.1} parent=1 // pred_check
      _
    $region79: #{tpu_custom_call.1} parent=1 // pred_check_branch
      %161 = sbr.rel (0) target = $region81
    $region80: #{tpu_custom_call.1} parent=1 // pred_region
      %162 = dma.done [#allocation15], 2048
    $region81: #{tpu_custom_call.1} parent=1 // pred_fallthru
      _
    // Predicated region
    $region82: #{tpu_custom_call.1} parent=1 // pred_check
      _
    $region83: #{tpu_custom_call.1} parent=1 // pred_check_branch
      %164 = sbr.rel (0) target = $region85
    $region84: #{tpu_custom_call.1} parent=1 // pred_region
      %165 = dma.done [#allocation15], 1024
    $region85: #{tpu_custom_call.1} parent=1 // pred_fallthru
      _
    %v167 = vld [vmem:[%s8] sm:$0x1]
    %v168 = vld [vmem:[%s8 + $0x1] sm:$0x1]
    %v169 = vld [vmem:[%s8 + $0x2] sm:$0x1]
    %v170 = vlaneseq
    %v171 = vshrl.u32 %v170, 7
    %v172 = vld [vmem:[#allocation5] sm:$0x1]
    %s173 = scalar_lea.vmem [#allocation5], 1
    %v174 = vld [vmem:[%s173] sm:$0x1]
    %vm175 = vcmp.eq.s32.totalorder %v171, 0
    %v176 = vsel %vm175, 1, 0
    %v177 = vcvt.s32.f32 %v176
    %v178 = vld [vmem:[#allocation2] sm:$0x1]
    %v179 = vld [vmem:[#allocation11] sm:$0xff]
    %v180 = vld [vmem:[#allocation11 + $0x8] sm:$0xff]
    %v181 = vld [vmem:[#allocation11 + $0x10] sm:$0xff]
    %v182 = vld [vmem:[#allocation11 + $0x18] sm:$0xff]
    %v183 = vld [vmem:[#allocation11 + $0x20] sm:$0xff]
    %v184 = vld [vmem:[#allocation11 + $0x28] sm:$0xff]
    %v185 = vld [vmem:[#allocation11 + $0x30] sm:$0xff]
    %v186 = vld [vmem:[#allocation11 + $0x38] sm:$0xff]
    %v187 = vld [vmem:[#allocation11 + $0x40] sm:$0xff]
    %v188 = vld [vmem:[#allocation11 + $0x48] sm:$0xff]
    %v189 = vld [vmem:[#allocation11 + $0x50] sm:$0xff]
    %v190 = vld [vmem:[#allocation11 + $0x58] sm:$0xff]
    %v191 = vld [vmem:[#allocation11 + $0x60] sm:$0xff]
    %v192 = vld [vmem:[#allocation11 + $0x68] sm:$0xff]
    %v193 = vld [vmem:[#allocation11 + $0x70] sm:$0xff]
    %v194 = vld [vmem:[#allocation11 + $0x78] sm:$0xff]
    %v195 = vld [vmem:[#allocation11 + $0x80] sm:$0xff]
    %v196 = vld [vmem:[#allocation11 + $0x88] sm:$0xff]
    %v197 = vld [vmem:[#allocation11 + $0x90] sm:$0xff]
    %v198 = vld [vmem:[#allocation11 + $0x98] sm:$0xff]
    %v199 = vld [vmem:[#allocation11 + $0xa0] sm:$0xff]
    %v200 = vld [vmem:[#allocation11 + $0xa8] sm:$0xff]
    %v201 = vld [vmem:[#allocation11 + $0xb0] sm:$0xff]
    %v202 = vld [vmem:[#allocation11 + $0xb8] sm:$0xff]
    %v203 = vld [vmem:[#allocation11 + $0xc0] sm:$0xff]
    %v204 = vld [vmem:[#allocation11 + $0xc8] sm:$0xff]
    %v205 = vld [vmem:[#allocation11 + $0xd0] sm:$0xff]
    %v206 = vld [vmem:[#allocation11 + $0xd8] sm:$0xff]
    %v207 = vld [vmem:[#allocation11 + $0xe0] sm:$0xff]
    %v208 = vld [vmem:[#allocation11 + $0xe8] sm:$0xff]
    %v209 = vld [vmem:[#allocation11 + $0xf0] sm:$0xff]
    %v210 = vld [vmem:[#allocation11 + $0xf8] sm:$0xff]
    %v211 = vld [vmem:[#allocation11 + $0x100] sm:$0xff]
    %v212 = vld [vmem:[#allocation11 + $0x108] sm:$0xff]
    %v213 = vld [vmem:[#allocation11 + $0x110] sm:$0xff]
    %v214 = vld [vmem:[#allocation11 + $0x118] sm:$0xff]
    %v215 = vld [vmem:[#allocation11 + $0x120] sm:$0xff]
    %v216 = vld [vmem:[#allocation11 + $0x128] sm:$0xff]
    %v217 = vld [vmem:[#allocation11 + $0x130] sm:$0xff]
    %v218 = vld [vmem:[#allocation11 + $0x138] sm:$0xff]
    %v219 = vld [vmem:[#allocation11 + $0x140] sm:$0xff]
    %v220 = vld [vmem:[#allocation11 + $0x148] sm:$0xff]
    %v221 = vld [vmem:[#allocation11 + $0x150] sm:$0xff]
    %v222 = vld [vmem:[#allocation11 + $0x158] sm:$0xff]
    %v223 = vld [vmem:[#allocation11 + $0x160] sm:$0xff]
    %v224 = vld [vmem:[#allocation11 + $0x168] sm:$0xff]
    %v225 = vld [vmem:[#allocation11 + $0x170] sm:$0xff]
    %v226 = vld [vmem:[#allocation11 + $0x178] sm:$0xff]
    %v227 = vld [vmem:[#allocation11 + $0x180] sm:$0xff]
    %v228 = vld [vmem:[#allocation11 + $0x188] sm:$0xff]
    %v229 = vld [vmem:[#allocation11 + $0x190] sm:$0xff]
    %v230 = vld [vmem:[#allocation11 + $0x198] sm:$0xff]
    %v231 = vld [vmem:[#allocation11 + $0x1a0] sm:$0xff]
    %v232 = vld [vmem:[#allocation11 + $0x1a8] sm:$0xff]
    %v233 = vld [vmem:[#allocation11 + $0x1b0] sm:$0xff]
    %v234 = vld [vmem:[#allocation11 + $0x1b8] sm:$0xff]
    %v235 = vld [vmem:[#allocation11 + $0x1c0] sm:$0xff]
    %v236 = vld [vmem:[#allocation11 + $0x1c8] sm:$0xff]
    %v237 = vld [vmem:[#allocation11 + $0x1d0] sm:$0xff]
    %v238 = vld [vmem:[#allocation11 + $0x1d8] sm:$0xff]
    %v239 = vld [vmem:[#allocation11 + $0x1e0] sm:$0xff]
    %v240 = vld [vmem:[#allocation11 + $0x1e8] sm:$0xff]
    %v241 = vld [vmem:[#allocation11 + $0x1f0] sm:$0xff]
    %v242 = vld [vmem:[#allocation11 + $0x1f8] sm:$0xff]
    %v243 = vld [vmem:[#allocation11 + $0x200] sm:$0xff]
    %v244 = vld [vmem:[#allocation11 + $0x208] sm:$0xff]
    %v245 = vld [vmem:[#allocation11 + $0x210] sm:$0xff]
    %v246 = vld [vmem:[#allocation11 + $0x218] sm:$0xff]
    %v247 = vld [vmem:[#allocation11 + $0x220] sm:$0xff]
    %v248 = vld [vmem:[#allocation11 + $0x228] sm:$0xff]
    %v249 = vld [vmem:[#allocation11 + $0x230] sm:$0xff]
    %v250 = vld [vmem:[#allocation11 + $0x238] sm:$0xff]
    %v251 = vld [vmem:[#allocation11 + $0x240] sm:$0xff]
    %v252 = vld [vmem:[#allocation11 + $0x248] sm:$0xff]
    %v253 = vld [vmem:[#allocation11 + $0x250] sm:$0xff]
    %v254 = vld [vmem:[#allocation11 + $0x258] sm:$0xff]
    %v255 = vld [vmem:[#allocation11 + $0x260] sm:$0xff]
    %v256 = vld [vmem:[#allocation11 + $0x268] sm:$0xff]
    %v257 = vld [vmem:[#allocation11 + $0x270] sm:$0xff]
    %v258 = vld [vmem:[#allocation11 + $0x278] sm:$0xff]
    %v259 = vld [vmem:[#allocation11 + $0x280] sm:$0xff]
    %v260 = vld [vmem:[#allocation11 + $0x288] sm:$0xff]
    %v261 = vld [vmem:[#allocation11 + $0x290] sm:$0xff]
    %v262 = vld [vmem:[#allocation11 + $0x298] sm:$0xff]
    %v263 = vld [vmem:[#allocation11 + $0x2a0] sm:$0xff]
    %v264 = vld [vmem:[#allocation11 + $0x2a8] sm:$0xff]
    %v265 = vld [vmem:[#allocation11 + $0x2b0] sm:$0xff]
    %v266 = vld [vmem:[#allocation11 + $0x2b8] sm:$0xff]
    %v267 = vld [vmem:[#allocation11 + $0x2c0] sm:$0xff]
    %v268 = vld [vmem:[#allocation11 + $0x2c8] sm:$0xff]
    %v269 = vld [vmem:[#allocation11 + $0x2d0] sm:$0xff]
    %v270 = vld [vmem:[#allocation11 + $0x2d8] sm:$0xff]
    %v271 = vld [vmem:[#allocation11 + $0x2e0] sm:$0xff]
    %v272 = vld [vmem:[#allocation11 + $0x2e8] sm:$0xff]
    %v273 = vld [vmem:[#allocation11 + $0x2f0] sm:$0xff]
    %v274 = vld [vmem:[#allocation11 + $0x2f8] sm:$0xff]
    %275 = vmatprep.subr.mxu0 %v225
    %276 = vmatpush1.msra.mxu0 %v224
    %277 = vmatprep.subr.mxu0 %v222
    %278 = vmatpush1.msra.mxu0 %v221
    %279 = vmatprep.subr.mxu0 %v219
    %280 = vmatpush1.msra.mxu0 %v218
    %281 = vmatprep.subr.mxu0 %v216
    %282 = vmatpush1.msra.mxu0 %v215
    %283 = vmatprep.subr.mxu0 %v213
    %284 = vmatpush1.msra.mxu0 %v212
    %285 = vmatprep.subr.mxu0 %v210
    %286 = vmatpush1.msra.mxu0 %v209
    %287 = vmatprep.subr.mxu0 %v207
    %288 = vmatpush1.msra.mxu0 %v206
    %289 = vmatprep.subr.mxu0 %v204
    %290 = vmatpush1.msra.mxu0 %v203
    %291 = vmatprep.subr.mxu0 %v201
    %292 = vmatpush1.msra.mxu0 %v200
    %293 = vmatprep.subr.mxu0 %v198
    %294 = vmatpush1.msra.mxu0 %v197
    %295 = vmatprep.subr.mxu0 %v195
    %296 = vmatpush1.msra.mxu0 %v194
    %297 = vmatprep.subr.mxu0 %v192
    %298 = vmatpush1.msra.mxu0 %v191
    %299 = vmatprep.subr.mxu0 %v189
    %300 = vmatpush1.msra.mxu0 %v188
    %301 = vmatprep.subr.mxu0 %v186
    %302 = vmatpush1.msra.mxu0 %v185
    %303 = vmatprep.subr.mxu0 %v183
    %304 = vmatpush1.msra.mxu0 %v182
    %305 = vmatprep.subr.mxu0 %v180
    %306 = vmatpush1.msra.mxu0 %v179
    %307 = vmatprep.subr.mxu0 %v273
    %308 = vmatpush2.msra.mxu0 %v272
    %309 = vmatprep.subr.mxu0 %v270
    %310 = vmatpush2.msra.mxu0 %v269
    %311 = vmatprep.subr.mxu0 %v267
    %312 = vmatpush2.msra.mxu0 %v266
    %313 = vmatprep.subr.mxu0 %v264
    %314 = vmatpush2.msra.mxu0 %v263
    %315 = vmatprep.subr.mxu0 %v261
    %316 = vmatpush2.msra.mxu0 %v260
    %317 = vmatprep.subr.mxu0 %v258
    %318 = vmatpush2.msra.mxu0 %v257
    %319 = vmatprep.subr.mxu0 %v255
    %320 = vmatpush2.msra.mxu0 %v254
    %321 = vmatprep.subr.mxu0 %v252
    %322 = vmatpush2.msra.mxu0 %v251
    %323 = vmatprep.subr.mxu0 %v249
    %324 = vmatpush2.msra.mxu0 %v248
    %325 = vmatprep.subr.mxu0 %v246
    %326 = vmatpush2.msra.mxu0 %v245
    %327 = vmatprep.subr.mxu0 %v243
    %328 = vmatpush2.msra.mxu0 %v242
    %329 = vmatprep.subr.mxu0 %v240
    %330 = vmatpush2.msra.mxu0 %v239
    %331 = vmatprep.subr.mxu0 %v237
    %332 = vmatpush2.msra.mxu0 %v236
    %333 = vmatprep.subr.mxu0 %v234
    %334 = vmatpush2.msra.mxu0 %v233
    %335 = vmatprep.subr.mxu0 %v231
    %336 = vmatpush2.msra.mxu0 %v230
    %337 = vmatprep.subr.mxu0 %v228
    %338 = vmatpush2.msra.mxu0 %v227
    %339 = vmatprep.mubr.f32.mxu0 %v172
    %340 = vmatmul.mubr.f32.gmra.mxu0 %v178
    %v341 = vpop.f32.mrf.mxu0
    %v342 = vadd.f32 0.0, %v341
    %v343 = vpop.f32.mrf.mxu0
    %v344 = vadd.f32 0.0, %v343
    %345 = vdwg.mxu0
    %346 = vmatprep.subr.mxu0 0.0
    %347 = vmatpush1.msra.mxu0 %v226
    %348 = vmatprep.subr.mxu0 0.0
    %349 = vmatpush1.msra.mxu0 %v223
    %350 = vmatprep.subr.mxu0 0.0
    %351 = vmatpush1.msra.mxu0 %v220
    %352 = vmatprep.subr.mxu0 0.0
    %353 = vmatpush1.msra.mxu0 %v217
    %354 = vmatprep.subr.mxu0 0.0
    %355 = vmatpush1.msra.mxu0 %v214
    %356 = vmatprep.subr.mxu0 0.0
    %357 = vmatpush1.msra.mxu0 %v211
    %358 = vmatprep.subr.mxu0 0.0
    %359 = vmatpush1.msra.mxu0 %v208
    %360 = vmatprep.subr.mxu0 0.0
    %361 = vmatpush1.msra.mxu0 %v205
    %362 = vmatprep.subr.mxu0 0.0
    %363 = vmatpush1.msra.mxu0 %v202
    %364 = vmatprep.subr.mxu0 0.0
    %365 = vmatpush1.msra.mxu0 %v199
    %366 = vmatprep.subr.mxu0 0.0
    %367 = vmatpush1.msra.mxu0 %v196
    %368 = vmatprep.subr.mxu0 0.0
    %369 = vmatpush1.msra.mxu0 %v193
    %370 = vmatprep.subr.mxu0 0.0
    %371 = vmatpush1.msra.mxu0 %v190
    %372 = vmatprep.subr.mxu0 0.0
    %373 = vmatpush1.msra.mxu0 %v187
    %374 = vmatprep.subr.mxu0 0.0
    %375 = vmatpush1.msra.mxu0 %v184
    %376 = vmatprep.subr.mxu0 0.0
    %377 = vmatpush1.msra.mxu0 %v181
    %378 = vmatprep.subr.mxu0 0.0
    %379 = vmatpush2.msra.mxu0 %v274
    %380 = vmatprep.subr.mxu0 0.0
    %381 = vmatpush2.msra.mxu0 %v271
    %382 = vmatprep.subr.mxu0 0.0
    %383 = vmatpush2.msra.mxu0 %v268
    %384 = vmatprep.subr.mxu0 0.0
    %385 = vmatpush2.msra.mxu0 %v265
    %386 = vmatprep.subr.mxu0 0.0
    %387 = vmatpush2.msra.mxu0 %v262
    %388 = vmatprep.subr.mxu0 0.0
    %389 = vmatpush2.msra.mxu0 %v259
    %390 = vmatprep.subr.mxu0 0.0
    %391 = vmatpush2.msra.mxu0 %v256
    %392 = vmatprep.subr.mxu0 0.0
    %393 = vmatpush2.msra.mxu0 %v253
    %394 = vmatprep.subr.mxu0 0.0
    %395 = vmatpush2.msra.mxu0 %v250
    %396 = vmatprep.subr.mxu0 0.0
    %397 = vmatpush2.msra.mxu0 %v247
    %398 = vmatprep.subr.mxu0 0.0
    %399 = vmatpush2.msra.mxu0 %v244
    %400 = vmatprep.subr.mxu0 0.0
    %401 = vmatpush2.msra.mxu0 %v241
    %402 = vmatprep.subr.mxu0 0.0
    %403 = vmatpush2.msra.mxu0 %v238
    %404 = vmatprep.subr.mxu0 0.0
    %405 = vmatpush2.msra.mxu0 %v235
    %406 = vmatprep.subr.mxu0 0.0
    %407 = vmatpush2.msra.mxu0 %v232
    %408 = vmatprep.subr.mxu0 0.0
    %409 = vmatpush2.msra.mxu0 %v229
    %410 = vmatprep.mubr.f32.mxu0 %v172
    %411 = vmatmul.mubr.f32.gmra.mxu0 %v178
    %v412 = vpop.f32.mrf.mxu0
    %v413 = vadd.f32 0.0, %v412
    %v414 = vpop.f32.mrf.mxu0
    %415 = vdwg.mxu0
    %v416 = vld [vmem:[#allocation13] sm:$0xff]
    %v417 = vld [vmem:[#allocation13 + $0x8] sm:$0xff]
    %v418 = vld [vmem:[#allocation13 + $0x10] sm:$0xff]
    %v419 = vld [vmem:[#allocation13 + $0x18] sm:$0xff]
    %v420 = vld [vmem:[#allocation13 + $0x20] sm:$0xff]
    %v421 = vld [vmem:[#allocation13 + $0x28] sm:$0xff]
    %v422 = vld [vmem:[#allocation13 + $0x30] sm:$0xff]
    %v423 = vld [vmem:[#allocation13 + $0x38] sm:$0xff]
    %v424 = vld [vmem:[#allocation13 + $0x40] sm:$0xff]
    %v425 = vld [vmem:[#allocation13 + $0x48] sm:$0xff]
    %v426 = vld [vmem:[#allocation13 + $0x50] sm:$0xff]
    %v427 = vld [vmem:[#allocation13 + $0x58] sm:$0xff]
    %v428 = vld [vmem:[#allocation13 + $0x60] sm:$0xff]
    %v429 = vld [vmem:[#allocation13 + $0x68] sm:$0xff]
    %v430 = vld [vmem:[#allocation13 + $0x70] sm:$0xff]
    %v431 = vld [vmem:[#allocation13 + $0x78] sm:$0xff]
    %v432 = vld [vmem:[%s7] sm:$0xf]
    %v433 = vadd.f32 %v342, %v432
    %v434 = vxor.u32 %v433, 2147483648
    %v435 = vmul.f32 %v434, 1.442695
    %v436 = vpow.pop %v435
    %v437 = vadd.f32 %v436, 1.0
    %v438 = vrcp.pop %v437
    %v439 = vmul.f32 1.0, %v438
    %v441 = vlaneseq
    %v442 = vshrl.u32 %v441, 7
    %v443 = vsub.s32 1, %v442
    %v444 = vrot.slane %v432, %v443
    %v446 = vadd.f32 %v344, %v444
    %v447 = vxor.u32 %v446, 2147483648
    %v448 = vmul.f32 %v447, 1.442695
    %v449 = vpow.pop %v448
    %v450 = vadd.f32 %v449, 1.0
    %v451 = vrcp.pop %v450
    %v452 = vmul.f32 1.0, %v451
    %v453 = vlaneseq
    %v454 = vshrl.u32 %v453, 7
    %v455 = vsub.s32 2, %v454
    %v456 = vrot.slane %v432, %v455
    %v458 = vadd.f32 %v413, %v456
    %v459 = vlaneseq
    %v460 = vshrl.u32 %v459, 7
    %v461 = vsub.s32 3, %v460
    %v462 = vrot.slane %v432, %v461
    %464 = vmatprep.subr.mxu0 0.0
    %465 = vmatpush1.msra.mxu0 %v431
    %466 = vmatprep.subr.mxu0 0.0
    %467 = vmatpush1.msra.mxu0 %v430
    %468 = vmatprep.subr.mxu0 0.0
    %469 = vmatpush1.msra.mxu0 %v429
    %470 = vmatprep.subr.mxu0 0.0
    %471 = vmatpush1.msra.mxu0 %v428
    %472 = vmatprep.subr.mxu0 0.0
    %473 = vmatpush1.msra.mxu0 %v427
    %474 = vmatprep.subr.mxu0 0.0
    %475 = vmatpush1.msra.mxu0 %v426
    %476 = vmatprep.subr.mxu0 0.0
    %477 = vmatpush1.msra.mxu0 %v425
    %478 = vmatprep.subr.mxu0 0.0
    %479 = vmatpush1.msra.mxu0 %v424
    %480 = vmatprep.subr.mxu0 0.0
    %481 = vmatpush1.msra.mxu0 %v423
    %482 = vmatprep.subr.mxu0 0.0
    %483 = vmatpush1.msra.mxu0 %v422
    %484 = vmatprep.subr.mxu0 0.0
    %485 = vmatpush1.msra.mxu0 %v421
    %486 = vmatprep.subr.mxu0 0.0
    %487 = vmatpush1.msra.mxu0 %v420
    %488 = vmatprep.subr.mxu0 0.0
    %489 = vmatpush1.msra.mxu0 %v419
    %490 = vmatprep.subr.mxu0 0.0
    %491 = vmatpush1.msra.mxu0 %v418
    %492 = vmatprep.subr.mxu0 0.0
    %493 = vmatpush1.msra.mxu0 %v417
    %494 = vmatprep.subr.mxu0 0.0
    %495 = vmatpush1.msra.mxu0 %v416
    %496 = vmatprep.subr.mxu0 0.0
    %497 = vmatpush2.msra.mxu0 0.0
    %498 = vmatprep.subr.mxu0 0.0
    %499 = vmatpush2.msra.mxu0 0.0
    %500 = vmatprep.subr.mxu0 0.0
    %501 = vmatpush2.msra.mxu0 0.0
    %502 = vmatprep.subr.mxu0 0.0
    %503 = vmatpush2.msra.mxu0 0.0
    %504 = vmatprep.subr.mxu0 0.0
    %505 = vmatpush2.msra.mxu0 0.0
    %506 = vmatprep.subr.mxu0 0.0
    %507 = vmatpush2.msra.mxu0 0.0
    %508 = vmatprep.subr.mxu0 0.0
    %509 = vmatpush2.msra.mxu0 0.0
    %510 = vmatprep.subr.mxu0 0.0
    %511 = vmatpush2.msra.mxu0 0.0
    %512 = vmatprep.subr.mxu0 0.0
    %513 = vmatpush2.msra.mxu0 0.0
    %514 = vmatprep.subr.mxu0 0.0
    %515 = vmatpush2.msra.mxu0 0.0
    %516 = vmatprep.subr.mxu0 0.0
    %517 = vmatpush2.msra.mxu0 0.0
    %518 = vmatprep.subr.mxu0 0.0
    %519 = vmatpush2.msra.mxu0 0.0
    %520 = vmatprep.subr.mxu0 0.0
    %521 = vmatpush2.msra.mxu0 0.0
    %522 = vmatprep.subr.mxu0 0.0
    %523 = vmatpush2.msra.mxu0 0.0
    %524 = vmatprep.subr.mxu0 0.0
    %525 = vmatpush2.msra.mxu0 0.0
    %526 = vmatprep.subr.mxu0 0.0
    %527 = vmatpush2.msra.mxu0 0.0
    %528 = vmatprep.mubr.f32.mxu0 0.0
    %529 = vmatmul.mubr.f32.gmra.mxu0 %v172
    %v530 = vpop.f32.mrf.mxu0
    %v531 = vadd.f32 %v462, %v530
    %v532 = vpop.f32.mrf.mxu0
    %533 = vdwg.mxu0
    %v534 = vmul.f32 %v439, %v531
    %v535 = vadd.f32 %v458, %v534
    %v536 = vtanh.pop %v535
    %v537 = vsub.f32 1.0, %v452
    %v538 = vmul.f32 %v537, %v536
    %v539 = vmul.f32 %v452, %v172
    %v540 = vadd.f32 %v538, %v539
    %v541 = vlaneseq
    %v542 = vshrl.u32 %v541, 7
    %v543 = vsub.s32 0, %v542
    %v544 = vrot.slane %v540, %v543
    %v545 = vmul.f32 %v177, %v544
    %v546 = vadd.f32 %v545, 0.0
    %s547 = scalar_lea.vmem [#allocation11], 768
    %v548 = vld [vmem:[%s547] sm:$0xff]
    %v549 = vld [vmem:[%s547 + $0x8] sm:$0xff]
    %v550 = vld [vmem:[%s547 + $0x10] sm:$0xff]
    %v551 = vld [vmem:[%s547 + $0x18] sm:$0xff]
    %v552 = vld [vmem:[%s547 + $0x20] sm:$0xff]
    %v553 = vld [vmem:[%s547 + $0x28] sm:$0xff]
    %v554 = vld [vmem:[%s547 + $0x30] sm:$0xff]
    %v555 = vld [vmem:[%s547 + $0x38] sm:$0xff]
    %v556 = vld [vmem:[%s547 + $0x40] sm:$0xff]
    %v557 = vld [vmem:[%s547 + $0x48] sm:$0xff]
    %v558 = vld [vmem:[%s547 + $0x50] sm:$0xff]
    %v559 = vld [vmem:[%s547 + $0x58] sm:$0xff]
    %v560 = vld [vmem:[%s547 + $0x60] sm:$0xff]
    %v561 = vld [vmem:[%s547 + $0x68] sm:$0xff]
    %v562 = vld [vmem:[%s547 + $0x70] sm:$0xff]
    %v563 = vld [vmem:[%s547 + $0x78] sm:$0xff]
    %v564 = vld [vmem:[%s547 + $0x80] sm:$0xff]
    %v565 = vld [vmem:[%s547 + $0x88] sm:$0xff]
    %v566 = vld [vmem:[%s547 + $0x90] sm:$0xff]
    %v567 = vld [vmem:[%s547 + $0x98] sm:$0xff]
    %v568 = vld [vmem:[%s547 + $0xa0] sm:$0xff]
    %v569 = vld [vmem:[%s547 + $0xa8] sm:$0xff]
    %v570 = vld [vmem:[%s547 + $0xb0] sm:$0xff]
    %v571 = vld [vmem:[%s547 + $0xb8] sm:$0xff]
    %v572 = vld [vmem:[%s547 + $0xc0] sm:$0xff]
    %v573 = vld [vmem:[%s547 + $0xc8] sm:$0xff]
    %v574 = vld [vmem:[%s547 + $0xd0] sm:$0xff]
    %v575 = vld [vmem:[%s547 + $0xd8] sm:$0xff]
    %v576 = vld [vmem:[%s547 + $0xe0] sm:$0xff]
    %v577 = vld [vmem:[%s547 + $0xe8] sm:$0xff]
    %v578 = vld [vmem:[%s547 + $0xf0] sm:$0xff]
    %v579 = vld [vmem:[%s547 + $0xf8] sm:$0xff]
    %v580 = vld [vmem:[%s547 + $0x100] sm:$0xff]
    %v581 = vld [vmem:[%s547 + $0x108] sm:$0xff]
    %v582 = vld [vmem:[%s547 + $0x110] sm:$0xff]
    %v583 = vld [vmem:[%s547 + $0x118] sm:$0xff]
    %v584 = vld [vmem:[%s547 + $0x120] sm:$0xff]
    %v585 = vld [vmem:[%s547 + $0x128] sm:$0xff]
    %v586 = vld [vmem:[%s547 + $0x130] sm:$0xff]
    %v587 = vld [vmem:[%s547 + $0x138] sm:$0xff]
    %v588 = vld [vmem:[%s547 + $0x140] sm:$0xff]
    %v589 = vld [vmem:[%s547 + $0x148] sm:$0xff]
    %v590 = vld [vmem:[%s547 + $0x150] sm:$0xff]
    %v591 = vld [vmem:[%s547 + $0x158] sm:$0xff]
    %v592 = vld [vmem:[%s547 + $0x160] sm:$0xff]
    %v593 = vld [vmem:[%s547 + $0x168] sm:$0xff]
    %v594 = vld [vmem:[%s547 + $0x170] sm:$0xff]
    %v595 = vld [vmem:[%s547 + $0x178] sm:$0xff]
    %v596 = vld [vmem:[%s547 + $0x180] sm:$0xff]
    %v597 = vld [vmem:[%s547 + $0x188] sm:$0xff]
    %v598 = vld [vmem:[%s547 + $0x190] sm:$0xff]
    %v599 = vld [vmem:[%s547 + $0x198] sm:$0xff]
    %v600 = vld [vmem:[%s547 + $0x1a0] sm:$0xff]
    %v601 = vld [vmem:[%s547 + $0x1a8] sm:$0xff]
    %v602 = vld [vmem:[%s547 + $0x1b0] sm:$0xff]
    %v603 = vld [vmem:[%s547 + $0x1b8] sm:$0xff]
    %v604 = vld [vmem:[%s547 + $0x1c0] sm:$0xff]
    %v605 = vld [vmem:[%s547 + $0x1c8] sm:$0xff]
    %v606 = vld [vmem:[%s547 + $0x1d0] sm:$0xff]
    %v607 = vld [vmem:[%s547 + $0x1d8] sm:$0xff]
    %v608 = vld [vmem:[%s547 + $0x1e0] sm:$0xff]
    %v609 = vld [vmem:[%s547 + $0x1e8] sm:$0xff]
    %v610 = vld [vmem:[%s547 + $0x1f0] sm:$0xff]
    %v611 = vld [vmem:[%s547 + $0x1f8] sm:$0xff]
    %v612 = vld [vmem:[%s547 + $0x200] sm:$0xff]
    %v613 = vld [vmem:[%s547 + $0x208] sm:$0xff]
    %v614 = vld [vmem:[%s547 + $0x210] sm:$0xff]
    %v615 = vld [vmem:[%s547 + $0x218] sm:$0xff]
    %v616 = vld [vmem:[%s547 + $0x220] sm:$0xff]
    %v617 = vld [vmem:[%s547 + $0x228] sm:$0xff]
    %v618 = vld [vmem:[%s547 + $0x230] sm:$0xff]
    %v619 = vld [vmem:[%s547 + $0x238] sm:$0xff]
    %v620 = vld [vmem:[%s547 + $0x240] sm:$0xff]
    %v621 = vld [vmem:[%s547 + $0x248] sm:$0xff]
    %v622 = vld [vmem:[%s547 + $0x250] sm:$0xff]
    %v623 = vld [vmem:[%s547 + $0x258] sm:$0xff]
    %v624 = vld [vmem:[%s547 + $0x260] sm:$0xff]
    %v625 = vld [vmem:[%s547 + $0x268] sm:$0xff]
    %v626 = vld [vmem:[%s547 + $0x270] sm:$0xff]
    %v627 = vld [vmem:[%s547 + $0x278] sm:$0xff]
    %v628 = vld [vmem:[%s547 + $0x280] sm:$0xff]
    %v629 = vld [vmem:[%s547 + $0x288] sm:$0xff]
    %v630 = vld [vmem:[%s547 + $0x290] sm:$0xff]
    %v631 = vld [vmem:[%s547 + $0x298] sm:$0xff]
    %v632 = vld [vmem:[%s547 + $0x2a0] sm:$0xff]
    %v633 = vld [vmem:[%s547 + $0x2a8] sm:$0xff]
    %v634 = vld [vmem:[%s547 + $0x2b0] sm:$0xff]
    %v635 = vld [vmem:[%s547 + $0x2b8] sm:$0xff]
    %v636 = vld [vmem:[%s547 + $0x2c0] sm:$0xff]
    %v637 = vld [vmem:[%s547 + $0x2c8] sm:$0xff]
    %v638 = vld [vmem:[%s547 + $0x2d0] sm:$0xff]
    %v639 = vld [vmem:[%s547 + $0x2d8] sm:$0xff]
    %v640 = vld [vmem:[%s547 + $0x2e0] sm:$0xff]
    %v641 = vld [vmem:[%s547 + $0x2e8] sm:$0xff]
    %v642 = vld [vmem:[%s547 + $0x2f0] sm:$0xff]
    %v643 = vld [vmem:[%s547 + $0x2f8] sm:$0xff]
    %644 = vmatprep.subr.mxu0 %v594
    %645 = vmatpush1.msra.mxu0 %v593
    %646 = vmatprep.subr.mxu0 %v591
    %647 = vmatpush1.msra.mxu0 %v590
    %648 = vmatprep.subr.mxu0 %v588
    %649 = vmatpush1.msra.mxu0 %v587
    %650 = vmatprep.subr.mxu0 %v585
    %651 = vmatpush1.msra.mxu0 %v584
    %652 = vmatprep.subr.mxu0 %v582
    %653 = vmatpush1.msra.mxu0 %v581
    %654 = vmatprep.subr.mxu0 %v579
    %655 = vmatpush1.msra.mxu0 %v578
    %656 = vmatprep.subr.mxu0 %v576
    %657 = vmatpush1.msra.mxu0 %v575
    %658 = vmatprep.subr.mxu0 %v573
    %659 = vmatpush1.msra.mxu0 %v572
    %660 = vmatprep.subr.mxu0 %v570
    %661 = vmatpush1.msra.mxu0 %v569
    %662 = vmatprep.subr.mxu0 %v567
    %663 = vmatpush1.msra.mxu0 %v566
    %664 = vmatprep.subr.mxu0 %v564
    %665 = vmatpush1.msra.mxu0 %v563
    %666 = vmatprep.subr.mxu0 %v561
    %667 = vmatpush1.msra.mxu0 %v560
    %668 = vmatprep.subr.mxu0 %v558
    %669 = vmatpush1.msra.mxu0 %v557
    %670 = vmatprep.subr.mxu0 %v555
    %671 = vmatpush1.msra.mxu0 %v554
    %672 = vmatprep.subr.mxu0 %v552
    %673 = vmatpush1.msra.mxu0 %v551
    %674 = vmatprep.subr.mxu0 %v549
    %675 = vmatpush1.msra.mxu0 %v548
    %676 = vmatprep.subr.mxu0 %v642
    %677 = vmatpush2.msra.mxu0 %v641
    %678 = vmatprep.subr.mxu0 %v639
    %679 = vmatpush2.msra.mxu0 %v638
    %680 = vmatprep.subr.mxu0 %v636
    %681 = vmatpush2.msra.mxu0 %v635
    %682 = vmatprep.subr.mxu0 %v633
    %683 = vmatpush2.msra.mxu0 %v632
    %684 = vmatprep.subr.mxu0 %v630
    %685 = vmatpush2.msra.mxu0 %v629
    %686 = vmatprep.subr.mxu0 %v627
    %687 = vmatpush2.msra.mxu0 %v626
    %688 = vmatprep.subr.mxu0 %v624
    %689 = vmatpush2.msra.mxu0 %v623
    %690 = vmatprep.subr.mxu0 %v621
    %691 = vmatpush2.msra.mxu0 %v620
    %692 = vmatprep.subr.mxu0 %v618
    %693 = vmatpush2.msra.mxu0 %v617
    %694 = vmatprep.subr.mxu0 %v615
    %695 = vmatpush2.msra.mxu0 %v614
    %696 = vmatprep.subr.mxu0 %v612
    %697 = vmatpush2.msra.mxu0 %v611
    %698 = vmatprep.subr.mxu0 %v609
    %699 = vmatpush2.msra.mxu0 %v608
    %700 = vmatprep.subr.mxu0 %v606
    %701 = vmatpush2.msra.mxu0 %v605
    %702 = vmatprep.subr.mxu0 %v603
    %703 = vmatpush2.msra.mxu0 %v602
    %704 = vmatprep.subr.mxu0 %v600
    %705 = vmatpush2.msra.mxu0 %v599
    %706 = vmatprep.subr.mxu0 %v597
    %707 = vmatpush2.msra.mxu0 %v596
    %708 = vmatprep.mubr.f32.mxu0 %v174
    %709 = vmatmul.mubr.f32.gmra.mxu0 %v540
    %v710 = vpop.f32.mrf.mxu0
    %v711 = vadd.f32 0.0, %v710
    %v712 = vpop.f32.mrf.mxu0
    %v713 = vadd.f32 0.0, %v712
    %714 = vdwg.mxu0
    %715 = vmatprep.subr.mxu0 0.0
    %716 = vmatpush1.msra.mxu0 %v595
    %717 = vmatprep.subr.mxu0 0.0
    %718 = vmatpush1.msra.mxu0 %v592
    %719 = vmatprep.subr.mxu0 0.0
    %720 = vmatpush1.msra.mxu0 %v589
    %721 = vmatprep.subr.mxu0 0.0
    %722 = vmatpush1.msra.mxu0 %v586
    %723 = vmatprep.subr.mxu0 0.0
    %724 = vmatpush1.msra.mxu0 %v583
    %725 = vmatprep.subr.mxu0 0.0
    %726 = vmatpush1.msra.mxu0 %v580
    %727 = vmatprep.subr.mxu0 0.0
    %728 = vmatpush1.msra.mxu0 %v577
    %729 = vmatprep.subr.mxu0 0.0
    %730 = vmatpush1.msra.mxu0 %v574
    %731 = vmatprep.subr.mxu0 0.0
    %732 = vmatpush1.msra.mxu0 %v571
    %733 = vmatprep.subr.mxu0 0.0
    %734 = vmatpush1.msra.mxu0 %v568
    %735 = vmatprep.subr.mxu0 0.0
    %736 = vmatpush1.msra.mxu0 %v565
    %737 = vmatprep.subr.mxu0 0.0
    %738 = vmatpush1.msra.mxu0 %v562
    %739 = vmatprep.subr.mxu0 0.0
    %740 = vmatpush1.msra.mxu0 %v559
    %741 = vmatprep.subr.mxu0 0.0
    %742 = vmatpush1.msra.mxu0 %v556
    %743 = vmatprep.subr.mxu0 0.0
    %744 = vmatpush1.msra.mxu0 %v553
    %745 = vmatprep.subr.mxu0 0.0
    %746 = vmatpush1.msra.mxu0 %v550
    %747 = vmatprep.subr.mxu0 0.0
    %748 = vmatpush2.msra.mxu0 %v643
    %749 = vmatprep.subr.mxu0 0.0
    %750 = vmatpush2.msra.mxu0 %v640
    %751 = vmatprep.subr.mxu0 0.0
    %752 = vmatpush2.msra.mxu0 %v637
    %753 = vmatprep.subr.mxu0 0.0
    %754 = vmatpush2.msra.mxu0 %v634
    %755 = vmatprep.subr.mxu0 0.0
    %756 = vmatpush2.msra.mxu0 %v631
    %757 = vmatprep.subr.mxu0 0.0
    %758 = vmatpush2.msra.mxu0 %v628
    %759 = vmatprep.subr.mxu0 0.0
    %760 = vmatpush2.msra.mxu0 %v625
    %761 = vmatprep.subr.mxu0 0.0
    %762 = vmatpush2.msra.mxu0 %v622
    %763 = vmatprep.subr.mxu0 0.0
    %764 = vmatpush2.msra.mxu0 %v619
    %765 = vmatprep.subr.mxu0 0.0
    %766 = vmatpush2.msra.mxu0 %v616
    %767 = vmatprep.subr.mxu0 0.0
    %768 = vmatpush2.msra.mxu0 %v613
    %769 = vmatprep.subr.mxu0 0.0
    %770 = vmatpush2.msra.mxu0 %v610
    %771 = vmatprep.subr.mxu0 0.0
    %772 = vmatpush2.msra.mxu0 %v607
    %773 = vmatprep.subr.mxu0 0.0
    %774 = vmatpush2.msra.mxu0 %v604
    %775 = vmatprep.subr.mxu0 0.0
    %776 = vmatpush2.msra.mxu0 %v601
    %777 = vmatprep.subr.mxu0 0.0
    %778 = vmatpush2.msra.mxu0 %v598
    %779 = vmatprep.mubr.f32.mxu0 %v174
    %780 = vmatmul.mubr.f32.gmra.mxu0 %v540
    %v781 = vpop.f32.mrf.mxu0
    %v782 = vadd.f32 0.0, %v781
    %v783 = vpop.f32.mrf.mxu0
    %784 = vdwg.mxu0
    %s785 = scalar_lea.vmem [#allocation13], 128
    %v786 = vld [vmem:[%s785] sm:$0xff]
    %v787 = vld [vmem:[%s785 + $0x8] sm:$0xff]
    %v788 = vld [vmem:[%s785 + $0x10] sm:$0xff]
    %v789 = vld [vmem:[%s785 + $0x18] sm:$0xff]
    %v790 = vld [vmem:[%s785 + $0x20] sm:$0xff]
    %v791 = vld [vmem:[%s785 + $0x28] sm:$0xff]
    %v792 = vld [vmem:[%s785 + $0x30] sm:$0xff]
    %v793 = vld [vmem:[%s785 + $0x38] sm:$0xff]
    %v794 = vld [vmem:[%s785 + $0x40] sm:$0xff]
    %v795 = vld [vmem:[%s785 + $0x48] sm:$0xff]
    %v796 = vld [vmem:[%s785 + $0x50] sm:$0xff]
    %v797 = vld [vmem:[%s785 + $0x58] sm:$0xff]
    %v798 = vld [vmem:[%s785 + $0x60] sm:$0xff]
    %v799 = vld [vmem:[%s785 + $0x68] sm:$0xff]
    %v800 = vld [vmem:[%s785 + $0x70] sm:$0xff]
    %v801 = vld [vmem:[%s785 + $0x78] sm:$0xff]
    %s802 = scalar_lea.vmem %s7, 4
    %v803 = vld [vmem:[%s802] sm:$0xf]
    %v804 = vadd.f32 %v711, %v803
    %v805 = vxor.u32 %v804, 2147483648
    %v806 = vmul.f32 %v805, 1.442695
    %v807 = vpow.pop %v806
    %v808 = vadd.f32 %v807, 1.0
    %v809 = vrcp.pop %v808
    %v810 = vmul.f32 1.0, %v809
    %v812 = vlaneseq
    %v813 = vshrl.u32 %v812, 7
    %v814 = vsub.s32 1, %v813
    %v815 = vrot.slane %v803, %v814
    %v817 = vadd.f32 %v713, %v815
    %v818 = vxor.u32 %v817, 2147483648
    %v819 = vmul.f32 %v818, 1.442695
    %v820 = vpow.pop %v819
    %v821 = vadd.f32 %v820, 1.0
    %v822 = vrcp.pop %v821
    %v823 = vmul.f32 1.0, %v822
    %v824 = vlaneseq
    %v825 = vshrl.u32 %v824, 7
    %v826 = vsub.s32 2, %v825
    %v827 = vrot.slane %v803, %v826
    %v829 = vadd.f32 %v782, %v827
    %v830 = vlaneseq
    %v831 = vshrl.u32 %v830, 7
    %v832 = vsub.s32 3, %v831
    %v833 = vrot.slane %v803, %v832
    %835 = vmatprep.subr.mxu0 0.0
    %836 = vmatpush1.msra.mxu0 %v801
    %837 = vmatprep.subr.mxu0 0.0
    %838 = vmatpush1.msra.mxu0 %v800
    %839 = vmatprep.subr.mxu0 0.0
    %840 = vmatpush1.msra.mxu0 %v799
    %841 = vmatprep.subr.mxu0 0.0
    %842 = vmatpush1.msra.mxu0 %v798
    %843 = vmatprep.subr.mxu0 0.0
    %844 = vmatpush1.msra.mxu0 %v797
    %845 = vmatprep.subr.mxu0 0.0
    %846 = vmatpush1.msra.mxu0 %v796
    %847 = vmatprep.subr.mxu0 0.0
    %848 = vmatpush1.msra.mxu0 %v795
    %849 = vmatprep.subr.mxu0 0.0
    %850 = vmatpush1.msra.mxu0 %v794
    %851 = vmatprep.subr.mxu0 0.0
    %852 = vmatpush1.msra.mxu0 %v793
    %853 = vmatprep.subr.mxu0 0.0
    %854 = vmatpush1.msra.mxu0 %v792
    %855 = vmatprep.subr.mxu0 0.0
    %856 = vmatpush1.msra.mxu0 %v791
    %857 = vmatprep.subr.mxu0 0.0
    %858 = vmatpush1.msra.mxu0 %v790
    %859 = vmatprep.subr.mxu0 0.0
    %860 = vmatpush1.msra.mxu0 %v789
    %861 = vmatprep.subr.mxu0 0.0
    %862 = vmatpush1.msra.mxu0 %v788
    %863 = vmatprep.subr.mxu0 0.0
    %864 = vmatpush1.msra.mxu0 %v787
    %865 = vmatprep.subr.mxu0 0.0
    %866 = vmatpush1.msra.mxu0 %v786
    %867 = vmatprep.subr.mxu0 0.0
    %868 = vmatpush2.msra.mxu0 0.0
    %869 = vmatprep.subr.mxu0 0.0
    %870 = vmatpush2.msra.mxu0 0.0
    %871 = vmatprep.subr.mxu0 0.0
    %872 = vmatpush2.msra.mxu0 0.0
    %873 = vmatprep.subr.mxu0 0.0
    %874 = vmatpush2.msra.mxu0 0.0
    %875 = vmatprep.subr.mxu0 0.0
    %876 = vmatpush2.msra.mxu0 0.0
    %877 = vmatprep.subr.mxu0 0.0
    %878 = vmatpush2.msra.mxu0 0.0
    %879 = vmatprep.subr.mxu0 0.0
    %880 = vmatpush2.msra.mxu0 0.0
    %881 = vmatprep.subr.mxu0 0.0
    %882 = vmatpush2.msra.mxu0 0.0
    %883 = vmatprep.subr.mxu0 0.0
    %884 = vmatpush2.msra.mxu0 0.0
    %885 = vmatprep.subr.mxu0 0.0
    %886 = vmatpush2.msra.mxu0 0.0
    %887 = vmatprep.subr.mxu0 0.0
    %888 = vmatpush2.msra.mxu0 0.0
    %889 = vmatprep.subr.mxu0 0.0
    %890 = vmatpush2.msra.mxu0 0.0
    %891 = vmatprep.subr.mxu0 0.0
    %892 = vmatpush2.msra.mxu0 0.0
    %893 = vmatprep.subr.mxu0 0.0
    %894 = vmatpush2.msra.mxu0 0.0
    %895 = vmatprep.subr.mxu0 0.0
    %896 = vmatpush2.msra.mxu0 0.0
    %897 = vmatprep.subr.mxu0 0.0
    %898 = vmatpush2.msra.mxu0 0.0
    %899 = vmatprep.mubr.f32.mxu0 0.0
    %900 = vmatmul.mubr.f32.gmra.mxu0 %v174
    %v901 = vpop.f32.mrf.mxu0
    %v902 = vadd.f32 %v833, %v901
    %v903 = vpop.f32.mrf.mxu0
    %904 = vdwg.mxu0
    %v905 = vmul.f32 %v810, %v902
    %v906 = vadd.f32 %v829, %v905
    %v907 = vtanh.pop %v906
    %v908 = vsub.f32 1.0, %v823
    %v909 = vmul.f32 %v908, %v907
    %v910 = vmul.f32 %v823, %v174
    %v911 = vadd.f32 %v909, %v910
    %v912 = vlaneseq
    %v913 = vshrl.u32 %v912, 7
    %v914 = vsub.s32 0, %v913
    %v915 = vrot.slane %v911, %v914
    %v916 = vmul.f32 %v177, %v915
    %v917 = vadd.f32 %v916, 0.0
    %v918 = vld [vmem:[#allocation8] sm:$0xff]
    %v919 = vld [vmem:[#allocation8 + $0x8] sm:$0xff]
    %v920 = vld [vmem:[#allocation8 + $0x10] sm:$0xff]
    %v921 = vld [vmem:[#allocation8 + $0x18] sm:$0xff]
    %v922 = vld [vmem:[#allocation8 + $0x20] sm:$0xff]
    %v923 = vld [vmem:[#allocation8 + $0x28] sm:$0xff]
    %v924 = vld [vmem:[#allocation8 + $0x30] sm:$0xff]
    %v925 = vld [vmem:[#allocation8 + $0x38] sm:$0xff]
    %v926 = vld [vmem:[#allocation8 + $0x40] sm:$0xff]
    %v927 = vld [vmem:[#allocation8 + $0x48] sm:$0xff]
    %v928 = vld [vmem:[#allocation8 + $0x50] sm:$0xff]
    %v929 = vld [vmem:[#allocation8 + $0x58] sm:$0xff]
    %v930 = vld [vmem:[#allocation8 + $0x60] sm:$0xff]
    %v931 = vld [vmem:[#allocation8 + $0x68] sm:$0xff]
    %v932 = vld [vmem:[#allocation8 + $0x70] sm:$0xff]
    %v933 = vld [vmem:[#allocation8 + $0x78] sm:$0xff]
    %v934 = vld [vmem:[#allocation10] sm:$0x1]
    %935 = vmatprep.subr.mxu0 0.0
    %936 = vmatpush1.msra.mxu0 %v933
    %937 = vmatprep.subr.mxu0 0.0
    %938 = vmatpush1.msra.mxu0 %v932
    %939 = vmatprep.subr.mxu0 0.0
    %940 = vmatpush1.msra.mxu0 %v931
    %941 = vmatprep.subr.mxu0 0.0
    %942 = vmatpush1.msra.mxu0 %v930
    %943 = vmatprep.subr.mxu0 0.0
    %944 = vmatpush1.msra.mxu0 %v929
    %945 = vmatprep.subr.mxu0 0.0
    %946 = vmatpush1.msra.mxu0 %v928
    %947 = vmatprep.subr.mxu0 0.0
    %948 = vmatpush1.msra.mxu0 %v927
    %949 = vmatprep.subr.mxu0 0.0
    %950 = vmatpush1.msra.mxu0 %v926
    %951 = vmatprep.subr.mxu0 0.0
    %952 = vmatpush1.msra.mxu0 %v925
    %953 = vmatprep.subr.mxu0 0.0
    %954 = vmatpush1.msra.mxu0 %v924
    %955 = vmatprep.subr.mxu0 0.0
    %956 = vmatpush1.msra.mxu0 %v923
    %957 = vmatprep.subr.mxu0 0.0
    %958 = vmatpush1.msra.mxu0 %v922
    %959 = vmatprep.subr.mxu0 0.0
    %960 = vmatpush1.msra.mxu0 %v921
    %961 = vmatprep.subr.mxu0 0.0
    %962 = vmatpush1.msra.mxu0 %v920
    %963 = vmatprep.subr.mxu0 0.0
    %964 = vmatpush1.msra.mxu0 %v919
    %965 = vmatprep.subr.mxu0 0.0
    %966 = vmatpush1.msra.mxu0 %v918
    %967 = vmatprep.subr.mxu0 0.0
    %968 = vmatpush2.msra.mxu0 0.0
    %969 = vmatprep.subr.mxu0 0.0
    %970 = vmatpush2.msra.mxu0 0.0
    %971 = vmatprep.subr.mxu0 0.0
    %972 = vmatpush2.msra.mxu0 0.0
    %973 = vmatprep.subr.mxu0 0.0
    %974 = vmatpush2.msra.mxu0 0.0
    %975 = vmatprep.subr.mxu0 0.0
    %976 = vmatpush2.msra.mxu0 0.0
    %977 = vmatprep.subr.mxu0 0.0
    %978 = vmatpush2.msra.mxu0 0.0
    %979 = vmatprep.subr.mxu0 0.0
    %980 = vmatpush2.msra.mxu0 0.0
    %981 = vmatprep.subr.mxu0 0.0
    %982 = vmatpush2.msra.mxu0 0.0
    %983 = vmatprep.subr.mxu0 0.0
    %984 = vmatpush2.msra.mxu0 0.0
    %985 = vmatprep.subr.mxu0 0.0
    %986 = vmatpush2.msra.mxu0 0.0
    %987 = vmatprep.subr.mxu0 0.0
    %988 = vmatpush2.msra.mxu0 0.0
    %989 = vmatprep.subr.mxu0 0.0
    %990 = vmatpush2.msra.mxu0 0.0
    %991 = vmatprep.subr.mxu0 0.0
    %992 = vmatpush2.msra.mxu0 0.0
    %993 = vmatprep.subr.mxu0 0.0
    %994 = vmatpush2.msra.mxu0 0.0
    %995 = vmatprep.subr.mxu0 0.0
    %996 = vmatpush2.msra.mxu0 0.0
    %997 = vmatprep.subr.mxu0 0.0
    %998 = vmatpush2.msra.mxu0 0.0
    %999 = vmatprep.mubr.f32.mxu0 0.0
    %1000 = vmatmul.mubr.f32.gmra.mxu0 %v911
    %v1001 = vpop.f32.mrf.mxu0
    %v1002 = vadd.f32 %v934, %v1001
    %v1003 = vpop.f32.mrf.mxu0
    %1004 = vdwg.mxu0
    %vm1005 = vcmask 1040384
    %v1006 = vsel %vm1005, %v1002, -inf
    %1007 = vmax.xlane.f32.xlu0 %v1006
    %v1008 = vpop.xlane.xlu0 %1007
    %v1009 = vsub.f32 %v1002, %v1008
    %v1010 = vmul.f32 %v1009, 1.442695
    %v1011 = vpow.pop %v1010
    %v1012 = vsel %vm1005, %v1011, 0.0
    %1013 = vadd.xlane.f32.xlu0 %v1012
    %v1014 = vpop.xlane.xlu0 %1013
    %v1015 = vrcp.pop %v1014
    %v1016 = vmul.f32 %v1011, %v1015
    %v1017 = vld [vmem:[#allocation7] sm:$0xff]
    %v1018 = vld [vmem:[#allocation7 + $0x8] sm:$0xff]
    %v1019 = vld [vmem:[#allocation7 + $0x10] sm:$0xff]
    %v1020 = vld [vmem:[#allocation7 + $0x18] sm:$0xff]
    %v1021 = vld [vmem:[#allocation7 + $0x20] sm:$0xff]
    %v1022 = vld [vmem:[#allocation7 + $0x28] sm:$0xff]
    %v1023 = vld [vmem:[#allocation7 + $0x30] sm:$0xff]
    %v1024 = vld [vmem:[#allocation7 + $0x38] sm:$0xff]
    %v1025 = vld [vmem:[#allocation7 + $0x40] sm:$0xff]
    %v1026 = vld [vmem:[#allocation7 + $0x48] sm:$0xff]
    %v1027 = vld [vmem:[#allocation7 + $0x50] sm:$0xff]
    %v1028 = vld [vmem:[#allocation7 + $0x58] sm:$0xff]
    %v1029 = vld [vmem:[#allocation7 + $0x60] sm:$0xff]
    %v1030 = vld [vmem:[#allocation7 + $0x68] sm:$0xff]
    %v1031 = vld [vmem:[#allocation7 + $0x70] sm:$0xff]
    %v1032 = vld [vmem:[#allocation7 + $0x78] sm:$0xff]
    %1033 = vmatprep.subr.mxu0 0.0
    %1034 = vmatpush1.msra.mxu0 %v1032
    %1035 = vmatprep.subr.mxu0 0.0
    %1036 = vmatpush1.msra.mxu0 %v1031
    %1037 = vmatprep.subr.mxu0 0.0
    %1038 = vmatpush1.msra.mxu0 %v1030
    %1039 = vmatprep.subr.mxu0 0.0
    %1040 = vmatpush1.msra.mxu0 %v1029
    %1041 = vmatprep.subr.mxu0 0.0
    %1042 = vmatpush1.msra.mxu0 %v1028
    %1043 = vmatprep.subr.mxu0 0.0
    %1044 = vmatpush1.msra.mxu0 %v1027
    %1045 = vmatprep.subr.mxu0 0.0
    %1046 = vmatpush1.msra.mxu0 %v1026
    %1047 = vmatprep.subr.mxu0 0.0
    %1048 = vmatpush1.msra.mxu0 %v1025
    %1049 = vmatprep.subr.mxu0 0.0
    %1050 = vmatpush1.msra.mxu0 %v1024
    %1051 = vmatprep.subr.mxu0 0.0
    %1052 = vmatpush1.msra.mxu0 %v1023
    %1053 = vmatprep.subr.mxu0 0.0
    %1054 = vmatpush1.msra.mxu0 %v1022
    %1055 = vmatprep.subr.mxu0 0.0
    %1056 = vmatpush1.msra.mxu0 %v1021
    %1057 = vmatprep.subr.mxu0 0.0
    %1058 = vmatpush1.msra.mxu0 %v1020
    %1059 = vmatprep.subr.mxu0 0.0
    %1060 = vmatpush1.msra.mxu0 %v1019
    %1061 = vmatprep.subr.mxu0 0.0
    %1062 = vmatpush1.msra.mxu0 %v1018
    %1063 = vmatprep.subr.mxu0 0.0
    %1064 = vmatpush1.msra.mxu0 %v1017
    %1065 = vmatprep.subr.mxu0 0.0
    %1066 = vmatpush2.msra.mxu0 0.0
    %1067 = vmatprep.subr.mxu0 0.0
    %1068 = vmatpush2.msra.mxu0 0.0
    %1069 = vmatprep.subr.mxu0 0.0
    %1070 = vmatpush2.msra.mxu0 0.0
    %1071 = vmatprep.subr.mxu0 0.0
    %1072 = vmatpush2.msra.mxu0 0.0
    %1073 = vmatprep.subr.mxu0 0.0
    %1074 = vmatpush2.msra.mxu0 0.0
    %1075 = vmatprep.subr.mxu0 0.0
    %1076 = vmatpush2.msra.mxu0 0.0
    %1077 = vmatprep.subr.mxu0 0.0
    %1078 = vmatpush2.msra.mxu0 0.0
    %1079 = vmatprep.subr.mxu0 0.0
    %1080 = vmatpush2.msra.mxu0 0.0
    %1081 = vmatprep.subr.mxu0 0.0
    %1082 = vmatpush2.msra.mxu0 0.0
    %1083 = vmatprep.subr.mxu0 0.0
    %1084 = vmatpush2.msra.mxu0 0.0
    %1085 = vmatprep.subr.mxu0 0.0
    %1086 = vmatpush2.msra.mxu0 0.0
    %1087 = vmatprep.subr.mxu0 0.0
    %1088 = vmatpush2.msra.mxu0 0.0
    %1089 = vmatprep.subr.mxu0 0.0
    %1090 = vmatpush2.msra.mxu0 0.0
    %1091 = vmatprep.subr.mxu0 0.0
    %1092 = vmatpush2.msra.mxu0 0.0
    %1093 = vmatprep.subr.mxu0 0.0
    %1094 = vmatpush2.msra.mxu0 0.0
    %1095 = vmatprep.subr.mxu0 0.0
    %1096 = vmatpush2.msra.mxu0 0.0
    %1097 = vmatprep.mubr.f32.mxu0 0.0
    %1098 = vmatmul.mubr.f32.gmra.mxu0 %v1016
    %v1099 = vpop.f32.mrf.mxu0
    %v1100 = vadd.f32 0.0, %v1099
    %v1101 = vpop.f32.mrf.mxu0
    %1102 = vdwg.mxu0
    %v1103 = vlaneseq
    %v1104 = vshrl.u32 %v1103, 7
    %v1105 = vsub.s32 0, %v1104
    %v1106 = vrot.slane %v1016, %v1105
    %v1107 = vmul.f32 %v177, %v1106
    %v1108 = vadd.f32 %v1107, 0.0
    %v1109 = vmul.f32 %v178, %v167
    %v1110 = vmul.f32 %v911, %v168
    %v1111 = vadd.f32 %v1109, %v1110
    %v1112 = vmul.f32 %v1100, %v169
    %v1113 = vadd.f32 %v1111, %v1112
    %v1114 = vsel %vm1005, %v1113, 0.0
    %1115 = vadd.xlane.f32.xlu0 %v1114
    %v1116 = vpop.xlane.xlu0 %1115
    %v1117 = vxor.u32 %v1116, 2147483648
    %v1118 = vmul.f32 %v1117, 1.442695
    %v1119 = vpow.pop %v1118
    %v1120 = vadd.f32 %v1119, 1.0
    %v1121 = vrcp.pop %v1120
    %v1122 = vmul.f32 1.0, %v1121
    %v1123 = vlaneseq
    %v1124 = vshrl.u32 %v1123, 7
    %v1125 = vsub.s32 0, %v1124
    %v1126 = vrot.slane %v1122, %v1125
    %v1127 = vmul.f32 %v177, %v1126
    %v1128 = vadd.f32 %v1127, 0.0
    %v1129 = vlaneseq
    %v1130 = vshrl.u32 %v1129, 7
    %v1131 = vsub.s32 0, %v1130
    %v1132 = vrot.slane %v1100, %v1131
    %v1133 = vmul.f32 %v177, %v1132
    %v1134 = vadd.f32 %v1133, 0.0
    %vm1135 = vcmp.eq.s32.totalorder %v171, 1
    %v1136 = vsel %vm1135, 1, 0
    %v1137 = vcvt.s32.f32 %v1136
    %s1138 = scalar_lea.vmem [#allocation2], 1
    %v1139 = vld [vmem:[%s1138] sm:$0x1]
    %1140 = vmatprep.subr.mxu0 %v225
    %1141 = vmatpush1.msra.mxu0 %v224
    %1142 = vmatprep.subr.mxu0 %v222
    %1143 = vmatpush1.msra.mxu0 %v221
    %1144 = vmatprep.subr.mxu0 %v219
    %1145 = vmatpush1.msra.mxu0 %v218
    %1146 = vmatprep.subr.mxu0 %v216
    %1147 = vmatpush1.msra.mxu0 %v215
    %1148 = vmatprep.subr.mxu0 %v213
    %1149 = vmatpush1.msra.mxu0 %v212
    %1150 = vmatprep.subr.mxu0 %v210
    %1151 = vmatpush1.msra.mxu0 %v209
    %1152 = vmatprep.subr.mxu0 %v207
    %1153 = vmatpush1.msra.mxu0 %v206
    %1154 = vmatprep.subr.mxu0 %v204
    %1155 = vmatpush1.msra.mxu0 %v203
    %1156 = vmatprep.subr.mxu0 %v201
    %1157 = vmatpush1.msra.mxu0 %v200
    %1158 = vmatprep.subr.mxu0 %v198
    %1159 = vmatpush1.msra.mxu0 %v197
    %1160 = vmatprep.subr.mxu0 %v195
    %1161 = vmatpush1.msra.mxu0 %v194
    %1162 = vmatprep.subr.mxu0 %v192
    %1163 = vmatpush1.msra.mxu0 %v191
    %1164 = vmatprep.subr.mxu0 %v189
    %1165 = vmatpush1.msra.mxu0 %v188
    %1166 = vmatprep.subr.mxu0 %v186
    %1167 = vmatpush1.msra.mxu0 %v185
    %1168 = vmatprep.subr.mxu0 %v183
    %1169 = vmatpush1.msra.mxu0 %v182
    %1170 = vmatprep.subr.mxu0 %v180
    %1171 = vmatpush1.msra.mxu0 %v179
    %1172 = vmatprep.subr.mxu0 %v273
    %1173 = vmatpush2.msra.mxu0 %v272
    %1174 = vmatprep.subr.mxu0 %v270
    %1175 = vmatpush2.msra.mxu0 %v269
    %1176 = vmatprep.subr.mxu0 %v267
    %1177 = vmatpush2.msra.mxu0 %v266
    %1178 = vmatprep.subr.mxu0 %v264
    %1179 = vmatpush2.msra.mxu0 %v263
    %1180 = vmatprep.subr.mxu0 %v261
    %1181 = vmatpush2.msra.mxu0 %v260
    %1182 = vmatprep.subr.mxu0 %v258
    %1183 = vmatpush2.msra.mxu0 %v257
    %1184 = vmatprep.subr.mxu0 %v255
    %1185 = vmatpush2.msra.mxu0 %v254
    %1186 = vmatprep.subr.mxu0 %v252
    %1187 = vmatpush2.msra.mxu0 %v251
    %1188 = vmatprep.subr.mxu0 %v249
    %1189 = vmatpush2.msra.mxu0 %v248
    %1190 = vmatprep.subr.mxu0 %v246
    %1191 = vmatpush2.msra.mxu0 %v245
    %1192 = vmatprep.subr.mxu0 %v243
    %1193 = vmatpush2.msra.mxu0 %v242
    %1194 = vmatprep.subr.mxu0 %v240
    %1195 = vmatpush2.msra.mxu0 %v239
    %1196 = vmatprep.subr.mxu0 %v237
    %1197 = vmatpush2.msra.mxu0 %v236
    %1198 = vmatprep.subr.mxu0 %v234
    %1199 = vmatpush2.msra.mxu0 %v233
    %1200 = vmatprep.subr.mxu0 %v231
    %1201 = vmatpush2.msra.mxu0 %v230
    %1202 = vmatprep.subr.mxu0 %v228
    %1203 = vmatpush2.msra.mxu0 %v227
    %1204 = vmatprep.mubr.f32.mxu0 %v540
    %1205 = vmatmul.mubr.f32.gmra.mxu0 %v1139
    %v1206 = vpop.f32.mrf.mxu0
    %v1207 = vadd.f32 0.0, %v1206
    %v1208 = vpop.f32.mrf.mxu0
    %v1209 = vadd.f32 0.0, %v1208
    %1210 = vdwg.mxu0
    %1211 = vmatprep.subr.mxu0 0.0
    %1212 = vmatpush1.msra.mxu0 %v226
    %1213 = vmatprep.subr.mxu0 0.0
    %1214 = vmatpush1.msra.mxu0 %v223
    %1215 = vmatprep.subr.mxu0 0.0
    %1216 = vmatpush1.msra.mxu0 %v220
    %1217 = vmatprep.subr.mxu0 0.0
    %1218 = vmatpush1.msra.mxu0 %v217
    %1219 = vmatprep.subr.mxu0 0.0
    %1220 = vmatpush1.msra.mxu0 %v214
    %1221 = vmatprep.subr.mxu0 0.0
    %1222 = vmatpush1.msra.mxu0 %v211
    %1223 = vmatprep.subr.mxu0 0.0
    %1224 = vmatpush1.msra.mxu0 %v208
    %1225 = vmatprep.subr.mxu0 0.0
    %1226 = vmatpush1.msra.mxu0 %v205
    %1227 = vmatprep.subr.mxu0 0.0
    %1228 = vmatpush1.msra.mxu0 %v202
    %1229 = vmatprep.subr.mxu0 0.0
    %1230 = vmatpush1.msra.mxu0 %v199
    %1231 = vmatprep.subr.mxu0 0.0
    %1232 = vmatpush1.msra.mxu0 %v196
    %1233 = vmatprep.subr.mxu0 0.0
    %1234 = vmatpush1.msra.mxu0 %v193
    %1235 = vmatprep.subr.mxu0 0.0
    %1236 = vmatpush1.msra.mxu0 %v190
    %1237 = vmatprep.subr.mxu0 0.0
    %1238 = vmatpush1.msra.mxu0 %v187
    %1239 = vmatprep.subr.mxu0 0.0
    %1240 = vmatpush1.msra.mxu0 %v184
    %1241 = vmatprep.subr.mxu0 0.0
    %1242 = vmatpush1.msra.mxu0 %v181
    %1243 = vmatprep.subr.mxu0 0.0
    %1244 = vmatpush2.msra.mxu0 %v274
    %1245 = vmatprep.subr.mxu0 0.0
    %1246 = vmatpush2.msra.mxu0 %v271
    %1247 = vmatprep.subr.mxu0 0.0
    %1248 = vmatpush2.msra.mxu0 %v268
    %1249 = vmatprep.subr.mxu0 0.0
    %1250 = vmatpush2.msra.mxu0 %v265
    %1251 = vmatprep.subr.mxu0 0.0
    %1252 = vmatpush2.msra.mxu0 %v262
    %1253 = vmatprep.subr.mxu0 0.0
    %1254 = vmatpush2.msra.mxu0 %v259
    %1255 = vmatprep.subr.mxu0 0.0
    %1256 = vmatpush2.msra.mxu0 %v256
    %1257 = vmatprep.subr.mxu0 0.0
    %1258 = vmatpush2.msra.mxu0 %v253
    %1259 = vmatprep.subr.mxu0 0.0
    %1260 = vmatpush2.msra.mxu0 %v250
    %1261 = vmatprep.subr.mxu0 0.0
    %1262 = vmatpush2.msra.mxu0 %v247
    %1263 = vmatprep.subr.mxu0 0.0
    %1264 = vmatpush2.msra.mxu0 %v244
    %1265 = vmatprep.subr.mxu0 0.0
    %1266 = vmatpush2.msra.mxu0 %v241
    %1267 = vmatprep.subr.mxu0 0.0
    %1268 = vmatpush2.msra.mxu0 %v238
    %1269 = vmatprep.subr.mxu0 0.0
    %1270 = vmatpush2.msra.mxu0 %v235
    %1271 = vmatprep.subr.mxu0 0.0
    %1272 = vmatpush2.msra.mxu0 %v232
    %1273 = vmatprep.subr.mxu0 0.0
    %1274 = vmatpush2.msra.mxu0 %v229
    %1275 = vmatprep.mubr.f32.mxu0 %v540
    %1276 = vmatmul.mubr.f32.gmra.mxu0 %v1139
    %v1277 = vpop.f32.mrf.mxu0
    %v1278 = vadd.f32 0.0, %v1277
    %v1279 = vpop.f32.mrf.mxu0
    %1280 = vdwg.mxu0
    %v1281 = vadd.f32 %v1207, %v432
    %v1282 = vxor.u32 %v1281, 2147483648
    %v1283 = vmul.f32 %v1282, 1.442695
    %v1284 = vpow.pop %v1283
    %v1285 = vadd.f32 %v1284, 1.0
    %v1286 = vrcp.pop %v1285
    %v1287 = vmul.f32 1.0, %v1286
    %v1288 = vadd.f32 %v1209, %v444
    %v1289 = vxor.u32 %v1288, 2147483648
    %v1290 = vmul.f32 %v1289, 1.442695
    %v1291 = vpow.pop %v1290
    %v1292 = vadd.f32 %v1291, 1.0
    %v1293 = vrcp.pop %v1292
    %v1294 = vmul.f32 1.0, %v1293
    %v1295 = vadd.f32 %v1278, %v456
    %1296 = vmatprep.subr.mxu0 0.0
    %1297 = vmatpush1.msra.mxu0 %v431
    %1298 = vmatprep.subr.mxu0 0.0
    %1299 = vmatpush1.msra.mxu0 %v430
    %1300 = vmatprep.subr.mxu0 0.0
    %1301 = vmatpush1.msra.mxu0 %v429
    %1302 = vmatprep.subr.mxu0 0.0
    %1303 = vmatpush1.msra.mxu0 %v428
    %1304 = vmatprep.subr.mxu0 0.0
    %1305 = vmatpush1.msra.mxu0 %v427
    %1306 = vmatprep.subr.mxu0 0.0
    %1307 = vmatpush1.msra.mxu0 %v426
    %1308 = vmatprep.subr.mxu0 0.0
    %1309 = vmatpush1.msra.mxu0 %v425
    %1310 = vmatprep.subr.mxu0 0.0
    %1311 = vmatpush1.msra.mxu0 %v424
    %1312 = vmatprep.subr.mxu0 0.0
    %1313 = vmatpush1.msra.mxu0 %v423
    %1314 = vmatprep.subr.mxu0 0.0
    %1315 = vmatpush1.msra.mxu0 %v422
    %1316 = vmatprep.subr.mxu0 0.0
    %1317 = vmatpush1.msra.mxu0 %v421
    %1318 = vmatprep.subr.mxu0 0.0
    %1319 = vmatpush1.msra.mxu0 %v420
    %1320 = vmatprep.subr.mxu0 0.0
    %1321 = vmatpush1.msra.mxu0 %v419
    %1322 = vmatprep.subr.mxu0 0.0
    %1323 = vmatpush1.msra.mxu0 %v418
    %1324 = vmatprep.subr.mxu0 0.0
    %1325 = vmatpush1.msra.mxu0 %v417
    %1326 = vmatprep.subr.mxu0 0.0
    %1327 = vmatpush1.msra.mxu0 %v416
    %1328 = vmatprep.subr.mxu0 0.0
    %1329 = vmatpush2.msra.mxu0 0.0
    %1330 = vmatprep.subr.mxu0 0.0
    %1331 = vmatpush2.msra.mxu0 0.0
    %1332 = vmatprep.subr.mxu0 0.0
    %1333 = vmatpush2.msra.mxu0 0.0
    %1334 = vmatprep.subr.mxu0 0.0
    %1335 = vmatpush2.msra.mxu0 0.0
    %1336 = vmatprep.subr.mxu0 0.0
    %1337 = vmatpush2.msra.mxu0 0.0
    %1338 = vmatprep.subr.mxu0 0.0
    %1339 = vmatpush2.msra.mxu0 0.0
    %1340 = vmatprep.subr.mxu0 0.0
    %1341 = vmatpush2.msra.mxu0 0.0
    %1342 = vmatprep.subr.mxu0 0.0
    %1343 = vmatpush2.msra.mxu0 0.0
    %1344 = vmatprep.subr.mxu0 0.0
    %1345 = vmatpush2.msra.mxu0 0.0
    %1346 = vmatprep.subr.mxu0 0.0
    %1347 = vmatpush2.msra.mxu0 0.0
    %1348 = vmatprep.subr.mxu0 0.0
    %1349 = vmatpush2.msra.mxu0 0.0
    %1350 = vmatprep.subr.mxu0 0.0
    %1351 = vmatpush2.msra.mxu0 0.0
    %1352 = vmatprep.subr.mxu0 0.0
    %1353 = vmatpush2.msra.mxu0 0.0
    %1354 = vmatprep.subr.mxu0 0.0
    %1355 = vmatpush2.msra.mxu0 0.0
    %1356 = vmatprep.subr.mxu0 0.0
    %1357 = vmatpush2.msra.mxu0 0.0
    %1358 = vmatprep.subr.mxu0 0.0
    %1359 = vmatpush2.msra.mxu0 0.0
    %1360 = vmatprep.mubr.f32.mxu0 0.0
    %1361 = vmatmul.mubr.f32.gmra.mxu0 %v540
    %v1362 = vpop.f32.mrf.mxu0
    %v1363 = vadd.f32 %v462, %v1362
    %v1364 = vpop.f32.mrf.mxu0
    %1365 = vdwg.mxu0
    %v1366 = vmul.f32 %v1287, %v1363
    %v1367 = vadd.f32 %v1295, %v1366
    %v1368 = vtanh.pop %v1367
    %v1369 = vsub.f32 1.0, %v1294
    %v1370 = vmul.f32 %v1369, %v1368
    %v1371 = vmul.f32 %v1294, %v540
    %v1372 = vadd.f32 %v1370, %v1371
    %v1373 = vlaneseq
    %v1374 = vshrl.u32 %v1373, 7
    %v1375 = vsub.s32 0, %v1374
    %v1376 = vrot.slane %v1372, %v1375
    %v1377 = vmul.f32 %v1137, %v1376
    %v1378 = vadd.f32 %v546, %v1377
    %1379 = vmatprep.subr.mxu0 %v594
    %1380 = vmatpush1.msra.mxu0 %v593
    %1381 = vmatprep.subr.mxu0 %v591
    %1382 = vmatpush1.msra.mxu0 %v590
    %1383 = vmatprep.subr.mxu0 %v588
    %1384 = vmatpush1.msra.mxu0 %v587
    %1385 = vmatprep.subr.mxu0 %v585
    %1386 = vmatpush1.msra.mxu0 %v584
    %1387 = vmatprep.subr.mxu0 %v582
    %1388 = vmatpush1.msra.mxu0 %v581
    %1389 = vmatprep.subr.mxu0 %v579
    %1390 = vmatpush1.msra.mxu0 %v578
    %1391 = vmatprep.subr.mxu0 %v576
    %1392 = vmatpush1.msra.mxu0 %v575
    %1393 = vmatprep.subr.mxu0 %v573
    %1394 = vmatpush1.msra.mxu0 %v572
    %1395 = vmatprep.subr.mxu0 %v570
    %1396 = vmatpush1.msra.mxu0 %v569
    %1397 = vmatprep.subr.mxu0 %v567
    %1398 = vmatpush1.msra.mxu0 %v566
    %1399 = vmatprep.subr.mxu0 %v564
    %1400 = vmatpush1.msra.mxu0 %v563
    %1401 = vmatprep.subr.mxu0 %v561
    %1402 = vmatpush1.msra.mxu0 %v560
    %1403 = vmatprep.subr.mxu0 %v558
    %1404 = vmatpush1.msra.mxu0 %v557
    %1405 = vmatprep.subr.mxu0 %v555
    %1406 = vmatpush1.msra.mxu0 %v554
    %1407 = vmatprep.subr.mxu0 %v552
    %1408 = vmatpush1.msra.mxu0 %v551
    %1409 = vmatprep.subr.mxu0 %v549
    %1410 = vmatpush1.msra.mxu0 %v548
    %1411 = vmatprep.subr.mxu0 %v642
    %1412 = vmatpush2.msra.mxu0 %v641
    %1413 = vmatprep.subr.mxu0 %v639
    %1414 = vmatpush2.msra.mxu0 %v638
    %1415 = vmatprep.subr.mxu0 %v636
    %1416 = vmatpush2.msra.mxu0 %v635
    %1417 = vmatprep.subr.mxu0 %v633
    %1418 = vmatpush2.msra.mxu0 %v632
    %1419 = vmatprep.subr.mxu0 %v630
    %1420 = vmatpush2.msra.mxu0 %v629
    %1421 = vmatprep.subr.mxu0 %v627
    %1422 = vmatpush2.msra.mxu0 %v626
    %1423 = vmatprep.subr.mxu0 %v624
    %1424 = vmatpush2.msra.mxu0 %v623
    %1425 = vmatprep.subr.mxu0 %v621
    %1426 = vmatpush2.msra.mxu0 %v620
    %1427 = vmatprep.subr.mxu0 %v618
    %1428 = vmatpush2.msra.mxu0 %v617
    %1429 = vmatprep.subr.mxu0 %v615
    %1430 = vmatpush2.msra.mxu0 %v614
    %1431 = vmatprep.subr.mxu0 %v612
    %1432 = vmatpush2.msra.mxu0 %v611
    %1433 = vmatprep.subr.mxu0 %v609
    %1434 = vmatpush2.msra.mxu0 %v608
    %1435 = vmatprep.subr.mxu0 %v606
    %1436 = vmatpush2.msra.mxu0 %v605
    %1437 = vmatprep.subr.mxu0 %v603
    %1438 = vmatpush2.msra.mxu0 %v602
    %1439 = vmatprep.subr.mxu0 %v600
    %1440 = vmatpush2.msra.mxu0 %v599
    %1441 = vmatprep.subr.mxu0 %v597
    %1442 = vmatpush2.msra.mxu0 %v596
    %1443 = vmatprep.mubr.f32.mxu0 %v911
    %1444 = vmatmul.mubr.f32.gmra.mxu0 %v1372
    %v1445 = vpop.f32.mrf.mxu0
    %v1446 = vadd.f32 0.0, %v1445
    %v1447 = vpop.f32.mrf.mxu0
    %v1448 = vadd.f32 0.0, %v1447
    %1449 = vdwg.mxu0
    %1450 = vmatprep.subr.mxu0 0.0
    %1451 = vmatpush1.msra.mxu0 %v595
    %1452 = vmatprep.subr.mxu0 0.0
    %1453 = vmatpush1.msra.mxu0 %v592
    %1454 = vmatprep.subr.mxu0 0.0
    %1455 = vmatpush1.msra.mxu0 %v589
    %1456 = vmatprep.subr.mxu0 0.0
    %1457 = vmatpush1.msra.mxu0 %v586
    %1458 = vmatprep.subr.mxu0 0.0
    %1459 = vmatpush1.msra.mxu0 %v583
    %1460 = vmatprep.subr.mxu0 0.0
    %1461 = vmatpush1.msra.mxu0 %v580
    %1462 = vmatprep.subr.mxu0 0.0
    %1463 = vmatpush1.msra.mxu0 %v577
    %1464 = vmatprep.subr.mxu0 0.0
    %1465 = vmatpush1.msra.mxu0 %v574
    %1466 = vmatprep.subr.mxu0 0.0
    %1467 = vmatpush1.msra.mxu0 %v571
    %1468 = vmatprep.subr.mxu0 0.0
    %1469 = vmatpush1.msra.mxu0 %v568
    %1470 = vmatprep.subr.mxu0 0.0
    %1471 = vmatpush1.msra.mxu0 %v565
    %1472 = vmatprep.subr.mxu0 0.0
    %1473 = vmatpush1.msra.mxu0 %v562
    %1474 = vmatprep.subr.mxu0 0.0
    %1475 = vmatpush1.msra.mxu0 %v559
    %1476 = vmatprep.subr.mxu0 0.0
    %1477 = vmatpush1.msra.mxu0 %v556
    %1478 = vmatprep.subr.mxu0 0.0
    %1479 = vmatpush1.msra.mxu0 %v553
    %1480 = vmatprep.subr.mxu0 0.0
    %1481 = vmatpush1.msra.mxu0 %v550
    %1482 = vmatprep.subr.mxu0 0.0
    %1483 = vmatpush2.msra.mxu0 %v643
    %1484 = vmatprep.subr.mxu0 0.0
    %1485 = vmatpush2.msra.mxu0 %v640
    %1486 = vmatprep.subr.mxu0 0.0
    %1487 = vmatpush2.msra.mxu0 %v637
    %1488 = vmatprep.subr.mxu0 0.0
    %1489 = vmatpush2.msra.mxu0 %v634
    %1490 = vmatprep.subr.mxu0 0.0
    %1491 = vmatpush2.msra.mxu0 %v631
    %1492 = vmatprep.subr.mxu0 0.0
    %1493 = vmatpush2.msra.mxu0 %v628
    %1494 = vmatprep.subr.mxu0 0.0
    %1495 = vmatpush2.msra.mxu0 %v625
    %1496 = vmatprep.subr.mxu0 0.0
    %1497 = vmatpush2.msra.mxu0 %v622
    %1498 = vmatprep.subr.mxu0 0.0
    %1499 = vmatpush2.msra.mxu0 %v619
    %1500 = vmatprep.subr.mxu0 0.0
    %1501 = vmatpush2.msra.mxu0 %v616
    %1502 = vmatprep.subr.mxu0 0.0
    %1503 = vmatpush2.msra.mxu0 %v613
    %1504 = vmatprep.subr.mxu0 0.0
    %1505 = vmatpush2.msra.mxu0 %v610
    %1506 = vmatprep.subr.mxu0 0.0
    %1507 = vmatpush2.msra.mxu0 %v607
    %1508 = vmatprep.subr.mxu0 0.0
    %1509 = vmatpush2.msra.mxu0 %v604
    %1510 = vmatprep.subr.mxu0 0.0
    %1511 = vmatpush2.msra.mxu0 %v601
    %1512 = vmatprep.subr.mxu0 0.0
    %1513 = vmatpush2.msra.mxu0 %v598
    %1514 = vmatprep.mubr.f32.mxu0 %v911
    %1515 = vmatmul.mubr.f32.gmra.mxu0 %v1372
    %v1516 = vpop.f32.mrf.mxu0
    %v1517 = vadd.f32 0.0, %v1516
    %v1518 = vpop.f32.mrf.mxu0
    %1519 = vdwg.mxu0
    %v1520 = vadd.f32 %v1446, %v803
    %v1521 = vxor.u32 %v1520, 2147483648
    %v1522 = vmul.f32 %v1521, 1.442695
    %v1523 = vpow.pop %v1522
    %v1524 = vadd.f32 %v1523, 1.0
    %v1525 = vrcp.pop %v1524
    %v1526 = vmul.f32 1.0, %v1525
    %v1527 = vadd.f32 %v1448, %v815
    %v1528 = vxor.u32 %v1527, 2147483648
    %v1529 = vmul.f32 %v1528, 1.442695
    %v1530 = vpow.pop %v1529
    %v1531 = vadd.f32 %v1530, 1.0
    %v1532 = vrcp.pop %v1531
    %v1533 = vmul.f32 1.0, %v1532
    %v1534 = vadd.f32 %v1517, %v827
    %1535 = vmatprep.subr.mxu0 0.0
    %1536 = vmatpush1.msra.mxu0 %v801
    %1537 = vmatprep.subr.mxu0 0.0
    %1538 = vmatpush1.msra.mxu0 %v800
    %1539 = vmatprep.subr.mxu0 0.0
    %1540 = vmatpush1.msra.mxu0 %v799
    %1541 = vmatprep.subr.mxu0 0.0
    %1542 = vmatpush1.msra.mxu0 %v798
    %1543 = vmatprep.subr.mxu0 0.0
    %1544 = vmatpush1.msra.mxu0 %v797
    %1545 = vmatprep.subr.mxu0 0.0
    %1546 = vmatpush1.msra.mxu0 %v796
    %1547 = vmatprep.subr.mxu0 0.0
    %1548 = vmatpush1.msra.mxu0 %v795
    %1549 = vmatprep.subr.mxu0 0.0
    %1550 = vmatpush1.msra.mxu0 %v794
    %1551 = vmatprep.subr.mxu0 0.0
    %1552 = vmatpush1.msra.mxu0 %v793
    %1553 = vmatprep.subr.mxu0 0.0
    %1554 = vmatpush1.msra.mxu0 %v792
    %1555 = vmatprep.subr.mxu0 0.0
    %1556 = vmatpush1.msra.mxu0 %v791
    %1557 = vmatprep.subr.mxu0 0.0
    %1558 = vmatpush1.msra.mxu0 %v790
    %1559 = vmatprep.subr.mxu0 0.0
    %1560 = vmatpush1.msra.mxu0 %v789
    %1561 = vmatprep.subr.mxu0 0.0
    %1562 = vmatpush1.msra.mxu0 %v788
    %1563 = vmatprep.subr.mxu0 0.0
    %1564 = vmatpush1.msra.mxu0 %v787
    %1565 = vmatprep.subr.mxu0 0.0
    %1566 = vmatpush1.msra.mxu0 %v786
    %1567 = vmatprep.subr.mxu0 0.0
    %1568 = vmatpush2.msra.mxu0 0.0
    %1569 = vmatprep.subr.mxu0 0.0
    %1570 = vmatpush2.msra.mxu0 0.0
    %1571 = vmatprep.subr.mxu0 0.0
    %1572 = vmatpush2.msra.mxu0 0.0
    %1573 = vmatprep.subr.mxu0 0.0
    %1574 = vmatpush2.msra.mxu0 0.0
    %1575 = vmatprep.subr.mxu0 0.0
    %1576 = vmatpush2.msra.mxu0 0.0
    %1577 = vmatprep.subr.mxu0 0.0
    %1578 = vmatpush2.msra.mxu0 0.0
    %1579 = vmatprep.subr.mxu0 0.0
    %1580 = vmatpush2.msra.mxu0 0.0
    %1581 = vmatprep.subr.mxu0 0.0
    %1582 = vmatpush2.msra.mxu0 0.0
    %1583 = vmatprep.subr.mxu0 0.0
    %1584 = vmatpush2.msra.mxu0 0.0
    %1585 = vmatprep.subr.mxu0 0.0
    %1586 = vmatpush2.msra.mxu0 0.0
    %1587 = vmatprep.subr.mxu0 0.0
    %1588 = vmatpush2.msra.mxu0 0.0
    %1589 = vmatprep.subr.mxu0 0.0
    %1590 = vmatpush2.msra.mxu0 0.0
    %1591 = vmatprep.subr.mxu0 0.0
    %1592 = vmatpush2.msra.mxu0 0.0
    %1593 = vmatprep.subr.mxu0 0.0
    %1594 = vmatpush2.msra.mxu0 0.0
    %1595 = vmatprep.subr.mxu0 0.0
    %1596 = vmatpush2.msra.mxu0 0.0
    %1597 = vmatprep.subr.mxu0 0.0
    %1598 = vmatpush2.msra.mxu0 0.0
    %1599 = vmatprep.mubr.f32.mxu0 0.0
    %1600 = vmatmul.mubr.f32.gmra.mxu0 %v911
    %v1601 = vpop.f32.mrf.mxu0
    %v1602 = vadd.f32 %v833, %v1601
    %v1603 = vpop.f32.mrf.mxu0
    %1604 = vdwg.mxu0
    %v1605 = vmul.f32 %v1526, %v1602
    %v1606 = vadd.f32 %v1534, %v1605
    %v1607 = vtanh.pop %v1606
    %v1608 = vsub.f32 1.0, %v1533
    %v1609 = vmul.f32 %v1608, %v1607
    %v1610 = vmul.f32 %v1533, %v911
    %v1611 = vadd.f32 %v1609, %v1610
    %v1612 = vlaneseq
    %v1613 = vshrl.u32 %v1612, 7
    %v1614 = vsub.s32 0, %v1613
    %v1615 = vrot.slane %v1611, %v1614
    %v1616 = vmul.f32 %v1137, %v1615
    %v1617 = vadd.f32 %v917, %v1616
    %1618 = vmatprep.subr.mxu0 0.0
    %1619 = vmatpush1.msra.mxu0 %v933
    %1620 = vmatprep.subr.mxu0 0.0
    %1621 = vmatpush1.msra.mxu0 %v932
    %1622 = vmatprep.subr.mxu0 0.0
    %1623 = vmatpush1.msra.mxu0 %v931
    %1624 = vmatprep.subr.mxu0 0.0
    %1625 = vmatpush1.msra.mxu0 %v930
    %1626 = vmatprep.subr.mxu0 0.0
    %1627 = vmatpush1.msra.mxu0 %v929
    %1628 = vmatprep.subr.mxu0 0.0
    %1629 = vmatpush1.msra.mxu0 %v928
    %1630 = vmatprep.subr.mxu0 0.0
    %1631 = vmatpush1.msra.mxu0 %v927
    %1632 = vmatprep.subr.mxu0 0.0
    %1633 = vmatpush1.msra.mxu0 %v926
    %1634 = vmatprep.subr.mxu0 0.0
    %1635 = vmatpush1.msra.mxu0 %v925
    %1636 = vmatprep.subr.mxu0 0.0
    %1637 = vmatpush1.msra.mxu0 %v924
    %1638 = vmatprep.subr.mxu0 0.0
    %1639 = vmatpush1.msra.mxu0 %v923
    %1640 = vmatprep.subr.mxu0 0.0
    %1641 = vmatpush1.msra.mxu0 %v922
    %1642 = vmatprep.subr.mxu0 0.0
    %1643 = vmatpush1.msra.mxu0 %v921
    %1644 = vmatprep.subr.mxu0 0.0
    %1645 = vmatpush1.msra.mxu0 %v920
    %1646 = vmatprep.subr.mxu0 0.0
    %1647 = vmatpush1.msra.mxu0 %v919
    %1648 = vmatprep.subr.mxu0 0.0
    %1649 = vmatpush1.msra.mxu0 %v918
    %1650 = vmatprep.subr.mxu0 0.0
    %1651 = vmatpush2.msra.mxu0 0.0
    %1652 = vmatprep.subr.mxu0 0.0
    %1653 = vmatpush2.msra.mxu0 0.0
    %1654 = vmatprep.subr.mxu0 0.0
    %1655 = vmatpush2.msra.mxu0 0.0
    %1656 = vmatprep.subr.mxu0 0.0
    %1657 = vmatpush2.msra.mxu0 0.0
    %1658 = vmatprep.subr.mxu0 0.0
    %1659 = vmatpush2.msra.mxu0 0.0
    %1660 = vmatprep.subr.mxu0 0.0
    %1661 = vmatpush2.msra.mxu0 0.0
    %1662 = vmatprep.subr.mxu0 0.0
    %1663 = vmatpush2.msra.mxu0 0.0
    %1664 = vmatprep.subr.mxu0 0.0
    %1665 = vmatpush2.msra.mxu0 0.0
    %1666 = vmatprep.subr.mxu0 0.0
    %1667 = vmatpush2.msra.mxu0 0.0
    %1668 = vmatprep.subr.mxu0 0.0
    %1669 = vmatpush2.msra.mxu0 0.0
    %1670 = vmatprep.subr.mxu0 0.0
    %1671 = vmatpush2.msra.mxu0 0.0
    %1672 = vmatprep.subr.mxu0 0.0
    %1673 = vmatpush2.msra.mxu0 0.0
    %1674 = vmatprep.subr.mxu0 0.0
    %1675 = vmatpush2.msra.mxu0 0.0
    %1676 = vmatprep.subr.mxu0 0.0
    %1677 = vmatpush2.msra.mxu0 0.0
    %1678 = vmatprep.subr.mxu0 0.0
    %1679 = vmatpush2.msra.mxu0 0.0
    %1680 = vmatprep.subr.mxu0 0.0
    %1681 = vmatpush2.msra.mxu0 0.0
    %1682 = vmatprep.mubr.f32.mxu0 0.0
    %1683 = vmatmul.mubr.f32.gmra.mxu0 %v1611
    %v1684 = vpop.f32.mrf.mxu0
    %v1685 = vadd.f32 %v934, %v1684
    %v1686 = vpop.f32.mrf.mxu0
    %1687 = vdwg.mxu0
    %v1688 = vsel %vm1005, %v1685, -inf
    %1689 = vmax.xlane.f32.xlu0 %v1688
    %v1690 = vpop.xlane.xlu0 %1689
    %v1691 = vsub.f32 %v1685, %v1690
    %v1692 = vmul.f32 %v1691, 1.442695
    %v1693 = vpow.pop %v1692
    %v1694 = vsel %vm1005, %v1693, 0.0
    %1695 = vadd.xlane.f32.xlu0 %v1694
    %v1696 = vpop.xlane.xlu0 %1695
    %v1697 = vrcp.pop %v1696
    %v1698 = vmul.f32 %v1693, %v1697
    %1699 = vmatprep.subr.mxu0 0.0
    %1700 = vmatpush1.msra.mxu0 %v1032
    %1701 = vmatprep.subr.mxu0 0.0
    %1702 = vmatpush1.msra.mxu0 %v1031
    %1703 = vmatprep.subr.mxu0 0.0
    %1704 = vmatpush1.msra.mxu0 %v1030
    %1705 = vmatprep.subr.mxu0 0.0
    %1706 = vmatpush1.msra.mxu0 %v1029
    %1707 = vmatprep.subr.mxu0 0.0
    %1708 = vmatpush1.msra.mxu0 %v1028
    %1709 = vmatprep.subr.mxu0 0.0
    %1710 = vmatpush1.msra.mxu0 %v1027
    %1711 = vmatprep.subr.mxu0 0.0
    %1712 = vmatpush1.msra.mxu0 %v1026
    %1713 = vmatprep.subr.mxu0 0.0
    %1714 = vmatpush1.msra.mxu0 %v1025
    %1715 = vmatprep.subr.mxu0 0.0
    %1716 = vmatpush1.msra.mxu0 %v1024
    %1717 = vmatprep.subr.mxu0 0.0
    %1718 = vmatpush1.msra.mxu0 %v1023
    %1719 = vmatprep.subr.mxu0 0.0
    %1720 = vmatpush1.msra.mxu0 %v1022
    %1721 = vmatprep.subr.mxu0 0.0
    %1722 = vmatpush1.msra.mxu0 %v1021
    %1723 = vmatprep.subr.mxu0 0.0
    %1724 = vmatpush1.msra.mxu0 %v1020
    %1725 = vmatprep.subr.mxu0 0.0
    %1726 = vmatpush1.msra.mxu0 %v1019
    %1727 = vmatprep.subr.mxu0 0.0
    %1728 = vmatpush1.msra.mxu0 %v1018
    %1729 = vmatprep.subr.mxu0 0.0
    %1730 = vmatpush1.msra.mxu0 %v1017
    %1731 = vmatprep.subr.mxu0 0.0
    %1732 = vmatpush2.msra.mxu0 0.0
    %1733 = vmatprep.subr.mxu0 0.0
    %1734 = vmatpush2.msra.mxu0 0.0
    %1735 = vmatprep.subr.mxu0 0.0
    %1736 = vmatpush2.msra.mxu0 0.0
    %1737 = vmatprep.subr.mxu0 0.0
    %1738 = vmatpush2.msra.mxu0 0.0
    %1739 = vmatprep.subr.mxu0 0.0
    %1740 = vmatpush2.msra.mxu0 0.0
    %1741 = vmatprep.subr.mxu0 0.0
    %1742 = vmatpush2.msra.mxu0 0.0
    %1743 = vmatprep.subr.mxu0 0.0
    %1744 = vmatpush2.msra.mxu0 0.0
    %1745 = vmatprep.subr.mxu0 0.0
    %1746 = vmatpush2.msra.mxu0 0.0
    %1747 = vmatprep.subr.mxu0 0.0
    %1748 = vmatpush2.msra.mxu0 0.0
    %1749 = vmatprep.subr.mxu0 0.0
    %1750 = vmatpush2.msra.mxu0 0.0
    %1751 = vmatprep.subr.mxu0 0.0
    %1752 = vmatpush2.msra.mxu0 0.0
    %1753 = vmatprep.subr.mxu0 0.0
    %1754 = vmatpush2.msra.mxu0 0.0
    %1755 = vmatprep.subr.mxu0 0.0
    %1756 = vmatpush2.msra.mxu0 0.0
    %1757 = vmatprep.subr.mxu0 0.0
    %1758 = vmatpush2.msra.mxu0 0.0
    %1759 = vmatprep.subr.mxu0 0.0
    %1760 = vmatpush2.msra.mxu0 0.0
    %1761 = vmatprep.subr.mxu0 0.0
    %1762 = vmatpush2.msra.mxu0 0.0
    %1763 = vmatprep.mubr.f32.mxu0 0.0
    %1764 = vmatmul.mubr.f32.gmra.mxu0 %v1698
    %v1765 = vpop.f32.mrf.mxu0
    %v1766 = vadd.f32 0.0, %v1765
    %v1767 = vpop.f32.mrf.mxu0
    %1768 = vdwg.mxu0
    %v1769 = vlaneseq
    %v1770 = vshrl.u32 %v1769, 7
    %v1771 = vsub.s32 0, %v1770
    %v1772 = vrot.slane %v1698, %v1771
    %v1773 = vmul.f32 %v1137, %v1772
    %v1774 = vadd.f32 %v1108, %v1773
    %v1775 = vmul.f32 %v1139, %v167
    %v1776 = vmul.f32 %v1611, %v168
    %v1777 = vadd.f32 %v1775, %v1776
    %v1778 = vmul.f32 %v1766, %v169
    %v1779 = vadd.f32 %v1777, %v1778
    %v1780 = vsel %vm1005, %v1779, 0.0
    %1781 = vadd.xlane.f32.xlu0 %v1780
    %v1782 = vpop.xlane.xlu0 %1781
    %v1783 = vxor.u32 %v1782, 2147483648
    %v1784 = vmul.f32 %v1783, 1.442695
    %v1785 = vpow.pop %v1784
    %v1786 = vadd.f32 %v1785, 1.0
    %v1787 = vrcp.pop %v1786
    %v1788 = vmul.f32 1.0, %v1787
    %v1789 = vlaneseq
    %v1790 = vshrl.u32 %v1789, 7
    %v1791 = vsub.s32 0, %v1790
    %v1792 = vrot.slane %v1788, %v1791
    %v1793 = vmul.f32 %v1137, %v1792
    %v1794 = vadd.f32 %v1128, %v1793
    %v1795 = vlaneseq
    %v1796 = vshrl.u32 %v1795, 7
    %v1797 = vsub.s32 0, %v1796
    %v1798 = vrot.slane %v1766, %v1797
    %v1799 = vmul.f32 %v1137, %v1798
    %v1800 = vadd.f32 %v1134, %v1799
    %vm1801 = vcmp.eq.s32.totalorder %v171, 2
    %v1802 = vsel %vm1801, 1, 0
    %v1803 = vcvt.s32.f32 %v1802
    %s1804 = scalar_lea.vmem [#allocation2], 2
    %v1805 = vld [vmem:[%s1804] sm:$0x1]
    %1806 = vmatprep.subr.mxu0 %v225
    %1807 = vmatpush1.msra.mxu0 %v224
    %1808 = vmatprep.subr.mxu0 %v222
    %1809 = vmatpush1.msra.mxu0 %v221
    %1810 = vmatprep.subr.mxu0 %v219
    %1811 = vmatpush1.msra.mxu0 %v218
    %1812 = vmatprep.subr.mxu0 %v216
    %1813 = vmatpush1.msra.mxu0 %v215
    %1814 = vmatprep.subr.mxu0 %v213
    %1815 = vmatpush1.msra.mxu0 %v212
    %1816 = vmatprep.subr.mxu0 %v210
    %1817 = vmatpush1.msra.mxu0 %v209
    %1818 = vmatprep.subr.mxu0 %v207
    %1819 = vmatpush1.msra.mxu0 %v206
    %1820 = vmatprep.subr.mxu0 %v204
    %1821 = vmatpush1.msra.mxu0 %v203
    %1822 = vmatprep.subr.mxu0 %v201
    %1823 = vmatpush1.msra.mxu0 %v200
    %1824 = vmatprep.subr.mxu0 %v198
    %1825 = vmatpush1.msra.mxu0 %v197
    %1826 = vmatprep.subr.mxu0 %v195
    %1827 = vmatpush1.msra.mxu0 %v194
    %1828 = vmatprep.subr.mxu0 %v192
    %1829 = vmatpush1.msra.mxu0 %v191
    %1830 = vmatprep.subr.mxu0 %v189
    %1831 = vmatpush1.msra.mxu0 %v188
    %1832 = vmatprep.subr.mxu0 %v186
    %1833 = vmatpush1.msra.mxu0 %v185
    %1834 = vmatprep.subr.mxu0 %v183
    %1835 = vmatpush1.msra.mxu0 %v182
    %1836 = vmatprep.subr.mxu0 %v180
    %1837 = vmatpush1.msra.mxu0 %v179
    %1838 = vmatprep.subr.mxu0 %v273
    %1839 = vmatpush2.msra.mxu0 %v272
    %1840 = vmatprep.subr.mxu0 %v270
    %1841 = vmatpush2.msra.mxu0 %v269
    %1842 = vmatprep.subr.mxu0 %v267
    %1843 = vmatpush2.msra.mxu0 %v266
    %1844 = vmatprep.subr.mxu0 %v264
    %1845 = vmatpush2.msra.mxu0 %v263
    %1846 = vmatprep.subr.mxu0 %v261
    %1847 = vmatpush2.msra.mxu0 %v260
    %1848 = vmatprep.subr.mxu0 %v258
    %1849 = vmatpush2.msra.mxu0 %v257
    %1850 = vmatprep.subr.mxu0 %v255
    %1851 = vmatpush2.msra.mxu0 %v254
    %1852 = vmatprep.subr.mxu0 %v252
    %1853 = vmatpush2.msra.mxu0 %v251
    %1854 = vmatprep.subr.mxu0 %v249
    %1855 = vmatpush2.msra.mxu0 %v248
    %1856 = vmatprep.subr.mxu0 %v246
    %1857 = vmatpush2.msra.mxu0 %v245
    %1858 = vmatprep.subr.mxu0 %v243
    %1859 = vmatpush2.msra.mxu0 %v242
    %1860 = vmatprep.subr.mxu0 %v240
    %1861 = vmatpush2.msra.mxu0 %v239
    %1862 = vmatprep.subr.mxu0 %v237
    %1863 = vmatpush2.msra.mxu0 %v236
    %1864 = vmatprep.subr.mxu0 %v234
    %1865 = vmatpush2.msra.mxu0 %v233
    %1866 = vmatprep.subr.mxu0 %v231
    %1867 = vmatpush2.msra.mxu0 %v230
    %1868 = vmatprep.subr.mxu0 %v228
    %1869 = vmatpush2.msra.mxu0 %v227
    %1870 = vmatprep.mubr.f32.mxu0 %v1372
    %1871 = vmatmul.mubr.f32.gmra.mxu0 %v1805
    %v1872 = vpop.f32.mrf.mxu0
    %v1873 = vadd.f32 0.0, %v1872
    %v1874 = vpop.f32.mrf.mxu0
    %v1875 = vadd.f32 0.0, %v1874
    %1876 = vdwg.mxu0
    %1877 = vmatprep.subr.mxu0 0.0
    %1878 = vmatpush1.msra.mxu0 %v226
    %1879 = vmatprep.subr.mxu0 0.0
    %1880 = vmatpush1.msra.mxu0 %v223
    %1881 = vmatprep.subr.mxu0 0.0
    %1882 = vmatpush1.msra.mxu0 %v220
    %1883 = vmatprep.subr.mxu0 0.0
    %1884 = vmatpush1.msra.mxu0 %v217
    %1885 = vmatprep.subr.mxu0 0.0
    %1886 = vmatpush1.msra.mxu0 %v214
    %1887 = vmatprep.subr.mxu0 0.0
    %1888 = vmatpush1.msra.mxu0 %v211
    %1889 = vmatprep.subr.mxu0 0.0
    %1890 = vmatpush1.msra.mxu0 %v208
    %1891 = vmatprep.subr.mxu0 0.0
    %1892 = vmatpush1.msra.mxu0 %v205
    %1893 = vmatprep.subr.mxu0 0.0
    %1894 = vmatpush1.msra.mxu0 %v202
    %1895 = vmatprep.subr.mxu0 0.0
    %1896 = vmatpush1.msra.mxu0 %v199
    %1897 = vmatprep.subr.mxu0 0.0
    %1898 = vmatpush1.msra.mxu0 %v196
    %1899 = vmatprep.subr.mxu0 0.0
    %1900 = vmatpush1.msra.mxu0 %v193
    %1901 = vmatprep.subr.mxu0 0.0
    %1902 = vmatpush1.msra.mxu0 %v190
    %1903 = vmatprep.subr.mxu0 0.0
    %1904 = vmatpush1.msra.mxu0 %v187
    %1905 = vmatprep.subr.mxu0 0.0
    %1906 = vmatpush1.msra.mxu0 %v184
    %1907 = vmatprep.subr.mxu0 0.0
    %1908 = vmatpush1.msra.mxu0 %v181
    %1909 = vmatprep.subr.mxu0 0.0
    %1910 = vmatpush2.msra.mxu0 %v274
    %1911 = vmatprep.subr.mxu0 0.0
    %1912 = vmatpush2.msra.mxu0 %v271
    %1913 = vmatprep.subr.mxu0 0.0
    %1914 = vmatpush2.msra.mxu0 %v268
    %1915 = vmatprep.subr.mxu0 0.0
    %1916 = vmatpush2.msra.mxu0 %v265
    %1917 = vmatprep.subr.mxu0 0.0
    %1918 = vmatpush2.msra.mxu0 %v262
    %1919 = vmatprep.subr.mxu0 0.0
    %1920 = vmatpush2.msra.mxu0 %v259
    %1921 = vmatprep.subr.mxu0 0.0
    %1922 = vmatpush2.msra.mxu0 %v256
    %1923 = vmatprep.subr.mxu0 0.0
    %1924 = vmatpush2.msra.mxu0 %v253
    %1925 = vmatprep.subr.mxu0 0.0
    %1926 = vmatpush2.msra.mxu0 %v250
    %1927 = vmatprep.subr.mxu0 0.0
    %1928 = vmatpush2.msra.mxu0 %v247
    %1929 = vmatprep.subr.mxu0 0.0
    %1930 = vmatpush2.msra.mxu0 %v244
    %1931 = vmatprep.subr.mxu0 0.0
    %1932 = vmatpush2.msra.mxu0 %v241
    %1933 = vmatprep.subr.mxu0 0.0
    %1934 = vmatpush2.msra.mxu0 %v238
    %1935 = vmatprep.subr.mxu0 0.0
    %1936 = vmatpush2.msra.mxu0 %v235
    %1937 = vmatprep.subr.mxu0 0.0
    %1938 = vmatpush2.msra.mxu0 %v232
    %1939 = vmatprep.subr.mxu0 0.0
    %1940 = vmatpush2.msra.mxu0 %v229
    %1941 = vmatprep.mubr.f32.mxu0 %v1372
    %1942 = vmatmul.mubr.f32.gmra.mxu0 %v1805
    %v1943 = vpop.f32.mrf.mxu0
    %v1944 = vadd.f32 0.0, %v1943
    %v1945 = vpop.f32.mrf.mxu0
    %1946 = vdwg.mxu0
    %v1947 = vadd.f32 %v1873, %v432
    %v1948 = vxor.u32 %v1947, 2147483648
    %v1949 = vmul.f32 %v1948, 1.442695
    %v1950 = vpow.pop %v1949
    %v1951 = vadd.f32 %v1950, 1.0
    %v1952 = vrcp.pop %v1951
    %v1953 = vmul.f32 1.0, %v1952
    %v1954 = vadd.f32 %v1875, %v444
    %v1955 = vxor.u32 %v1954, 2147483648
    %v1956 = vmul.f32 %v1955, 1.442695
    %v1957 = vpow.pop %v1956
    %v1958 = vadd.f32 %v1957, 1.0
    %v1959 = vrcp.pop %v1958
    %v1960 = vmul.f32 1.0, %v1959
    %v1961 = vadd.f32 %v1944, %v456
    %1962 = vmatprep.subr.mxu0 0.0
    %1963 = vmatpush1.msra.mxu0 %v431
    %1964 = vmatprep.subr.mxu0 0.0
    %1965 = vmatpush1.msra.mxu0 %v430
    %1966 = vmatprep.subr.mxu0 0.0
    %1967 = vmatpush1.msra.mxu0 %v429
    %1968 = vmatprep.subr.mxu0 0.0
    %1969 = vmatpush1.msra.mxu0 %v428
    %1970 = vmatprep.subr.mxu0 0.0
    %1971 = vmatpush1.msra.mxu0 %v427
    %1972 = vmatprep.subr.mxu0 0.0
    %1973 = vmatpush1.msra.mxu0 %v426
    %1974 = vmatprep.subr.mxu0 0.0
    %1975 = vmatpush1.msra.mxu0 %v425
    %1976 = vmatprep.subr.mxu0 0.0
    %1977 = vmatpush1.msra.mxu0 %v424
    %1978 = vmatprep.subr.mxu0 0.0
    %1979 = vmatpush1.msra.mxu0 %v423
    %1980 = vmatprep.subr.mxu0 0.0
    %1981 = vmatpush1.msra.mxu0 %v422
    %1982 = vmatprep.subr.mxu0 0.0
    %1983 = vmatpush1.msra.mxu0 %v421
    %1984 = vmatprep.subr.mxu0 0.0
    %1985 = vmatpush1.msra.mxu0 %v420
    %1986 = vmatprep.subr.mxu0 0.0
    %1987 = vmatpush1.msra.mxu0 %v419
    %1988 = vmatprep.subr.mxu0 0.0
    %1989 = vmatpush1.msra.mxu0 %v418
    %1990 = vmatprep.subr.mxu0 0.0
    %1991 = vmatpush1.msra.mxu0 %v417
    %1992 = vmatprep.subr.mxu0 0.0
    %1993 = vmatpush1.msra.mxu0 %v416
    %1994 = vmatprep.subr.mxu0 0.0
    %1995 = vmatpush2.msra.mxu0 0.0
    %1996 = vmatprep.subr.mxu0 0.0
    %1997 = vmatpush2.msra.mxu0 0.0
    %1998 = vmatprep.subr.mxu0 0.0
    %1999 = vmatpush2.msra.mxu0 0.0
    %2000 = vmatprep.subr.mxu0 0.0
    %2001 = vmatpush2.msra.mxu0 0.0
    %2002 = vmatprep.subr.mxu0 0.0
    %2003 = vmatpush2.msra.mxu0 0.0
    %2004 = vmatprep.subr.mxu0 0.0
    %2005 = vmatpush2.msra.mxu0 0.0
    %2006 = vmatprep.subr.mxu0 0.0
    %2007 = vmatpush2.msra.mxu0 0.0
    %2008 = vmatprep.subr.mxu0 0.0
    %2009 = vmatpush2.msra.mxu0 0.0
    %2010 = vmatprep.subr.mxu0 0.0
    %2011 = vmatpush2.msra.mxu0 0.0
    %2012 = vmatprep.subr.mxu0 0.0
    %2013 = vmatpush2.msra.mxu0 0.0
    %2014 = vmatprep.subr.mxu0 0.0
    %2015 = vmatpush2.msra.mxu0 0.0
    %2016 = vmatprep.subr.mxu0 0.0
    %2017 = vmatpush2.msra.mxu0 0.0
    %2018 = vmatprep.subr.mxu0 0.0
    %2019 = vmatpush2.msra.mxu0 0.0
    %2020 = vmatprep.subr.mxu0 0.0
    %2021 = vmatpush2.msra.mxu0 0.0
    %2022 = vmatprep.subr.mxu0 0.0
    %2023 = vmatpush2.msra.mxu0 0.0
    %2024 = vmatprep.subr.mxu0 0.0
    %2025 = vmatpush2.msra.mxu0 0.0
    %2026 = vmatprep.mubr.f32.mxu0 0.0
    %2027 = vmatmul.mubr.f32.gmra.mxu0 %v1372
    %v2028 = vpop.f32.mrf.mxu0
    %v2029 = vadd.f32 %v462, %v2028
    %v2030 = vpop.f32.mrf.mxu0
    %2031 = vdwg.mxu0
    %v2032 = vmul.f32 %v1953, %v2029
    %v2033 = vadd.f32 %v1961, %v2032
    %v2034 = vtanh.pop %v2033
    %v2035 = vsub.f32 1.0, %v1960
    %v2036 = vmul.f32 %v2035, %v2034
    %v2037 = vmul.f32 %v1960, %v1372
    %v2038 = vadd.f32 %v2036, %v2037
    %v2039 = vlaneseq
    %v2040 = vshrl.u32 %v2039, 7
    %v2041 = vsub.s32 0, %v2040
    %v2042 = vrot.slane %v2038, %v2041
    %v2043 = vmul.f32 %v1803, %v2042
    %v2044 = vadd.f32 %v1378, %v2043
    %2045 = vmatprep.subr.mxu0 %v594
    %2046 = vmatpush1.msra.mxu0 %v593
    %2047 = vmatprep.subr.mxu0 %v591
    %2048 = vmatpush1.msra.mxu0 %v590
    %2049 = vmatprep.subr.mxu0 %v588
    %2050 = vmatpush1.msra.mxu0 %v587
    %2051 = vmatprep.subr.mxu0 %v585
    %2052 = vmatpush1.msra.mxu0 %v584
    %2053 = vmatprep.subr.mxu0 %v582
    %2054 = vmatpush1.msra.mxu0 %v581
    %2055 = vmatprep.subr.mxu0 %v579
    %2056 = vmatpush1.msra.mxu0 %v578
    %2057 = vmatprep.subr.mxu0 %v576
    %2058 = vmatpush1.msra.mxu0 %v575
    %2059 = vmatprep.subr.mxu0 %v573
    %2060 = vmatpush1.msra.mxu0 %v572
    %2061 = vmatprep.subr.mxu0 %v570
    %2062 = vmatpush1.msra.mxu0 %v569
    %2063 = vmatprep.subr.mxu0 %v567
    %2064 = vmatpush1.msra.mxu0 %v566
    %2065 = vmatprep.subr.mxu0 %v564
    %2066 = vmatpush1.msra.mxu0 %v563
    %2067 = vmatprep.subr.mxu0 %v561
    %2068 = vmatpush1.msra.mxu0 %v560
    %2069 = vmatprep.subr.mxu0 %v558
    %2070 = vmatpush1.msra.mxu0 %v557
    %2071 = vmatprep.subr.mxu0 %v555
    %2072 = vmatpush1.msra.mxu0 %v554
    %2073 = vmatprep.subr.mxu0 %v552
    %2074 = vmatpush1.msra.mxu0 %v551
    %2075 = vmatprep.subr.mxu0 %v549
    %2076 = vmatpush1.msra.mxu0 %v548
    %2077 = vmatprep.subr.mxu0 %v642
    %2078 = vmatpush2.msra.mxu0 %v641
    %2079 = vmatprep.subr.mxu0 %v639
    %2080 = vmatpush2.msra.mxu0 %v638
    %2081 = vmatprep.subr.mxu0 %v636
    %2082 = vmatpush2.msra.mxu0 %v635
    %2083 = vmatprep.subr.mxu0 %v633
    %2084 = vmatpush2.msra.mxu0 %v632
    %2085 = vmatprep.subr.mxu0 %v630
    %2086 = vmatpush2.msra.mxu0 %v629
    %2087 = vmatprep.subr.mxu0 %v627
    %2088 = vmatpush2.msra.mxu0 %v626
    %2089 = vmatprep.subr.mxu0 %v624
    %2090 = vmatpush2.msra.mxu0 %v623
    %2091 = vmatprep.subr.mxu0 %v621
    %2092 = vmatpush2.msra.mxu0 %v620
    %2093 = vmatprep.subr.mxu0 %v618
    %2094 = vmatpush2.msra.mxu0 %v617
    %2095 = vmatprep.subr.mxu0 %v615
    %2096 = vmatpush2.msra.mxu0 %v614
    %2097 = vmatprep.subr.mxu0 %v612
    %2098 = vmatpush2.msra.mxu0 %v611
    %2099 = vmatprep.subr.mxu0 %v609
    %2100 = vmatpush2.msra.mxu0 %v608
    %2101 = vmatprep.subr.mxu0 %v606
    %2102 = vmatpush2.msra.mxu0 %v605
    %2103 = vmatprep.subr.mxu0 %v603
    %2104 = vmatpush2.msra.mxu0 %v602
    %2105 = vmatprep.subr.mxu0 %v600
    %2106 = vmatpush2.msra.mxu0 %v599
    %2107 = vmatprep.subr.mxu0 %v597
    %2108 = vmatpush2.msra.mxu0 %v596
    %2109 = vmatprep.mubr.f32.mxu0 %v1611
    %2110 = vmatmul.mubr.f32.gmra.mxu0 %v2038
    %v2111 = vpop.f32.mrf.mxu0
    %v2112 = vadd.f32 0.0, %v2111
    %v2113 = vpop.f32.mrf.mxu0
    %v2114 = vadd.f32 0.0, %v2113
    %2115 = vdwg.mxu0
    %2116 = vmatprep.subr.mxu0 0.0
    %2117 = vmatpush1.msra.mxu0 %v595
    %2118 = vmatprep.subr.mxu0 0.0
    %2119 = vmatpush1.msra.mxu0 %v592
    %2120 = vmatprep.subr.mxu0 0.0
    %2121 = vmatpush1.msra.mxu0 %v589
    %2122 = vmatprep.subr.mxu0 0.0
    %2123 = vmatpush1.msra.mxu0 %v586
    %2124 = vmatprep.subr.mxu0 0.0
    %2125 = vmatpush1.msra.mxu0 %v583
    %2126 = vmatprep.subr.mxu0 0.0
    %2127 = vmatpush1.msra.mxu0 %v580
    %2128 = vmatprep.subr.mxu0 0.0
    %2129 = vmatpush1.msra.mxu0 %v577
    %2130 = vmatprep.subr.mxu0 0.0
    %2131 = vmatpush1.msra.mxu0 %v574
    %2132 = vmatprep.subr.mxu0 0.0
    %2133 = vmatpush1.msra.mxu0 %v571
    %2134 = vmatprep.subr.mxu0 0.0
    %2135 = vmatpush1.msra.mxu0 %v568
    %2136 = vmatprep.subr.mxu0 0.0
    %2137 = vmatpush1.msra.mxu0 %v565
    %2138 = vmatprep.subr.mxu0 0.0
    %2139 = vmatpush1.msra.mxu0 %v562
    %2140 = vmatprep.subr.mxu0 0.0
    %2141 = vmatpush1.msra.mxu0 %v559
    %2142 = vmatprep.subr.mxu0 0.0
    %2143 = vmatpush1.msra.mxu0 %v556
    %2144 = vmatprep.subr.mxu0 0.0
    %2145 = vmatpush1.msra.mxu0 %v553
    %2146 = vmatprep.subr.mxu0 0.0
    %2147 = vmatpush1.msra.mxu0 %v550
    %2148 = vmatprep.subr.mxu0 0.0
    %2149 = vmatpush2.msra.mxu0 %v643
    %2150 = vmatprep.subr.mxu0 0.0
    %2151 = vmatpush2.msra.mxu0 %v640
    %2152 = vmatprep.subr.mxu0 0.0
    %2153 = vmatpush2.msra.mxu0 %v637
    %2154 = vmatprep.subr.mxu0 0.0
    %2155 = vmatpush2.msra.mxu0 %v634
    %2156 = vmatprep.subr.mxu0 0.0
    %2157 = vmatpush2.msra.mxu0 %v631
    %2158 = vmatprep.subr.mxu0 0.0
    %2159 = vmatpush2.msra.mxu0 %v628
    %2160 = vmatprep.subr.mxu0 0.0
    %2161 = vmatpush2.msra.mxu0 %v625
    %2162 = vmatprep.subr.mxu0 0.0
    %2163 = vmatpush2.msra.mxu0 %v622
    %2164 = vmatprep.subr.mxu0 0.0
    %2165 = vmatpush2.msra.mxu0 %v619
    %2166 = vmatprep.subr.mxu0 0.0
    %2167 = vmatpush2.msra.mxu0 %v616
    %2168 = vmatprep.subr.mxu0 0.0
    %2169 = vmatpush2.msra.mxu0 %v613
    %2170 = vmatprep.subr.mxu0 0.0
    %2171 = vmatpush2.msra.mxu0 %v610
    %2172 = vmatprep.subr.mxu0 0.0
    %2173 = vmatpush2.msra.mxu0 %v607
    %2174 = vmatprep.subr.mxu0 0.0
    %2175 = vmatpush2.msra.mxu0 %v604
    %2176 = vmatprep.subr.mxu0 0.0
    %2177 = vmatpush2.msra.mxu0 %v601
    %2178 = vmatprep.subr.mxu0 0.0
    %2179 = vmatpush2.msra.mxu0 %v598
    %2180 = vmatprep.mubr.f32.mxu0 %v1611
    %2181 = vmatmul.mubr.f32.gmra.mxu0 %v2038
    %v2182 = vpop.f32.mrf.mxu0
    %v2183 = vadd.f32 0.0, %v2182
    %v2184 = vpop.f32.mrf.mxu0
    %2185 = vdwg.mxu0
    %v2186 = vadd.f32 %v2112, %v803
    %v2187 = vxor.u32 %v2186, 2147483648
    %v2188 = vmul.f32 %v2187, 1.442695
    %v2189 = vpow.pop %v2188
    %v2190 = vadd.f32 %v2189, 1.0
    %v2191 = vrcp.pop %v2190
    %v2192 = vmul.f32 1.0, %v2191
    %v2193 = vadd.f32 %v2114, %v815
    %v2194 = vxor.u32 %v2193, 2147483648
    %v2195 = vmul.f32 %v2194, 1.442695
    %v2196 = vpow.pop %v2195
    %v2197 = vadd.f32 %v2196, 1.0
    %v2198 = vrcp.pop %v2197
    %v2199 = vmul.f32 1.0, %v2198
    %v2200 = vadd.f32 %v2183, %v827
    %2201 = vmatprep.subr.mxu0 0.0
    %2202 = vmatpush1.msra.mxu0 %v801
    %2203 = vmatprep.subr.mxu0 0.0
    %2204 = vmatpush1.msra.mxu0 %v800
    %2205 = vmatprep.subr.mxu0 0.0
    %2206 = vmatpush1.msra.mxu0 %v799
    %2207 = vmatprep.subr.mxu0 0.0
    %2208 = vmatpush1.msra.mxu0 %v798
    %2209 = vmatprep.subr.mxu0 0.0
    %2210 = vmatpush1.msra.mxu0 %v797
    %2211 = vmatprep.subr.mxu0 0.0
    %2212 = vmatpush1.msra.mxu0 %v796
    %2213 = vmatprep.subr.mxu0 0.0
    %2214 = vmatpush1.msra.mxu0 %v795
    %2215 = vmatprep.subr.mxu0 0.0
    %2216 = vmatpush1.msra.mxu0 %v794
    %2217 = vmatprep.subr.mxu0 0.0
    %2218 = vmatpush1.msra.mxu0 %v793
    %2219 = vmatprep.subr.mxu0 0.0
    %2220 = vmatpush1.msra.mxu0 %v792
    %2221 = vmatprep.subr.mxu0 0.0
    %2222 = vmatpush1.msra.mxu0 %v791
    %2223 = vmatprep.subr.mxu0 0.0
    %2224 = vmatpush1.msra.mxu0 %v790
    %2225 = vmatprep.subr.mxu0 0.0
    %2226 = vmatpush1.msra.mxu0 %v789
    %2227 = vmatprep.subr.mxu0 0.0
    %2228 = vmatpush1.msra.mxu0 %v788
    %2229 = vmatprep.subr.mxu0 0.0
    %2230 = vmatpush1.msra.mxu0 %v787
    %2231 = vmatprep.subr.mxu0 0.0
    %2232 = vmatpush1.msra.mxu0 %v786
    %2233 = vmatprep.subr.mxu0 0.0
    %2234 = vmatpush2.msra.mxu0 0.0
    %2235 = vmatprep.subr.mxu0 0.0
    %2236 = vmatpush2.msra.mxu0 0.0
    %2237 = vmatprep.subr.mxu0 0.0
    %2238 = vmatpush2.msra.mxu0 0.0
    %2239 = vmatprep.subr.mxu0 0.0
    %2240 = vmatpush2.msra.mxu0 0.0
    %2241 = vmatprep.subr.mxu0 0.0
    %2242 = vmatpush2.msra.mxu0 0.0
    %2243 = vmatprep.subr.mxu0 0.0
    %2244 = vmatpush2.msra.mxu0 0.0
    %2245 = vmatprep.subr.mxu0 0.0
    %2246 = vmatpush2.msra.mxu0 0.0
    %2247 = vmatprep.subr.mxu0 0.0
    %2248 = vmatpush2.msra.mxu0 0.0
    %2249 = vmatprep.subr.mxu0 0.0
    %2250 = vmatpush2.msra.mxu0 0.0
    %2251 = vmatprep.subr.mxu0 0.0
    %2252 = vmatpush2.msra.mxu0 0.0
    %2253 = vmatprep.subr.mxu0 0.0
    %2254 = vmatpush2.msra.mxu0 0.0
    %2255 = vmatprep.subr.mxu0 0.0
    %2256 = vmatpush2.msra.mxu0 0.0
    %2257 = vmatprep.subr.mxu0 0.0
    %2258 = vmatpush2.msra.mxu0 0.0
    %2259 = vmatprep.subr.mxu0 0.0
    %2260 = vmatpush2.msra.mxu0 0.0
    %2261 = vmatprep.subr.mxu0 0.0
    %2262 = vmatpush2.msra.mxu0 0.0
    %2263 = vmatprep.subr.mxu0 0.0
    %2264 = vmatpush2.msra.mxu0 0.0
    %2265 = vmatprep.mubr.f32.mxu0 0.0
    %2266 = vmatmul.mubr.f32.gmra.mxu0 %v1611
    %v2267 = vpop.f32.mrf.mxu0
    %v2268 = vadd.f32 %v833, %v2267
    %v2269 = vpop.f32.mrf.mxu0
    %2270 = vdwg.mxu0
    %v2271 = vmul.f32 %v2192, %v2268
    %v2272 = vadd.f32 %v2200, %v2271
    %v2273 = vtanh.pop %v2272
    %v2274 = vsub.f32 1.0, %v2199
    %v2275 = vmul.f32 %v2274, %v2273
    %v2276 = vmul.f32 %v2199, %v1611
    %v2277 = vadd.f32 %v2275, %v2276
    %v2278 = vlaneseq
    %v2279 = vshrl.u32 %v2278, 7
    %v2280 = vsub.s32 0, %v2279
    %v2281 = vrot.slane %v2277, %v2280
    %v2282 = vmul.f32 %v1803, %v2281
    %v2283 = vadd.f32 %v1617, %v2282
    %2284 = vmatprep.subr.mxu0 0.0
    %2285 = vmatpush1.msra.mxu0 %v933
    %2286 = vmatprep.subr.mxu0 0.0
    %2287 = vmatpush1.msra.mxu0 %v932
    %2288 = vmatprep.subr.mxu0 0.0
    %2289 = vmatpush1.msra.mxu0 %v931
    %2290 = vmatprep.subr.mxu0 0.0
    %2291 = vmatpush1.msra.mxu0 %v930
    %2292 = vmatprep.subr.mxu0 0.0
    %2293 = vmatpush1.msra.mxu0 %v929
    %2294 = vmatprep.subr.mxu0 0.0
    %2295 = vmatpush1.msra.mxu0 %v928
    %2296 = vmatprep.subr.mxu0 0.0
    %2297 = vmatpush1.msra.mxu0 %v927
    %2298 = vmatprep.subr.mxu0 0.0
    %2299 = vmatpush1.msra.mxu0 %v926
    %2300 = vmatprep.subr.mxu0 0.0
    %2301 = vmatpush1.msra.mxu0 %v925
    %2302 = vmatprep.subr.mxu0 0.0
    %2303 = vmatpush1.msra.mxu0 %v924
    %2304 = vmatprep.subr.mxu0 0.0
    %2305 = vmatpush1.msra.mxu0 %v923
    %2306 = vmatprep.subr.mxu0 0.0
    %2307 = vmatpush1.msra.mxu0 %v922
    %2308 = vmatprep.subr.mxu0 0.0
    %2309 = vmatpush1.msra.mxu0 %v921
    %2310 = vmatprep.subr.mxu0 0.0
    %2311 = vmatpush1.msra.mxu0 %v920
    %2312 = vmatprep.subr.mxu0 0.0
    %2313 = vmatpush1.msra.mxu0 %v919
    %2314 = vmatprep.subr.mxu0 0.0
    %2315 = vmatpush1.msra.mxu0 %v918
    %2316 = vmatprep.subr.mxu0 0.0
    %2317 = vmatpush2.msra.mxu0 0.0
    %2318 = vmatprep.subr.mxu0 0.0
    %2319 = vmatpush2.msra.mxu0 0.0
    %2320 = vmatprep.subr.mxu0 0.0
    %2321 = vmatpush2.msra.mxu0 0.0
    %2322 = vmatprep.subr.mxu0 0.0
    %2323 = vmatpush2.msra.mxu0 0.0
    %2324 = vmatprep.subr.mxu0 0.0
    %2325 = vmatpush2.msra.mxu0 0.0
    %2326 = vmatprep.subr.mxu0 0.0
    %2327 = vmatpush2.msra.mxu0 0.0
    %2328 = vmatprep.subr.mxu0 0.0
    %2329 = vmatpush2.msra.mxu0 0.0
    %2330 = vmatprep.subr.mxu0 0.0
    %2331 = vmatpush2.msra.mxu0 0.0
    %2332 = vmatprep.subr.mxu0 0.0
    %2333 = vmatpush2.msra.mxu0 0.0
    %2334 = vmatprep.subr.mxu0 0.0
    %2335 = vmatpush2.msra.mxu0 0.0
    %2336 = vmatprep.subr.mxu0 0.0
    %2337 = vmatpush2.msra.mxu0 0.0
    %2338 = vmatprep.subr.mxu0 0.0
    %2339 = vmatpush2.msra.mxu0 0.0
    %2340 = vmatprep.subr.mxu0 0.0
    %2341 = vmatpush2.msra.mxu0 0.0
    %2342 = vmatprep.subr.mxu0 0.0
    %2343 = vmatpush2.msra.mxu0 0.0
    %2344 = vmatprep.subr.mxu0 0.0
    %2345 = vmatpush2.msra.mxu0 0.0
    %2346 = vmatprep.subr.mxu0 0.0
    %2347 = vmatpush2.msra.mxu0 0.0
    %2348 = vmatprep.mubr.f32.mxu0 0.0
    %2349 = vmatmul.mubr.f32.gmra.mxu0 %v2277
    %v2350 = vpop.f32.mrf.mxu0
    %v2351 = vadd.f32 %v934, %v2350
    %v2352 = vpop.f32.mrf.mxu0
    %2353 = vdwg.mxu0
    %v2354 = vsel %vm1005, %v2351, -inf
    %2355 = vmax.xlane.f32.xlu0 %v2354
    %v2356 = vpop.xlane.xlu0 %2355
    %v2357 = vsub.f32 %v2351, %v2356
    %v2358 = vmul.f32 %v2357, 1.442695
    %v2359 = vpow.pop %v2358
    %v2360 = vsel %vm1005, %v2359, 0.0
    %2361 = vadd.xlane.f32.xlu0 %v2360
    %v2362 = vpop.xlane.xlu0 %2361
    %v2363 = vrcp.pop %v2362
    %v2364 = vmul.f32 %v2359, %v2363
    %2365 = vmatprep.subr.mxu0 0.0
    %2366 = vmatpush1.msra.mxu0 %v1032
    %2367 = vmatprep.subr.mxu0 0.0
    %2368 = vmatpush1.msra.mxu0 %v1031
    %2369 = vmatprep.subr.mxu0 0.0
    %2370 = vmatpush1.msra.mxu0 %v1030
    %2371 = vmatprep.subr.mxu0 0.0
    %2372 = vmatpush1.msra.mxu0 %v1029
    %2373 = vmatprep.subr.mxu0 0.0
    %2374 = vmatpush1.msra.mxu0 %v1028
    %2375 = vmatprep.subr.mxu0 0.0
    %2376 = vmatpush1.msra.mxu0 %v1027
    %2377 = vmatprep.subr.mxu0 0.0
    %2378 = vmatpush1.msra.mxu0 %v1026
    %2379 = vmatprep.subr.mxu0 0.0
    %2380 = vmatpush1.msra.mxu0 %v1025
    %2381 = vmatprep.subr.mxu0 0.0
    %2382 = vmatpush1.msra.mxu0 %v1024
    %2383 = vmatprep.subr.mxu0 0.0
    %2384 = vmatpush1.msra.mxu0 %v1023
    %2385 = vmatprep.subr.mxu0 0.0
    %2386 = vmatpush1.msra.mxu0 %v1022
    %2387 = vmatprep.subr.mxu0 0.0
    %2388 = vmatpush1.msra.mxu0 %v1021
    %2389 = vmatprep.subr.mxu0 0.0
    %2390 = vmatpush1.msra.mxu0 %v1020
    %2391 = vmatprep.subr.mxu0 0.0
    %2392 = vmatpush1.msra.mxu0 %v1019
    %2393 = vmatprep.subr.mxu0 0.0
    %2394 = vmatpush1.msra.mxu0 %v1018
    %2395 = vmatprep.subr.mxu0 0.0
    %2396 = vmatpush1.msra.mxu0 %v1017
    %2397 = vmatprep.subr.mxu0 0.0
    %2398 = vmatpush2.msra.mxu0 0.0
    %2399 = vmatprep.subr.mxu0 0.0
    %2400 = vmatpush2.msra.mxu0 0.0
    %2401 = vmatprep.subr.mxu0 0.0
    %2402 = vmatpush2.msra.mxu0 0.0
    %2403 = vmatprep.subr.mxu0 0.0
    %2404 = vmatpush2.msra.mxu0 0.0
    %2405 = vmatprep.subr.mxu0 0.0
    %2406 = vmatpush2.msra.mxu0 0.0
    %2407 = vmatprep.subr.mxu0 0.0
    %2408 = vmatpush2.msra.mxu0 0.0
    %2409 = vmatprep.subr.mxu0 0.0
    %2410 = vmatpush2.msra.mxu0 0.0
    %2411 = vmatprep.subr.mxu0 0.0
    %2412 = vmatpush2.msra.mxu0 0.0
    %2413 = vmatprep.subr.mxu0 0.0
    %2414 = vmatpush2.msra.mxu0 0.0
    %2415 = vmatprep.subr.mxu0 0.0
    %2416 = vmatpush2.msra.mxu0 0.0
    %2417 = vmatprep.subr.mxu0 0.0
    %2418 = vmatpush2.msra.mxu0 0.0
    %2419 = vmatprep.subr.mxu0 0.0
    %2420 = vmatpush2.msra.mxu0 0.0
    %2421 = vmatprep.subr.mxu0 0.0
    %2422 = vmatpush2.msra.mxu0 0.0
    %2423 = vmatprep.subr.mxu0 0.0
    %2424 = vmatpush2.msra.mxu0 0.0
    %2425 = vmatprep.subr.mxu0 0.0
    %2426 = vmatpush2.msra.mxu0 0.0
    %2427 = vmatprep.subr.mxu0 0.0
    %2428 = vmatpush2.msra.mxu0 0.0
    %2429 = vmatprep.mubr.f32.mxu0 0.0
    %2430 = vmatmul.mubr.f32.gmra.mxu0 %v2364
    %v2431 = vpop.f32.mrf.mxu0
    %v2432 = vadd.f32 0.0, %v2431
    %v2433 = vpop.f32.mrf.mxu0
    %2434 = vdwg.mxu0
    %v2435 = vlaneseq
    %v2436 = vshrl.u32 %v2435, 7
    %v2437 = vsub.s32 0, %v2436
    %v2438 = vrot.slane %v2364, %v2437
    %v2439 = vmul.f32 %v1803, %v2438
    %v2440 = vadd.f32 %v1774, %v2439
    %v2441 = vmul.f32 %v1805, %v167
    %v2442 = vmul.f32 %v2277, %v168
    %v2443 = vadd.f32 %v2441, %v2442
    %v2444 = vmul.f32 %v2432, %v169
    %v2445 = vadd.f32 %v2443, %v2444
    %v2446 = vsel %vm1005, %v2445, 0.0
    %2447 = vadd.xlane.f32.xlu0 %v2446
    %v2448 = vpop.xlane.xlu0 %2447
    %v2449 = vxor.u32 %v2448, 2147483648
    %v2450 = vmul.f32 %v2449, 1.442695
    %v2451 = vpow.pop %v2450
    %v2452 = vadd.f32 %v2451, 1.0
    %v2453 = vrcp.pop %v2452
    %v2454 = vmul.f32 1.0, %v2453
    %v2455 = vlaneseq
    %v2456 = vshrl.u32 %v2455, 7
    %v2457 = vsub.s32 0, %v2456
    %v2458 = vrot.slane %v2454, %v2457
    %v2459 = vmul.f32 %v1803, %v2458
    %v2460 = vadd.f32 %v1794, %v2459
    %v2461 = vlaneseq
    %v2462 = vshrl.u32 %v2461, 7
    %v2463 = vsub.s32 0, %v2462
    %v2464 = vrot.slane %v2432, %v2463
    %v2465 = vmul.f32 %v1803, %v2464
    %v2466 = vadd.f32 %v1800, %v2465
    %vm2467 = vcmp.eq.s32.totalorder %v171, 3
    %v2468 = vsel %vm2467, 1, 0
    %v2469 = vcvt.s32.f32 %v2468
    %s2470 = scalar_lea.vmem [#allocation2], 3
    %v2471 = vld [vmem:[%s2470] sm:$0x1]
    %2472 = vmatprep.subr.mxu0 %v225
    %2473 = vmatpush1.msra.mxu0 %v224
    %2474 = vmatprep.subr.mxu0 %v222
    %2475 = vmatpush1.msra.mxu0 %v221
    %2476 = vmatprep.subr.mxu0 %v219
    %2477 = vmatpush1.msra.mxu0 %v218
    %2478 = vmatprep.subr.mxu0 %v216
    %2479 = vmatpush1.msra.mxu0 %v215
    %2480 = vmatprep.subr.mxu0 %v213
    %2481 = vmatpush1.msra.mxu0 %v212
    %2482 = vmatprep.subr.mxu0 %v210
    %2483 = vmatpush1.msra.mxu0 %v209
    %2484 = vmatprep.subr.mxu0 %v207
    %2485 = vmatpush1.msra.mxu0 %v206
    %2486 = vmatprep.subr.mxu0 %v204
    %2487 = vmatpush1.msra.mxu0 %v203
    %2488 = vmatprep.subr.mxu0 %v201
    %2489 = vmatpush1.msra.mxu0 %v200
    %2490 = vmatprep.subr.mxu0 %v198
    %2491 = vmatpush1.msra.mxu0 %v197
    %2492 = vmatprep.subr.mxu0 %v195
    %2493 = vmatpush1.msra.mxu0 %v194
    %2494 = vmatprep.subr.mxu0 %v192
    %2495 = vmatpush1.msra.mxu0 %v191
    %2496 = vmatprep.subr.mxu0 %v189
    %2497 = vmatpush1.msra.mxu0 %v188
    %2498 = vmatprep.subr.mxu0 %v186
    %2499 = vmatpush1.msra.mxu0 %v185
    %2500 = vmatprep.subr.mxu0 %v183
    %2501 = vmatpush1.msra.mxu0 %v182
    %2502 = vmatprep.subr.mxu0 %v180
    %2503 = vmatpush1.msra.mxu0 %v179
    %2504 = vmatprep.subr.mxu0 %v273
    %2505 = vmatpush2.msra.mxu0 %v272
    %2506 = vmatprep.subr.mxu0 %v270
    %2507 = vmatpush2.msra.mxu0 %v269
    %2508 = vmatprep.subr.mxu0 %v267
    %2509 = vmatpush2.msra.mxu0 %v266
    %2510 = vmatprep.subr.mxu0 %v264
    %2511 = vmatpush2.msra.mxu0 %v263
    %2512 = vmatprep.subr.mxu0 %v261
    %2513 = vmatpush2.msra.mxu0 %v260
    %2514 = vmatprep.subr.mxu0 %v258
    %2515 = vmatpush2.msra.mxu0 %v257
    %2516 = vmatprep.subr.mxu0 %v255
    %2517 = vmatpush2.msra.mxu0 %v254
    %2518 = vmatprep.subr.mxu0 %v252
    %2519 = vmatpush2.msra.mxu0 %v251
    %2520 = vmatprep.subr.mxu0 %v249
    %2521 = vmatpush2.msra.mxu0 %v248
    %2522 = vmatprep.subr.mxu0 %v246
    %2523 = vmatpush2.msra.mxu0 %v245
    %2524 = vmatprep.subr.mxu0 %v243
    %2525 = vmatpush2.msra.mxu0 %v242
    %2526 = vmatprep.subr.mxu0 %v240
    %2527 = vmatpush2.msra.mxu0 %v239
    %2528 = vmatprep.subr.mxu0 %v237
    %2529 = vmatpush2.msra.mxu0 %v236
    %2530 = vmatprep.subr.mxu0 %v234
    %2531 = vmatpush2.msra.mxu0 %v233
    %2532 = vmatprep.subr.mxu0 %v231
    %2533 = vmatpush2.msra.mxu0 %v230
    %2534 = vmatprep.subr.mxu0 %v228
    %2535 = vmatpush2.msra.mxu0 %v227
    %2536 = vmatprep.mubr.f32.mxu0 %v2038
    %2537 = vmatmul.mubr.f32.gmra.mxu0 %v2471
    %v2538 = vpop.f32.mrf.mxu0
    %v2539 = vadd.f32 0.0, %v2538
    %v2540 = vpop.f32.mrf.mxu0
    %v2541 = vadd.f32 0.0, %v2540
    %2542 = vdwg.mxu0
    %2543 = vmatprep.subr.mxu0 0.0
    %2544 = vmatpush1.msra.mxu0 %v226
    %2545 = vmatprep.subr.mxu0 0.0
    %2546 = vmatpush1.msra.mxu0 %v223
    %2547 = vmatprep.subr.mxu0 0.0
    %2548 = vmatpush1.msra.mxu0 %v220
    %2549 = vmatprep.subr.mxu0 0.0
    %2550 = vmatpush1.msra.mxu0 %v217
    %2551 = vmatprep.subr.mxu0 0.0
    %2552 = vmatpush1.msra.mxu0 %v214
    %2553 = vmatprep.subr.mxu0 0.0
    %2554 = vmatpush1.msra.mxu0 %v211
    %2555 = vmatprep.subr.mxu0 0.0
    %2556 = vmatpush1.msra.mxu0 %v208
    %2557 = vmatprep.subr.mxu0 0.0
    %2558 = vmatpush1.msra.mxu0 %v205
    %2559 = vmatprep.subr.mxu0 0.0
    %2560 = vmatpush1.msra.mxu0 %v202
    %2561 = vmatprep.subr.mxu0 0.0
    %2562 = vmatpush1.msra.mxu0 %v199
    %2563 = vmatprep.subr.mxu0 0.0
    %2564 = vmatpush1.msra.mxu0 %v196
    %2565 = vmatprep.subr.mxu0 0.0
    %2566 = vmatpush1.msra.mxu0 %v193
    %2567 = vmatprep.subr.mxu0 0.0
    %2568 = vmatpush1.msra.mxu0 %v190
    %2569 = vmatprep.subr.mxu0 0.0
    %2570 = vmatpush1.msra.mxu0 %v187
    %2571 = vmatprep.subr.mxu0 0.0
    %2572 = vmatpush1.msra.mxu0 %v184
    %2573 = vmatprep.subr.mxu0 0.0
    %2574 = vmatpush1.msra.mxu0 %v181
    %2575 = vmatprep.subr.mxu0 0.0
    %2576 = vmatpush2.msra.mxu0 %v274
    %2577 = vmatprep.subr.mxu0 0.0
    %2578 = vmatpush2.msra.mxu0 %v271
    %2579 = vmatprep.subr.mxu0 0.0
    %2580 = vmatpush2.msra.mxu0 %v268
    %2581 = vmatprep.subr.mxu0 0.0
    %2582 = vmatpush2.msra.mxu0 %v265
    %2583 = vmatprep.subr.mxu0 0.0
    %2584 = vmatpush2.msra.mxu0 %v262
    %2585 = vmatprep.subr.mxu0 0.0
    %2586 = vmatpush2.msra.mxu0 %v259
    %2587 = vmatprep.subr.mxu0 0.0
    %2588 = vmatpush2.msra.mxu0 %v256
    %2589 = vmatprep.subr.mxu0 0.0
    %2590 = vmatpush2.msra.mxu0 %v253
    %2591 = vmatprep.subr.mxu0 0.0
    %2592 = vmatpush2.msra.mxu0 %v250
    %2593 = vmatprep.subr.mxu0 0.0
    %2594 = vmatpush2.msra.mxu0 %v247
    %2595 = vmatprep.subr.mxu0 0.0
    %2596 = vmatpush2.msra.mxu0 %v244
    %2597 = vmatprep.subr.mxu0 0.0
    %2598 = vmatpush2.msra.mxu0 %v241
    %2599 = vmatprep.subr.mxu0 0.0
    %2600 = vmatpush2.msra.mxu0 %v238
    %2601 = vmatprep.subr.mxu0 0.0
    %2602 = vmatpush2.msra.mxu0 %v235
    %2603 = vmatprep.subr.mxu0 0.0
    %2604 = vmatpush2.msra.mxu0 %v232
    %2605 = vmatprep.subr.mxu0 0.0
    %2606 = vmatpush2.msra.mxu0 %v229
    %2607 = vmatprep.mubr.f32.mxu0 %v2038
    %2608 = vmatmul.mubr.f32.gmra.mxu0 %v2471
    %v2609 = vpop.f32.mrf.mxu0
    %v2610 = vadd.f32 0.0, %v2609
    %v2611 = vpop.f32.mrf.mxu0
    %2612 = vdwg.mxu0
    %v2613 = vadd.f32 %v2539, %v432
    %v2614 = vxor.u32 %v2613, 2147483648
    %v2615 = vmul.f32 %v2614, 1.442695
    %v2616 = vpow.pop %v2615
    %v2617 = vadd.f32 %v2616, 1.0
    %v2618 = vrcp.pop %v2617
    %v2619 = vmul.f32 1.0, %v2618
    %v2620 = vadd.f32 %v2541, %v444
    %v2621 = vxor.u32 %v2620, 2147483648
    %v2622 = vmul.f32 %v2621, 1.442695
    %v2623 = vpow.pop %v2622
    %v2624 = vadd.f32 %v2623, 1.0
    %v2625 = vrcp.pop %v2624
    %v2626 = vmul.f32 1.0, %v2625
    %v2627 = vadd.f32 %v2610, %v456
    %2628 = vmatprep.subr.mxu0 0.0
    %2629 = vmatpush1.msra.mxu0 %v431
    %2630 = vmatprep.subr.mxu0 0.0
    %2631 = vmatpush1.msra.mxu0 %v430
    %2632 = vmatprep.subr.mxu0 0.0
    %2633 = vmatpush1.msra.mxu0 %v429
    %2634 = vmatprep.subr.mxu0 0.0
    %2635 = vmatpush1.msra.mxu0 %v428
    %2636 = vmatprep.subr.mxu0 0.0
    %2637 = vmatpush1.msra.mxu0 %v427
    %2638 = vmatprep.subr.mxu0 0.0
    %2639 = vmatpush1.msra.mxu0 %v426
    %2640 = vmatprep.subr.mxu0 0.0
    %2641 = vmatpush1.msra.mxu0 %v425
    %2642 = vmatprep.subr.mxu0 0.0
    %2643 = vmatpush1.msra.mxu0 %v424
    %2644 = vmatprep.subr.mxu0 0.0
    %2645 = vmatpush1.msra.mxu0 %v423
    %2646 = vmatprep.subr.mxu0 0.0
    %2647 = vmatpush1.msra.mxu0 %v422
    %2648 = vmatprep.subr.mxu0 0.0
    %2649 = vmatpush1.msra.mxu0 %v421
    %2650 = vmatprep.subr.mxu0 0.0
    %2651 = vmatpush1.msra.mxu0 %v420
    %2652 = vmatprep.subr.mxu0 0.0
    %2653 = vmatpush1.msra.mxu0 %v419
    %2654 = vmatprep.subr.mxu0 0.0
    %2655 = vmatpush1.msra.mxu0 %v418
    %2656 = vmatprep.subr.mxu0 0.0
    %2657 = vmatpush1.msra.mxu0 %v417
    %2658 = vmatprep.subr.mxu0 0.0
    %2659 = vmatpush1.msra.mxu0 %v416
    %2660 = vmatprep.subr.mxu0 0.0
    %2661 = vmatpush2.msra.mxu0 0.0
    %2662 = vmatprep.subr.mxu0 0.0
    %2663 = vmatpush2.msra.mxu0 0.0
    %2664 = vmatprep.subr.mxu0 0.0
    %2665 = vmatpush2.msra.mxu0 0.0
    %2666 = vmatprep.subr.mxu0 0.0
    %2667 = vmatpush2.msra.mxu0 0.0
    %2668 = vmatprep.subr.mxu0 0.0
    %2669 = vmatpush2.msra.mxu0 0.0
    %2670 = vmatprep.subr.mxu0 0.0
    %2671 = vmatpush2.msra.mxu0 0.0
    %2672 = vmatprep.subr.mxu0 0.0
    %2673 = vmatpush2.msra.mxu0 0.0
    %2674 = vmatprep.subr.mxu0 0.0
    %2675 = vmatpush2.msra.mxu0 0.0
    %2676 = vmatprep.subr.mxu0 0.0
    %2677 = vmatpush2.msra.mxu0 0.0
    %2678 = vmatprep.subr.mxu0 0.0
    %2679 = vmatpush2.msra.mxu0 0.0
    %2680 = vmatprep.subr.mxu0 0.0
    %2681 = vmatpush2.msra.mxu0 0.0
    %2682 = vmatprep.subr.mxu0 0.0
    %2683 = vmatpush2.msra.mxu0 0.0
    %2684 = vmatprep.subr.mxu0 0.0
    %2685 = vmatpush2.msra.mxu0 0.0
    %2686 = vmatprep.subr.mxu0 0.0
    %2687 = vmatpush2.msra.mxu0 0.0
    %2688 = vmatprep.subr.mxu0 0.0
    %2689 = vmatpush2.msra.mxu0 0.0
    %2690 = vmatprep.subr.mxu0 0.0
    %2691 = vmatpush2.msra.mxu0 0.0
    %2692 = vmatprep.mubr.f32.mxu0 0.0
    %2693 = vmatmul.mubr.f32.gmra.mxu0 %v2038
    %v2694 = vpop.f32.mrf.mxu0
    %v2695 = vadd.f32 %v462, %v2694
    %v2696 = vpop.f32.mrf.mxu0
    %2697 = vdwg.mxu0
    %v2698 = vmul.f32 %v2619, %v2695
    %v2699 = vadd.f32 %v2627, %v2698
    %v2700 = vtanh.pop %v2699
    %v2701 = vsub.f32 1.0, %v2626
    %v2702 = vmul.f32 %v2701, %v2700
    %v2703 = vmul.f32 %v2626, %v2038
    %v2704 = vadd.f32 %v2702, %v2703
    %v2705 = vlaneseq
    %v2706 = vshrl.u32 %v2705, 7
    %v2707 = vsub.s32 0, %v2706
    %v2708 = vrot.slane %v2704, %v2707
    %v2709 = vmul.f32 %v2469, %v2708
    %v2710 = vadd.f32 %v2044, %v2709
    %2711 = vmatprep.subr.mxu0 %v594
    %2712 = vmatpush1.msra.mxu0 %v593
    %2713 = vmatprep.subr.mxu0 %v591
    %2714 = vmatpush1.msra.mxu0 %v590
    %2715 = vmatprep.subr.mxu0 %v588
    %2716 = vmatpush1.msra.mxu0 %v587
    %2717 = vmatprep.subr.mxu0 %v585
    %2718 = vmatpush1.msra.mxu0 %v584
    %2719 = vmatprep.subr.mxu0 %v582
    %2720 = vmatpush1.msra.mxu0 %v581
    %2721 = vmatprep.subr.mxu0 %v579
    %2722 = vmatpush1.msra.mxu0 %v578
    %2723 = vmatprep.subr.mxu0 %v576
    %2724 = vmatpush1.msra.mxu0 %v575
    %2725 = vmatprep.subr.mxu0 %v573
    %2726 = vmatpush1.msra.mxu0 %v572
    %2727 = vmatprep.subr.mxu0 %v570
    %2728 = vmatpush1.msra.mxu0 %v569
    %2729 = vmatprep.subr.mxu0 %v567
    %2730 = vmatpush1.msra.mxu0 %v566
    %2731 = vmatprep.subr.mxu0 %v564
    %2732 = vmatpush1.msra.mxu0 %v563
    %2733 = vmatprep.subr.mxu0 %v561
    %2734 = vmatpush1.msra.mxu0 %v560
    %2735 = vmatprep.subr.mxu0 %v558
    %2736 = vmatpush1.msra.mxu0 %v557
    %2737 = vmatprep.subr.mxu0 %v555
    %2738 = vmatpush1.msra.mxu0 %v554
    %2739 = vmatprep.subr.mxu0 %v552
    %2740 = vmatpush1.msra.mxu0 %v551
    %2741 = vmatprep.subr.mxu0 %v549
    %2742 = vmatpush1.msra.mxu0 %v548
    %2743 = vmatprep.subr.mxu0 %v642
    %2744 = vmatpush2.msra.mxu0 %v641
    %2745 = vmatprep.subr.mxu0 %v639
    %2746 = vmatpush2.msra.mxu0 %v638
    %2747 = vmatprep.subr.mxu0 %v636
    %2748 = vmatpush2.msra.mxu0 %v635
    %2749 = vmatprep.subr.mxu0 %v633
    %2750 = vmatpush2.msra.mxu0 %v632
    %2751 = vmatprep.subr.mxu0 %v630
    %2752 = vmatpush2.msra.mxu0 %v629
    %2753 = vmatprep.subr.mxu0 %v627
    %2754 = vmatpush2.msra.mxu0 %v626
    %2755 = vmatprep.subr.mxu0 %v624
    %2756 = vmatpush2.msra.mxu0 %v623
    %2757 = vmatprep.subr.mxu0 %v621
    %2758 = vmatpush2.msra.mxu0 %v620
    %2759 = vmatprep.subr.mxu0 %v618
    %2760 = vmatpush2.msra.mxu0 %v617
    %2761 = vmatprep.subr.mxu0 %v615
    %2762 = vmatpush2.msra.mxu0 %v614
    %2763 = vmatprep.subr.mxu0 %v612
    %2764 = vmatpush2.msra.mxu0 %v611
    %2765 = vmatprep.subr.mxu0 %v609
    %2766 = vmatpush2.msra.mxu0 %v608
    %2767 = vmatprep.subr.mxu0 %v606
    %2768 = vmatpush2.msra.mxu0 %v605
    %2769 = vmatprep.subr.mxu0 %v603
    %2770 = vmatpush2.msra.mxu0 %v602
    %2771 = vmatprep.subr.mxu0 %v600
    %2772 = vmatpush2.msra.mxu0 %v599
    %2773 = vmatprep.subr.mxu0 %v597
    %2774 = vmatpush2.msra.mxu0 %v596
    %2775 = vmatprep.mubr.f32.mxu0 %v2277
    %2776 = vmatmul.mubr.f32.gmra.mxu0 %v2704
    %v2777 = vpop.f32.mrf.mxu0
    %v2778 = vadd.f32 0.0, %v2777
    %v2779 = vpop.f32.mrf.mxu0
    %v2780 = vadd.f32 0.0, %v2779
    %2781 = vdwg.mxu0
    %2782 = vmatprep.subr.mxu0 0.0
    %2783 = vmatpush1.msra.mxu0 %v595
    %2784 = vmatprep.subr.mxu0 0.0
    %2785 = vmatpush1.msra.mxu0 %v592
    %2786 = vmatprep.subr.mxu0 0.0
    %2787 = vmatpush1.msra.mxu0 %v589
    %2788 = vmatprep.subr.mxu0 0.0
    %2789 = vmatpush1.msra.mxu0 %v586
    %2790 = vmatprep.subr.mxu0 0.0
    %2791 = vmatpush1.msra.mxu0 %v583
    %2792 = vmatprep.subr.mxu0 0.0
    %2793 = vmatpush1.msra.mxu0 %v580
    %2794 = vmatprep.subr.mxu0 0.0
    %2795 = vmatpush1.msra.mxu0 %v577
    %2796 = vmatprep.subr.mxu0 0.0
    %2797 = vmatpush1.msra.mxu0 %v574
    %2798 = vmatprep.subr.mxu0 0.0
    %2799 = vmatpush1.msra.mxu0 %v571
    %2800 = vmatprep.subr.mxu0 0.0
    %2801 = vmatpush1.msra.mxu0 %v568
    %2802 = vmatprep.subr.mxu0 0.0
    %2803 = vmatpush1.msra.mxu0 %v565
    %2804 = vmatprep.subr.mxu0 0.0
    %2805 = vmatpush1.msra.mxu0 %v562
    %2806 = vmatprep.subr.mxu0 0.0
    %2807 = vmatpush1.msra.mxu0 %v559
    %2808 = vmatprep.subr.mxu0 0.0
    %2809 = vmatpush1.msra.mxu0 %v556
    %2810 = vmatprep.subr.mxu0 0.0
    %2811 = vmatpush1.msra.mxu0 %v553
    %2812 = vmatprep.subr.mxu0 0.0
    %2813 = vmatpush1.msra.mxu0 %v550
    %2814 = vmatprep.subr.mxu0 0.0
    %2815 = vmatpush2.msra.mxu0 %v643
    %2816 = vmatprep.subr.mxu0 0.0
    %2817 = vmatpush2.msra.mxu0 %v640
    %2818 = vmatprep.subr.mxu0 0.0
    %2819 = vmatpush2.msra.mxu0 %v637
    %2820 = vmatprep.subr.mxu0 0.0
    %2821 = vmatpush2.msra.mxu0 %v634
    %2822 = vmatprep.subr.mxu0 0.0
    %2823 = vmatpush2.msra.mxu0 %v631
    %2824 = vmatprep.subr.mxu0 0.0
    %2825 = vmatpush2.msra.mxu0 %v628
    %2826 = vmatprep.subr.mxu0 0.0
    %2827 = vmatpush2.msra.mxu0 %v625
    %2828 = vmatprep.subr.mxu0 0.0
    %2829 = vmatpush2.msra.mxu0 %v622
    %2830 = vmatprep.subr.mxu0 0.0
    %2831 = vmatpush2.msra.mxu0 %v619
    %2832 = vmatprep.subr.mxu0 0.0
    %2833 = vmatpush2.msra.mxu0 %v616
    %2834 = vmatprep.subr.mxu0 0.0
    %2835 = vmatpush2.msra.mxu0 %v613
    %2836 = vmatprep.subr.mxu0 0.0
    %2837 = vmatpush2.msra.mxu0 %v610
    %2838 = vmatprep.subr.mxu0 0.0
    %2839 = vmatpush2.msra.mxu0 %v607
    %2840 = vmatprep.subr.mxu0 0.0
    %2841 = vmatpush2.msra.mxu0 %v604
    %2842 = vmatprep.subr.mxu0 0.0
    %2843 = vmatpush2.msra.mxu0 %v601
    %2844 = vmatprep.subr.mxu0 0.0
    %2845 = vmatpush2.msra.mxu0 %v598
    %2846 = vmatprep.mubr.f32.mxu0 %v2277
    %2847 = vmatmul.mubr.f32.gmra.mxu0 %v2704
    %v2848 = vpop.f32.mrf.mxu0
    %v2849 = vadd.f32 0.0, %v2848
    %v2850 = vpop.f32.mrf.mxu0
    %2851 = vdwg.mxu0
    %v2852 = vadd.f32 %v2778, %v803
    %v2853 = vxor.u32 %v2852, 2147483648
    %v2854 = vmul.f32 %v2853, 1.442695
    %v2855 = vpow.pop %v2854
    %v2856 = vadd.f32 %v2855, 1.0
    %v2857 = vrcp.pop %v2856
    %v2858 = vmul.f32 1.0, %v2857
    %v2859 = vadd.f32 %v2780, %v815
    %v2860 = vxor.u32 %v2859, 2147483648
    %v2861 = vmul.f32 %v2860, 1.442695
    %v2862 = vpow.pop %v2861
    %v2863 = vadd.f32 %v2862, 1.0
    %v2864 = vrcp.pop %v2863
    %v2865 = vmul.f32 1.0, %v2864
    %v2866 = vadd.f32 %v2849, %v827
    %2867 = vmatprep.subr.mxu0 0.0
    %2868 = vmatpush1.msra.mxu0 %v801
    %2869 = vmatprep.subr.mxu0 0.0
    %2870 = vmatpush1.msra.mxu0 %v800
    %2871 = vmatprep.subr.mxu0 0.0
    %2872 = vmatpush1.msra.mxu0 %v799
    %2873 = vmatprep.subr.mxu0 0.0
    %2874 = vmatpush1.msra.mxu0 %v798
    %2875 = vmatprep.subr.mxu0 0.0
    %2876 = vmatpush1.msra.mxu0 %v797
    %2877 = vmatprep.subr.mxu0 0.0
    %2878 = vmatpush1.msra.mxu0 %v796
    %2879 = vmatprep.subr.mxu0 0.0
    %2880 = vmatpush1.msra.mxu0 %v795
    %2881 = vmatprep.subr.mxu0 0.0
    %2882 = vmatpush1.msra.mxu0 %v794
    %2883 = vmatprep.subr.mxu0 0.0
    %2884 = vmatpush1.msra.mxu0 %v793
    %2885 = vmatprep.subr.mxu0 0.0
    %2886 = vmatpush1.msra.mxu0 %v792
    %2887 = vmatprep.subr.mxu0 0.0
    %2888 = vmatpush1.msra.mxu0 %v791
    %2889 = vmatprep.subr.mxu0 0.0
    %2890 = vmatpush1.msra.mxu0 %v790
    %2891 = vmatprep.subr.mxu0 0.0
    %2892 = vmatpush1.msra.mxu0 %v789
    %2893 = vmatprep.subr.mxu0 0.0
    %2894 = vmatpush1.msra.mxu0 %v788
    %2895 = vmatprep.subr.mxu0 0.0
    %2896 = vmatpush1.msra.mxu0 %v787
    %2897 = vmatprep.subr.mxu0 0.0
    %2898 = vmatpush1.msra.mxu0 %v786
    %2899 = vmatprep.subr.mxu0 0.0
    %2900 = vmatpush2.msra.mxu0 0.0
    %2901 = vmatprep.subr.mxu0 0.0
    %2902 = vmatpush2.msra.mxu0 0.0
    %2903 = vmatprep.subr.mxu0 0.0
    %2904 = vmatpush2.msra.mxu0 0.0
    %2905 = vmatprep.subr.mxu0 0.0
    %2906 = vmatpush2.msra.mxu0 0.0
    %2907 = vmatprep.subr.mxu0 0.0
    %2908 = vmatpush2.msra.mxu0 0.0
    %2909 = vmatprep.subr.mxu0 0.0
    %2910 = vmatpush2.msra.mxu0 0.0
    %2911 = vmatprep.subr.mxu0 0.0
    %2912 = vmatpush2.msra.mxu0 0.0
    %2913 = vmatprep.subr.mxu0 0.0
    %2914 = vmatpush2.msra.mxu0 0.0
    %2915 = vmatprep.subr.mxu0 0.0
    %2916 = vmatpush2.msra.mxu0 0.0
    %2917 = vmatprep.subr.mxu0 0.0
    %2918 = vmatpush2.msra.mxu0 0.0
    %2919 = vmatprep.subr.mxu0 0.0
    %2920 = vmatpush2.msra.mxu0 0.0
    %2921 = vmatprep.subr.mxu0 0.0
    %2922 = vmatpush2.msra.mxu0 0.0
    %2923 = vmatprep.subr.mxu0 0.0
    %2924 = vmatpush2.msra.mxu0 0.0
    %2925 = vmatprep.subr.mxu0 0.0
    %2926 = vmatpush2.msra.mxu0 0.0
    %2927 = vmatprep.subr.mxu0 0.0
    %2928 = vmatpush2.msra.mxu0 0.0
    %2929 = vmatprep.subr.mxu0 0.0
    %2930 = vmatpush2.msra.mxu0 0.0
    %2931 = vmatprep.mubr.f32.mxu0 0.0
    %2932 = vmatmul.mubr.f32.gmra.mxu0 %v2277
    %v2933 = vpop.f32.mrf.mxu0
    %v2934 = vadd.f32 %v833, %v2933
    %v2935 = vpop.f32.mrf.mxu0
    %2936 = vdwg.mxu0
    %v2937 = vmul.f32 %v2858, %v2934
    %v2938 = vadd.f32 %v2866, %v2937
    %v2939 = vtanh.pop %v2938
    %v2940 = vsub.f32 1.0, %v2865
    %v2941 = vmul.f32 %v2940, %v2939
    %v2942 = vmul.f32 %v2865, %v2277
    %v2943 = vadd.f32 %v2941, %v2942
    %v2944 = vlaneseq
    %v2945 = vshrl.u32 %v2944, 7
    %v2946 = vsub.s32 0, %v2945
    %v2947 = vrot.slane %v2943, %v2946
    %v2948 = vmul.f32 %v2469, %v2947
    %v2949 = vadd.f32 %v2283, %v2948
    %2950 = vmatprep.subr.mxu0 0.0
    %2951 = vmatpush1.msra.mxu0 %v933
    %2952 = vmatprep.subr.mxu0 0.0
    %2953 = vmatpush1.msra.mxu0 %v932
    %2954 = vmatprep.subr.mxu0 0.0
    %2955 = vmatpush1.msra.mxu0 %v931
    %2956 = vmatprep.subr.mxu0 0.0
    %2957 = vmatpush1.msra.mxu0 %v930
    %2958 = vmatprep.subr.mxu0 0.0
    %2959 = vmatpush1.msra.mxu0 %v929
    %2960 = vmatprep.subr.mxu0 0.0
    %2961 = vmatpush1.msra.mxu0 %v928
    %2962 = vmatprep.subr.mxu0 0.0
    %2963 = vmatpush1.msra.mxu0 %v927
    %2964 = vmatprep.subr.mxu0 0.0
    %2965 = vmatpush1.msra.mxu0 %v926
    %2966 = vmatprep.subr.mxu0 0.0
    %2967 = vmatpush1.msra.mxu0 %v925
    %2968 = vmatprep.subr.mxu0 0.0
    %2969 = vmatpush1.msra.mxu0 %v924
    %2970 = vmatprep.subr.mxu0 0.0
    %2971 = vmatpush1.msra.mxu0 %v923
    %2972 = vmatprep.subr.mxu0 0.0
    %2973 = vmatpush1.msra.mxu0 %v922
    %2974 = vmatprep.subr.mxu0 0.0
    %2975 = vmatpush1.msra.mxu0 %v921
    %2976 = vmatprep.subr.mxu0 0.0
    %2977 = vmatpush1.msra.mxu0 %v920
    %2978 = vmatprep.subr.mxu0 0.0
    %2979 = vmatpush1.msra.mxu0 %v919
    %2980 = vmatprep.subr.mxu0 0.0
    %2981 = vmatpush1.msra.mxu0 %v918
    %2982 = vmatprep.subr.mxu0 0.0
    %2983 = vmatpush2.msra.mxu0 0.0
    %2984 = vmatprep.subr.mxu0 0.0
    %2985 = vmatpush2.msra.mxu0 0.0
    %2986 = vmatprep.subr.mxu0 0.0
    %2987 = vmatpush2.msra.mxu0 0.0
    %2988 = vmatprep.subr.mxu0 0.0
    %2989 = vmatpush2.msra.mxu0 0.0
    %2990 = vmatprep.subr.mxu0 0.0
    %2991 = vmatpush2.msra.mxu0 0.0
    %2992 = vmatprep.subr.mxu0 0.0
    %2993 = vmatpush2.msra.mxu0 0.0
    %2994 = vmatprep.subr.mxu0 0.0
    %2995 = vmatpush2.msra.mxu0 0.0
    %2996 = vmatprep.subr.mxu0 0.0
    %2997 = vmatpush2.msra.mxu0 0.0
    %2998 = vmatprep.subr.mxu0 0.0
    %2999 = vmatpush2.msra.mxu0 0.0
    %3000 = vmatprep.subr.mxu0 0.0
    %3001 = vmatpush2.msra.mxu0 0.0
    %3002 = vmatprep.subr.mxu0 0.0
    %3003 = vmatpush2.msra.mxu0 0.0
    %3004 = vmatprep.subr.mxu0 0.0
    %3005 = vmatpush2.msra.mxu0 0.0
    %3006 = vmatprep.subr.mxu0 0.0
    %3007 = vmatpush2.msra.mxu0 0.0
    %3008 = vmatprep.subr.mxu0 0.0
    %3009 = vmatpush2.msra.mxu0 0.0
    %3010 = vmatprep.subr.mxu0 0.0
    %3011 = vmatpush2.msra.mxu0 0.0
    %3012 = vmatprep.subr.mxu0 0.0
    %3013 = vmatpush2.msra.mxu0 0.0
    %3014 = vmatprep.mubr.f32.mxu0 0.0
    %3015 = vmatmul.mubr.f32.gmra.mxu0 %v2943
    %v3016 = vpop.f32.mrf.mxu0
    %v3017 = vadd.f32 %v934, %v3016
    %v3018 = vpop.f32.mrf.mxu0
    %3019 = vdwg.mxu0
    %v3020 = vsel %vm1005, %v3017, -inf
    %3021 = vmax.xlane.f32.xlu0 %v3020
    %v3022 = vpop.xlane.xlu0 %3021
    %v3023 = vsub.f32 %v3017, %v3022
    %v3024 = vmul.f32 %v3023, 1.442695
    %v3025 = vpow.pop %v3024
    %v3026 = vsel %vm1005, %v3025, 0.0
    %3027 = vadd.xlane.f32.xlu0 %v3026
    %v3028 = vpop.xlane.xlu0 %3027
    %v3029 = vrcp.pop %v3028
    %v3030 = vmul.f32 %v3025, %v3029
    %3031 = vmatprep.subr.mxu0 0.0
    %3032 = vmatpush1.msra.mxu0 %v1032
    %3033 = vmatprep.subr.mxu0 0.0
    %3034 = vmatpush1.msra.mxu0 %v1031
    %3035 = vmatprep.subr.mxu0 0.0
    %3036 = vmatpush1.msra.mxu0 %v1030
    %3037 = vmatprep.subr.mxu0 0.0
    %3038 = vmatpush1.msra.mxu0 %v1029
    %3039 = vmatprep.subr.mxu0 0.0
    %3040 = vmatpush1.msra.mxu0 %v1028
    %3041 = vmatprep.subr.mxu0 0.0
    %3042 = vmatpush1.msra.mxu0 %v1027
    %3043 = vmatprep.subr.mxu0 0.0
    %3044 = vmatpush1.msra.mxu0 %v1026
    %3045 = vmatprep.subr.mxu0 0.0
    %3046 = vmatpush1.msra.mxu0 %v1025
    %3047 = vmatprep.subr.mxu0 0.0
    %3048 = vmatpush1.msra.mxu0 %v1024
    %3049 = vmatprep.subr.mxu0 0.0
    %3050 = vmatpush1.msra.mxu0 %v1023
    %3051 = vmatprep.subr.mxu0 0.0
    %3052 = vmatpush1.msra.mxu0 %v1022
    %3053 = vmatprep.subr.mxu0 0.0
    %3054 = vmatpush1.msra.mxu0 %v1021
    %3055 = vmatprep.subr.mxu0 0.0
    %3056 = vmatpush1.msra.mxu0 %v1020
    %3057 = vmatprep.subr.mxu0 0.0
    %3058 = vmatpush1.msra.mxu0 %v1019
    %3059 = vmatprep.subr.mxu0 0.0
    %3060 = vmatpush1.msra.mxu0 %v1018
    %3061 = vmatprep.subr.mxu0 0.0
    %3062 = vmatpush1.msra.mxu0 %v1017
    %3063 = vmatprep.subr.mxu0 0.0
    %3064 = vmatpush2.msra.mxu0 0.0
    %3065 = vmatprep.subr.mxu0 0.0
    %3066 = vmatpush2.msra.mxu0 0.0
    %3067 = vmatprep.subr.mxu0 0.0
    %3068 = vmatpush2.msra.mxu0 0.0
    %3069 = vmatprep.subr.mxu0 0.0
    %3070 = vmatpush2.msra.mxu0 0.0
    %3071 = vmatprep.subr.mxu0 0.0
    %3072 = vmatpush2.msra.mxu0 0.0
    %3073 = vmatprep.subr.mxu0 0.0
    %3074 = vmatpush2.msra.mxu0 0.0
    %3075 = vmatprep.subr.mxu0 0.0
    %3076 = vmatpush2.msra.mxu0 0.0
    %3077 = vmatprep.subr.mxu0 0.0
    %3078 = vmatpush2.msra.mxu0 0.0
    %3079 = vmatprep.subr.mxu0 0.0
    %3080 = vmatpush2.msra.mxu0 0.0
    %3081 = vmatprep.subr.mxu0 0.0
    %3082 = vmatpush2.msra.mxu0 0.0
    %3083 = vmatprep.subr.mxu0 0.0
    %3084 = vmatpush2.msra.mxu0 0.0
    %3085 = vmatprep.subr.mxu0 0.0
    %3086 = vmatpush2.msra.mxu0 0.0
    %3087 = vmatprep.subr.mxu0 0.0
    %3088 = vmatpush2.msra.mxu0 0.0
    %3089 = vmatprep.subr.mxu0 0.0
    %3090 = vmatpush2.msra.mxu0 0.0
    %3091 = vmatprep.subr.mxu0 0.0
    %3092 = vmatpush2.msra.mxu0 0.0
    %3093 = vmatprep.subr.mxu0 0.0
    %3094 = vmatpush2.msra.mxu0 0.0
    %3095 = vmatprep.mubr.f32.mxu0 0.0
    %3096 = vmatmul.mubr.f32.gmra.mxu0 %v3030
    %v3097 = vpop.f32.mrf.mxu0
    %v3098 = vadd.f32 0.0, %v3097
    %v3099 = vpop.f32.mrf.mxu0
    %3100 = vdwg.mxu0
    %v3101 = vlaneseq
    %v3102 = vshrl.u32 %v3101, 7
    %v3103 = vsub.s32 0, %v3102
    %v3104 = vrot.slane %v3030, %v3103
    %v3105 = vmul.f32 %v2469, %v3104
    %v3106 = vadd.f32 %v2440, %v3105
    %v3107 = vmul.f32 %v2471, %v167
    %v3108 = vmul.f32 %v2943, %v168
    %v3109 = vadd.f32 %v3107, %v3108
    %v3110 = vmul.f32 %v3098, %v169
    %v3111 = vadd.f32 %v3109, %v3110
    %v3112 = vsel %vm1005, %v3111, 0.0
    %3113 = vadd.xlane.f32.xlu0 %v3112
    %v3114 = vpop.xlane.xlu0 %3113
    %v3115 = vxor.u32 %v3114, 2147483648
    %v3116 = vmul.f32 %v3115, 1.442695
    %v3117 = vpow.pop %v3116
    %v3118 = vadd.f32 %v3117, 1.0
    %v3119 = vrcp.pop %v3118
    %v3120 = vmul.f32 1.0, %v3119
    %v3121 = vlaneseq
    %v3122 = vshrl.u32 %v3121, 7
    %v3123 = vsub.s32 0, %v3122
    %v3124 = vrot.slane %v3120, %v3123
    %v3125 = vmul.f32 %v2469, %v3124
    %v3126 = vadd.f32 %v2460, %v3125
    %v3127 = vlaneseq
    %v3128 = vshrl.u32 %v3127, 7
    %v3129 = vsub.s32 0, %v3128
    %v3130 = vrot.slane %v3098, %v3129
    %v3131 = vmul.f32 %v2469, %v3130
    %v3132 = vadd.f32 %v2466, %v3131
    %3133 = vst [vmem:[#allocation18] sm:$0xff] %v2710
    %s3134 = scalar_lea.vmem [#allocation18], 8
    %3135 = vst [vmem:[%s3134] sm:$0xff] %v2949
    %3136 = vst [vmem:[#allocation20] sm:$0xff] %v3106
    %v3137 = vpack.c.bf16 %v3132, %v3132
    %v3138 = vpack.c.bf16 %v2949, %v2949
    %v3139 = vld [vmem:[#allocation14] sm:$0xf]
    %v3140 = vld [vmem:[#allocation14 + $0x4] sm:$0xf]
    %v3141 = vld [vmem:[#allocation14 + $0x8] sm:$0xf]
    %v3142 = vld [vmem:[#allocation14 + $0xc] sm:$0xf]
    %v3143 = vld [vmem:[#allocation14 + $0x10] sm:$0xf]
    %v3144 = vld [vmem:[#allocation14 + $0x14] sm:$0xf]
    %v3145 = vld [vmem:[#allocation14 + $0x18] sm:$0xf]
    %v3146 = vld [vmem:[#allocation14 + $0x1c] sm:$0xf]
    %v3147 = vld [vmem:[#allocation14 + $0x20] sm:$0xf]
    %v3148 = vld [vmem:[#allocation14 + $0x24] sm:$0xf]
    %v3149 = vld [vmem:[#allocation14 + $0x28] sm:$0xf]
    %v3150 = vld [vmem:[#allocation14 + $0x2c] sm:$0xf]
    %v3151 = vld [vmem:[#allocation14 + $0x30] sm:$0xf]
    %v3152 = vld [vmem:[#allocation14 + $0x34] sm:$0xf]
    %v3153 = vld [vmem:[#allocation14 + $0x38] sm:$0xf]
    %v3154 = vld [vmem:[#allocation14 + $0x3c] sm:$0xf]
    %v3155 = vld [vmem:[#allocation14 + $0x40] sm:$0xf]
    %v3156 = vld [vmem:[#allocation14 + $0x44] sm:$0xf]
    %v3157 = vld [vmem:[#allocation14 + $0x48] sm:$0xf]
    %v3158 = vld [vmem:[#allocation14 + $0x4c] sm:$0xf]
    %v3159 = vld [vmem:[#allocation14 + $0x50] sm:$0xf]
    %v3160 = vld [vmem:[#allocation14 + $0x54] sm:$0xf]
    %v3161 = vld [vmem:[#allocation14 + $0x58] sm:$0xf]
    %v3162 = vld [vmem:[#allocation14 + $0x5c] sm:$0xf]
    %v3163 = vld [vmem:[#allocation14 + $0x60] sm:$0xf]
    %v3164 = vld [vmem:[#allocation14 + $0x64] sm:$0xf]
    %v3165 = vld [vmem:[#allocation14 + $0x68] sm:$0xf]
    %v3166 = vld [vmem:[#allocation14 + $0x6c] sm:$0xf]
    %v3167 = vld [vmem:[#allocation14 + $0x70] sm:$0xf]
    %v3168 = vld [vmem:[#allocation14 + $0x74] sm:$0xf]
    %v3169 = vld [vmem:[#allocation14 + $0x78] sm:$0xf]
    %v3170 = vld [vmem:[#allocation14 + $0x7c] sm:$0xf]
    %v3203 = vunpack.c.l.b16 %v3139
    %v3204 = vunpack.c.l.b16 %v3140
    %v3205 = vunpack.c.l.b16 %v3141
    %v3206 = vunpack.c.l.b16 %v3142
    %v3207 = vunpack.c.l.b16 %v3143
    %v3208 = vunpack.c.l.b16 %v3144
    %v3209 = vunpack.c.l.b16 %v3145
    %v3210 = vunpack.c.l.b16 %v3146
    %v3211 = vunpack.c.l.b16 %v3147
    %v3212 = vunpack.c.l.b16 %v3148
    %v3213 = vunpack.c.l.b16 %v3149
    %v3214 = vunpack.c.l.b16 %v3150
    %v3215 = vunpack.c.l.b16 %v3151
    %v3216 = vunpack.c.l.b16 %v3152
    %v3217 = vunpack.c.l.b16 %v3153
    %v3218 = vunpack.c.l.b16 %v3154
    %v3219 = vunpack.c.l.b16 %v3155
    %v3220 = vunpack.c.l.b16 %v3156
    %v3221 = vunpack.c.l.b16 %v3157
    %v3222 = vunpack.c.l.b16 %v3158
    %v3223 = vunpack.c.l.b16 %v3159
    %v3224 = vunpack.c.l.b16 %v3160
    %v3225 = vunpack.c.l.b16 %v3161
    %v3226 = vunpack.c.l.b16 %v3162
    %v3227 = vunpack.c.l.b16 %v3163
    %v3228 = vunpack.c.l.b16 %v3164
    %v3229 = vunpack.c.l.b16 %v3165
    %v3230 = vunpack.c.l.b16 %v3166
    %v3231 = vunpack.c.l.b16 %v3167
    %v3232 = vunpack.c.l.b16 %v3168
    %v3233 = vunpack.c.l.b16 %v3169
    %v3234 = vunpack.c.l.b16 %v3170
    %v3235 = vpack.c.b16 %v3204, %v3203
    %v3236 = vpack.c.b16 %v3206, %v3205
    %v3237 = vpack.c.b16 %v3208, %v3207
    %v3238 = vpack.c.b16 %v3210, %v3209
    %v3239 = vpack.c.b16 %v3212, %v3211
    %v3240 = vpack.c.b16 %v3214, %v3213
    %v3241 = vpack.c.b16 %v3216, %v3215
    %v3242 = vpack.c.b16 %v3218, %v3217
    %v3243 = vpack.c.b16 %v3220, %v3219
    %v3244 = vpack.c.b16 %v3222, %v3221
    %v3245 = vpack.c.b16 %v3224, %v3223
    %v3246 = vpack.c.b16 %v3226, %v3225
    %v3247 = vpack.c.b16 %v3228, %v3227
    %v3248 = vpack.c.b16 %v3230, %v3229
    %v3249 = vpack.c.b16 %v3232, %v3231
    %v3250 = vpack.c.b16 %v3234, %v3233
    %3267 = vmatprep.subr.bf16.mxu0 0
    %3268 = vmatpush1.bf16.msra.mxu0 %v3242
    %3269 = vmatprep.subr.bf16.mxu0 0
    %3270 = vmatpush1.bf16.msra.mxu0 %v3241
    %3271 = vmatprep.subr.bf16.mxu0 0
    %3272 = vmatpush1.bf16.msra.mxu0 %v3240
    %3273 = vmatprep.subr.bf16.mxu0 0
    %3274 = vmatpush1.bf16.msra.mxu0 %v3239
    %3275 = vmatprep.subr.bf16.mxu0 0
    %3276 = vmatpush1.bf16.msra.mxu0 %v3238
    %3277 = vmatprep.subr.bf16.mxu0 0
    %3278 = vmatpush1.bf16.msra.mxu0 %v3237
    %3279 = vmatprep.subr.bf16.mxu0 0
    %3280 = vmatpush1.bf16.msra.mxu0 %v3236
    %3281 = vmatprep.subr.bf16.mxu0 0
    %3282 = vmatpush1.bf16.msra.mxu0 %v3235
    %3283 = vmatprep.subr.bf16.mxu0 0
    %3284 = vmatpush2.bf16.msra.mxu0 %v3250
    %3285 = vmatprep.subr.bf16.mxu0 0
    %3286 = vmatpush2.bf16.msra.mxu0 %v3249
    %3287 = vmatprep.subr.bf16.mxu0 0
    %3288 = vmatpush2.bf16.msra.mxu0 %v3248
    %3289 = vmatprep.subr.bf16.mxu0 0
    %3290 = vmatpush2.bf16.msra.mxu0 %v3247
    %3291 = vmatprep.subr.bf16.mxu0 0
    %3292 = vmatpush2.bf16.msra.mxu0 %v3246
    %3293 = vmatprep.subr.bf16.mxu0 0
    %3294 = vmatpush2.bf16.msra.mxu0 %v3245
    %3295 = vmatprep.subr.bf16.mxu0 0
    %3296 = vmatpush2.bf16.msra.mxu0 %v3244
    %3297 = vmatprep.subr.bf16.mxu0 0
    %3298 = vmatpush2.bf16.msra.mxu0 %v3243
    %3299 = vmatprep.mubr.bf16.mxu0 %v3138
    %3300 = vmatmul.mubr.bf16.gmra.mxu0 %v3137
    %v3301 = vpop.f32.mrf.mxu0
    %v3302 = vadd.f32 0.0, %v3301
    %v3303 = vpop.f32.mrf.mxu0
    %v3304 = vpop.f32.mrf.mxu0
    %v3305 = vpop.f32.mrf.mxu0
    %3306 = vdwg.mxu0
    %v3307 = vtanh.pop %v3302
    %v3308 = vpack.c.bf16 %v3307, %v3307
    %v3309 = vld [vmem:[#allocation16] sm:$0xf]
    %v3310 = vld [vmem:[#allocation16 + $0x4] sm:$0xf]
    %v3311 = vld [vmem:[#allocation16 + $0x8] sm:$0xf]
    %v3312 = vld [vmem:[#allocation16 + $0xc] sm:$0xf]
    %v3313 = vld [vmem:[#allocation16 + $0x10] sm:$0xf]
    %v3314 = vld [vmem:[#allocation16 + $0x14] sm:$0xf]
    %v3315 = vld [vmem:[#allocation16 + $0x18] sm:$0xf]
    %v3316 = vld [vmem:[#allocation16 + $0x1c] sm:$0xf]
    %v3317 = vld [vmem:[#allocation16 + $0x20] sm:$0xf]
    %v3318 = vld [vmem:[#allocation16 + $0x24] sm:$0xf]
    %v3319 = vld [vmem:[#allocation16 + $0x28] sm:$0xf]
    %v3320 = vld [vmem:[#allocation16 + $0x2c] sm:$0xf]
    %v3321 = vld [vmem:[#allocation16 + $0x30] sm:$0xf]
    %v3322 = vld [vmem:[#allocation16 + $0x34] sm:$0xf]
    %v3323 = vld [vmem:[#allocation16 + $0x38] sm:$0xf]
    %v3324 = vld [vmem:[#allocation16 + $0x3c] sm:$0xf]
    %v3325 = vld [vmem:[%s11] sm:$0x1]
    %v3326 = vlaneseq
    %v3327 = vshrl.u32 %v3326, 7
    %v3328 = vsub.s32 0, %v3327
    %v3329 = vrot.slane %v3325, %v3328
    %v3346 = vunpack.c.l.b16 %v3309
    %v3347 = vunpack.c.l.b16 %v3310
    %v3348 = vunpack.c.l.b16 %v3311
    %v3349 = vunpack.c.l.b16 %v3312
    %v3350 = vunpack.c.l.b16 %v3313
    %v3351 = vunpack.c.l.b16 %v3314
    %v3352 = vunpack.c.l.b16 %v3315
    %v3353 = vunpack.c.l.b16 %v3316
    %v3354 = vunpack.c.l.b16 %v3317
    %v3355 = vunpack.c.l.b16 %v3318
    %v3356 = vunpack.c.l.b16 %v3319
    %v3357 = vunpack.c.l.b16 %v3320
    %v3358 = vunpack.c.l.b16 %v3321
    %v3359 = vunpack.c.l.b16 %v3322
    %v3360 = vunpack.c.l.b16 %v3323
    %v3361 = vunpack.c.l.b16 %v3324
    %v3362 = vpack.c.b16 %v3347, %v3346
    %v3363 = vpack.c.b16 %v3349, %v3348
    %v3364 = vpack.c.b16 %v3351, %v3350
    %v3365 = vpack.c.b16 %v3353, %v3352
    %v3366 = vpack.c.b16 %v3355, %v3354
    %v3367 = vpack.c.b16 %v3357, %v3356
    %v3368 = vpack.c.b16 %v3359, %v3358
    %v3369 = vpack.c.b16 %v3361, %v3360
    %3378 = vmatprep.subr.bf16.mxu0 0
    %3379 = vmatpush1.bf16.msra.mxu0 %v3369
    %3380 = vmatprep.subr.bf16.mxu0 0
    %3381 = vmatpush1.bf16.msra.mxu0 %v3368
    %3382 = vmatprep.subr.bf16.mxu0 0
    %3383 = vmatpush1.bf16.msra.mxu0 %v3367
    %3384 = vmatprep.subr.bf16.mxu0 0
    %3385 = vmatpush1.bf16.msra.mxu0 %v3366
    %3386 = vmatprep.subr.bf16.mxu0 0
    %3387 = vmatpush1.bf16.msra.mxu0 %v3365
    %3388 = vmatprep.subr.bf16.mxu0 0
    %3389 = vmatpush1.bf16.msra.mxu0 %v3364
    %3390 = vmatprep.subr.bf16.mxu0 0
    %3391 = vmatpush1.bf16.msra.mxu0 %v3363
    %3392 = vmatprep.subr.bf16.mxu0 0
    %3393 = vmatpush1.bf16.msra.mxu0 %v3362
    %3394 = vmatprep.subr.bf16.mxu0 0
    %3395 = vmatpush2.bf16.msra.mxu0 0
    %3396 = vmatprep.subr.bf16.mxu0 0
    %3397 = vmatpush2.bf16.msra.mxu0 0
    %3398 = vmatprep.subr.bf16.mxu0 0
    %3399 = vmatpush2.bf16.msra.mxu0 0
    %3400 = vmatprep.subr.bf16.mxu0 0
    %3401 = vmatpush2.bf16.msra.mxu0 0
    %3402 = vmatprep.subr.bf16.mxu0 0
    %3403 = vmatpush2.bf16.msra.mxu0 0
    %3404 = vmatprep.subr.bf16.mxu0 0
    %3405 = vmatpush2.bf16.msra.mxu0 0
    %3406 = vmatprep.subr.bf16.mxu0 0
    %3407 = vmatpush2.bf16.msra.mxu0 0
    %3408 = vmatprep.subr.bf16.mxu0 0
    %3409 = vmatpush2.bf16.msra.mxu0 0
    %3410 = vmatprep.mubr.bf16.mxu0 0
    %3411 = vmatmul.mubr.bf16.gmra.mxu0 %v3308
    %v3412 = vpop.f32.mrf.mxu0
    %v3413 = vadd.f32 %v3329, %v3412
    %v3414 = vpop.f32.mrf.mxu0
    %v3415 = vpop.f32.mrf.mxu0
    %v3416 = vpop.f32.mrf.mxu0
    %3417 = vdwg.mxu0
    %v3418 = vmul.f32 %v3126, %v3413
    %v3419 = vld [vmem:[%s11 + $0x1] sm:$0x1]
    %v3420 = vlaneseq
    %v3421 = vshrl.u32 %v3420, 7
    %v3422 = vsub.s32 0, %v3421
    %v3423 = vrot.slane %v3419, %v3422
    %v3424 = vadd.f32 %v3418, %v3423
    %3425 = vmax.xlane.f32.xlu0 %v3424
    %v3426 = vpop.xlane.xlu0 %3425
    %v3427 = vsub.f32 %v3424, %v3426
    %v3428 = vmul.f32 %v3427, 1.442695
    %v3429 = vpow.pop %v3428
    %3430 = vadd.xlane.f32.xlu0 %v3429
    %v3431 = vpop.xlane.xlu0 %3430
    %v3432 = vlog2.pop %v3431
    %v3433 = vmul.f32 %v3432, 0.6931472
    %v3434 = vsub.f32 %v3427, %v3433
    %3435 = vst [vmem:[#allocation17] sm:$0xff] %v3434
    // Predicated region
    $region86: #{tpu_custom_call.1} parent=1 // pred_check
      _
    $region87: #{tpu_custom_call.1} parent=1 // pred_check_branch
      %3437 = sbr.rel (0) target = $region89
    $region88: #{tpu_custom_call.1} parent=1 // pred_region
      %s3439 = ssub.s32 128, 128
      %3440 = vsyncadd [#allocation4], %s3439
      %s3442 = sshll.u32 [#allocation17], 4
      %s3443 = int_to_ptr.vmem [resolvable:$true] %s3442
      %3445 = dma.vmem_to_hbm [thread:$0]  %s3443, 128, %s12, [#allocation4]
    $region89: #{tpu_custom_call.1} parent=1 // pred_fallthru
      _
    // Predicated region
    $region90: #{tpu_custom_call.1} parent=1 // pred_check
      _
    $region91: #{tpu_custom_call.1} parent=1 // pred_check_branch
      %3447 = sbr.rel (0) target = $region93
    $region92: #{tpu_custom_call.1} parent=1 // pred_region
      %s3449 = ssub.s32 256, 256
      %3450 = vsyncadd [#allocation19], %s3449
      %s3451 = sshll.u32 [#allocation18], 4
      %s3452 = int_to_ptr.vmem [resolvable:$true] %s3451
      %3457 = dma.vmem_to_hbm [thread:$0]  %s3452, 256, %s13, [#allocation19], 128, 128, 8
    $region93: #{tpu_custom_call.1} parent=1 // pred_fallthru
      _
    // Predicated region
    $region94: #{tpu_custom_call.1} parent=1 // pred_check
      _
    $region95: #{tpu_custom_call.1} parent=1 // pred_check_branch
      %3459 = sbr.rel (0) target = $region97
    $region96: #{tpu_custom_call.1} parent=1 // pred_region
      %s3461 = ssub.s32 128, 128
      %3462 = vsyncadd [#allocation19], %s3461
      %s3464 = sshll.u32 [#allocation20], 4
      %s3465 = int_to_ptr.vmem [resolvable:$true] %s3464
      %3467 = dma.vmem_to_hbm [thread:$0]  %s3465, 128, %s14, [#allocation19]
    $region97: #{tpu_custom_call.1} parent=1 // pred_fallthru
      _
    // Predicated region
    $region98: #{tpu_custom_call.1} parent=1 // pred_check
      _
    $region99: #{tpu_custom_call.1} parent=1 // pred_check_branch
      %3469 = sbr.rel (0) target = $region101
    $region100: #{tpu_custom_call.1} parent=1 // pred_region
      %3470 = dma.done [#allocation4], 128
    $region101: #{tpu_custom_call.1} parent=1 // pred_fallthru
      _
    // Predicated region
    $region102: #{tpu_custom_call.1} parent=1 // pred_check
      _
    $region103: #{tpu_custom_call.1} parent=1 // pred_check_branch
      %3472 = sbr.rel (0) target = $region105
    $region104: #{tpu_custom_call.1} parent=1 // pred_region
      %3473 = dma.done [#allocation19], 256
    $region105: #{tpu_custom_call.1} parent=1 // pred_fallthru
      _
    // Predicated region
    $region106: #{tpu_custom_call.1} parent=1 // pred_check
      _
    $region107: #{tpu_custom_call.1} parent=1 // pred_check_branch
      %3475 = sbr.rel (0) target = $region109
    $region108: #{tpu_custom_call.1} parent=1 // pred_region
      %3476 = dma.done [#allocation19], 128
    $region109: #{tpu_custom_call.1} parent=1 // pred_fallthru
      _
    %3477 = vsyncpa [#allocation3], 1
    %3478 = vsyncpa [#allocation6], 1
    %3479 = vsyncpa [#allocation9], 1
    %3480 = vsyncpa [#allocation12], 1
    %3481 = vsyncpa [#allocation15], 1
    %3482 = vsyncpa [#allocation4], 1
    %3483 = vsyncpa [#allocation19], 1

</llo_original>
